<compile_context>
chip_gen: v7x
topology: tpu7x:2x2x1
jax: 0.10.0
libtpu: 0.0.40
codegen_flags: <defaults>
</compile_context>

<pallas_src>
import functools

import jax
import jax.numpy as jnp
from jax.experimental import pallas as pl
from jax.experimental.pallas import tpu as pltpu


def _leaky_relu(x, slope=0.1):
    return jnp.where(x >= 0, x, slope * x)


# ---------------------------------------------------------------------------
# Single fused kernel: CA -> x1 scaling -> 2x2 pool -> QKV attention ->
# gamma*attn + pooled -> 4-phase transposed conv -> out = x + x1 * deconv.
# ---------------------------------------------------------------------------
def dam_kernel(x_ref, w1a_ref, w1b_ref, w2a_ref, w2b_ref,
               wq_ref, bq_ref, wk_ref, bk_ref, wv_ref, bv_ref,
               wph_ref, bd_ref, gamma_ref,
               out_ref, pad_ref, *, h, w, pad0):
    f32 = jnp.float32
    N = h * w
    C = x_ref.shape[1]
    HW = 4 * N

    x_all = x_ref[...]                                        # [4N, C]

    # ---- CA: global avg/max pool + two 1x1-conv MLPs + sigmoid ------------
    avg = jnp.sum(x_all, axis=0, keepdims=True) * (1.0 / HW)  # [1, C]
    mx = jnp.max(x_all, axis=0, keepdims=True)                # [1, C]

    a1 = _leaky_relu(jnp.dot(avg, w1a_ref[...], preferred_element_type=f32))
    a1 = jnp.dot(a1, w1b_ref[...], preferred_element_type=f32)
    m1 = _leaky_relu(jnp.dot(mx, w2a_ref[...], preferred_element_type=f32))
    m1 = jnp.dot(m1, w2b_ref[...], preferred_element_type=f32)
    scale = 1.0 / (1.0 + jnp.exp(-(a1 + m1)))                 # sigmoid, [1, C]

    # ---- 2x2 average pool of x1 = x * scale (phase slabs are contiguous) --
    xsum = (x_all[0 * N:1 * N, :] + x_all[1 * N:2 * N, :]
            + x_all[2 * N:3 * N, :] + x_all[3 * N:4 * N, :])
    pooled = (0.25 * scale) * xsum                            # [N, C]

    # ---- SA self-attention on the pooled tensor ---------------------------
    q = jnp.dot(pooled, wq_ref[...], preferred_element_type=f32) + bq_ref[...]
    k = jnp.dot(pooled, wk_ref[...], preferred_element_type=f32) + bk_ref[...]
    v = jnp.dot(pooled, wv_ref[...], preferred_element_type=f32) + bv_ref[...]

    # torch: attn = softmax(Q^T K, dim=1); out = V @ attn     ([C, N] layout)
    # here (in [N, C] layout): A = K Q^T, softmax over last axis, out = A V
    a_pre = jax.lax.dot_general(k, q, (((1,), (1,)), ((), ())),
                                preferred_element_type=f32)   # [N, N]
    a_max = jnp.max(a_pre, axis=-1, keepdims=True)
    a_exp = jnp.exp(a_pre - a_max)
    denom = jnp.sum(a_exp, axis=-1, keepdims=True)
    attn = a_exp * pl.reciprocal(denom, approx=True)
    attn_out = jnp.dot(attn, v, preferred_element_type=f32)   # [N, C]

    sa = gamma_ref[0, 0] * attn_out + pooled                  # [N, C]

    # ---- ConvTranspose2d(C, C, k=4, s=2, p=1) as 4 output-parity phases ---
    # Output (2p+r, 2q+s) only sees input rows p+dy (dy in {r-1, r}) and
    # columns q+dx (dx in {s-1, s}).  Shifted slabs are produced with cheap
    # static sublane-offset reads from a zero-padded flat scratch.
    pad_ref[...] = jnp.zeros_like(pad_ref)
    pad_ref[pad0:pad0 + N, :] = sa

    q_idx = jax.lax.broadcasted_iota(jnp.int32, (N, C), 0) % w

    def tap(dy, dx):
        t = dy * w + dx
        raw = pad_ref[pad0 + t:pad0 + t + N, :]               # [N, C]
        if dx == -1:                                          # q - 1 >= 0
            return jnp.where(q_idx >= 1, raw, 0.0)
        if dx == 1:                                           # q + 1 <= w - 1
            return jnp.where(q_idx <= w - 2, raw, 0.0)
        return raw                                            # row range handled by zero pad

    accs = [jnp.zeros((N, C), f32) for _ in range(4)]
    for dy in (-1, 0, 1):
        for dx in (-1, 0, 1):
            slab = tap(dy, dx)
            for kk in range(4):                               # phase kk = 2r + s
                r, s = kk // 2, kk % 2
                if dy in (r - 1, r) and dx in (s - 1, s):
                    wt = wph_ref[kk, dy - r + 1, dx - s + 1]   # [C, C]
                    accs[kk] = accs[kk] + jnp.dot(
                        slab, wt, preferred_element_type=f32)

    # ---- out = x + x1 * deconv = x * (1 + scale * deconv) -----------------
    bd = bd_ref[...]                                          # [1, C]
    for kk in range(4):
        xk = x_ref[kk * N:(kk + 1) * N, :]
        dck = accs[kk] + bd
        out_ref[kk * N:(kk + 1) * N, :] = xk + xk * (scale * dck)


# ---------------------------------------------------------------------------
# Wrapper: layout conversion (NCHW <-> phase-major [4N, C]) and weight prep.
# ---------------------------------------------------------------------------
def dam_forward(x, params):
    B, C, H, W = x.shape
    assert B == 1, "SA.forward's view(1, bc, -1) implies batch == 1"
    assert H % 2 == 0 and W % 2 == 0
    h, w = H // 2, W // 2
    N = h * w
    f32 = jnp.float32
    PAD0 = 16                                   # >= 9, sublane aligned

    # NCHW -> phase-major channels-last: x_ph[(2r+s)*N + p*w + q, c] = x[0,c,2p+r,2q+s]
    x0 = x[0].astype(f32).reshape(C, h, 2, w, 2)              # [c, p, r, q, s]
    x_ph = jnp.transpose(x0, (2, 4, 1, 3, 0)).reshape(4 * N, C)

    # Per-phase per-tap deconv weights: wph[k, DY, DX, ci, co] = Wd[ci, co, 3-r-2DY, 3-s-2DX]
    wd = params["wd"].astype(f32)                             # [ci, co, 4, 4]
    phases = [(0, 0), (0, 1), (1, 0), (1, 1)]                 # k = 2r + s
    wph = jnp.stack([
        jnp.stack([
            jnp.stack([wd[:, :, 3 - r - 2 * dy, 3 - s - 2 * dx] for dx in (0, 1)])
            for dy in (0, 1)])
        for (r, s) in phases])                                # [4, 2, 2, C, C]

    vmem = pl.BlockSpec(memory_space=pltpu.MemorySpace.VMEM)
    smem = pl.BlockSpec(memory_space=pltpu.MemorySpace.SMEM)

    out_ph = pl.pallas_call(
        functools.partial(dam_kernel, h=h, w=w, pad0=PAD0),
        out_shape=jax.ShapeDtypeStruct((4 * N, C), f32),
        in_specs=[vmem] * 13 + [smem],
        out_specs=vmem,
        scratch_shapes=[pltpu.VMEM((N + 2 * PAD0, C), f32)],
    )(
        x_ph,
        params["w1a"].T.astype(f32), params["w1b"].T.astype(f32),
        params["w2a"].T.astype(f32), params["w2b"].T.astype(f32),
        params["wq"].T.astype(f32), params["bq"][None, :].astype(f32),
        params["wk"].T.astype(f32), params["bk"][None, :].astype(f32),
        params["wv"].T.astype(f32), params["bv"][None, :].astype(f32),
        wph, params["bd"][None, :].astype(f32),
        params["gamma"].reshape(1, 1).astype(f32),
    )

    # phase-major -> NCHW
    out5 = out_ph.reshape(2, 2, h, w, C)                      # [r, s, p, q, c]
    return jnp.transpose(out5, (4, 2, 0, 3, 1)).reshape(1, C, H, W)


# ---------------------------------------------------------------------------
# Pure-JAX reference (mirrors the PyTorch forward) for a sanity check.
# ---------------------------------------------------------------------------
def dam_reference(x, params):
    B, C, H, W = x.shape
    avg = x.mean(axis=(2, 3))                                 # [1, C]
    mx = x.max(axis=(2, 3))                                   # [1, C]

    def mlp(v, wa, wb):
        hdn = v @ wa.T
        hdn = jnp.where(hdn >= 0, hdn, 0.1 * hdn)
        return hdn @ wb.T

    scale = jax.nn.sigmoid(mlp(avg, params["w1a"], params["w1b"]) +
                           mlp(mx, params["w2a"], params["w2b"]))
    x1 = x * scale[:, :, None, None]

    h, w = H // 2, W // 2
    pooled = x1.reshape(B, C, h, 2, w, 2).mean(axis=(3, 5))   # [1, C, h, w]
    flat = pooled.reshape(1, C, -1)                           # [1, C, N]
    q = jnp.einsum("oc,bcn->bon", params["wq"], flat) + params["bq"][None, :, None]
    k = jnp.einsum("oc,bcn->bon", params["wk"], flat) + params["bk"][None, :, None]
    v = jnp.einsum("oc,bcn->bon", params["wv"], flat) + params["bv"][None, :, None]
    qk = jnp.einsum("bcn,bcm->bnm", q, k)                     # [1, N, N]
    attn = jax.nn.softmax(qk, axis=1)
    att = jnp.einsum("bcn,bnm->bcm", v, attn).reshape(pooled.shape)
    sa_in = params["gamma"] * att + pooled

    wconv = jnp.transpose(jnp.flip(params["wd"], axis=(2, 3)), (1, 0, 2, 3))
    dc = jax.lax.conv_general_dilated(
        sa_in, wconv, window_strides=(1, 1), padding=((2, 2), (2, 2)),
        lhs_dilation=(2, 2), dimension_numbers=("NCHW", "OIHW", "NCHW"))
    dc = dc + params["bd"][None, :, None, None]
    return x + x1 * dc


if __name__ == "__main__":
    bc, r, dim = 6, 2, 16          # DAM(bc=6, r=2, dim=16)
    B, H, W = 1, dim, dim
    mid, cq = bc // r, bc // 3

    key = jax.random.PRNGKey(0)
    ks = jax.random.split(key, 13)
    init = lambda k, shape: (0.1 * jax.random.normal(k, shape)).astype(jnp.float32)

    params = dict(
        w1a=init(ks[0], (mid, bc)), w1b=init(ks[1], (bc, mid)),     # CA.clrc1
        w2a=init(ks[2], (mid, bc)), w2b=init(ks[3], (bc, mid)),     # CA.clrc2
        wq=init(ks[4], (cq, bc)), bq=init(ks[5], (cq,)),            # SA.q
        wk=init(ks[6], (cq, bc)), bk=init(ks[7], (cq,)),            # SA.k
        wv=init(ks[8], (bc, bc)), bv=init(ks[9], (bc,)),            # SA.v
        wd=init(ks[10], (bc, bc, 4, 4)), bd=init(ks[11], (bc,)),    # SA.deconv
        # torch inits gamma to 0.0; use a nonzero value so the attention path
        # actually contributes to the output being checked.
        gamma=jnp.array(0.1, jnp.float32),
    )

    x = jax.random.normal(ks[12], (B, bc, H, W), jnp.float32)

    dam_fn = jax.jit(dam_forward)
    out = jax.block_until_ready(dam_fn(x, params))

    with jax.default_matmul_precision("highest"):
        ref = dam_reference(x, params)

    assert out.shape == (B, bc, H, W)
    max_err = float(jnp.max(jnp.abs(out - ref)))
    assert jnp.allclose(out, ref, atol=1e-2, rtol=1e-2), f"max_err={max_err}"
    print("KERNEL_OK")
</pallas_src>

<mosaic_0001>
module attributes {stable_mosaic.version = 11 : i64} {
  func.func @dam_kernel(%arg0: memref<256x6xf32, #tpu.memory_space<vmem>>, %arg1: memref<6x3xf32, #tpu.memory_space<vmem>>, %arg2: memref<3x6xf32, #tpu.memory_space<vmem>>, %arg3: memref<6x3xf32, #tpu.memory_space<vmem>>, %arg4: memref<3x6xf32, #tpu.memory_space<vmem>>, %arg5: memref<6x2xf32, #tpu.memory_space<vmem>>, %arg6: memref<1x2xf32, #tpu.memory_space<vmem>>, %arg7: memref<6x2xf32, #tpu.memory_space<vmem>>, %arg8: memref<1x2xf32, #tpu.memory_space<vmem>>, %arg9: memref<6x6xf32, #tpu.memory_space<vmem>>, %arg10: memref<1x6xf32, #tpu.memory_space<vmem>>, %arg11: memref<4x2x2x6x6xf32, #tpu.memory_space<vmem>>, %arg12: memref<1x6xf32, #tpu.memory_space<vmem>>, %arg13: memref<1x1xf32, #tpu.memory_space<smem>>, %arg14: memref<256x6xf32, #tpu.memory_space<vmem>>, %arg15: memref<96x6xf32, #tpu.memory_space<vmem>>) attributes {dimension_semantics = [], scalar_prefetch = 0 : i64, scratch_operands = 1 : i64, tpu.core_type = #tpu.core_type<tc>} {
    %c0 = arith.constant 0 : index
    %c0_0 = arith.constant 0 : index
    %0 = vector.load %arg0[%c0, %c0_0] : memref<256x6xf32, #tpu.memory_space<vmem>>, vector<256x6xf32>
    %cst = arith.constant dense<0.000000e+00> : vector<6xf32>
    %1 = vector.multi_reduction <add>, %0, %cst [0] : vector<256x6xf32> to vector<6xf32>
    %2 = vector.shape_cast %1 : vector<6xf32> to vector<1x6xf32>
    %cst_1 = arith.constant 3.906250e-03 : f32
    %3 = vector.broadcast %cst_1 : f32 to vector<1x6xf32>
    %4 = arith.mulf %2, %3 : vector<1x6xf32>
    %cst_2 = arith.constant dense<0xFF800000> : vector<6xf32>
    %5 = vector.multi_reduction <maximumf>, %0, %cst_2 [0] : vector<256x6xf32> to vector<6xf32>
    %6 = vector.shape_cast %5 : vector<6xf32> to vector<1x6xf32>
    %c0_3 = arith.constant 0 : index
    %c0_4 = arith.constant 0 : index
    %7 = vector.load %arg1[%c0_3, %c0_4] : memref<6x3xf32, #tpu.memory_space<vmem>>, vector<6x3xf32>
    %cst_5 = arith.constant dense<0.000000e+00> : vector<1x3xf32>
    %8 = tpu.matmul %4, %7, %cst_5 {dimension_numbers = #tpu.dot_dimension_numbers<[1], [0], [0], [1], [0, 0, 1, 1], [], []>} : vector<1x6xf32>, vector<6x3xf32>, vector<1x3xf32> -> vector<1x3xf32>
    %cst_6 = arith.constant 0.000000e+00 : f32
    %9 = vector.broadcast %cst_6 : f32 to vector<1x3xf32>
    %10 = arith.cmpf oge, %8, %9 : vector<1x3xf32>
    %cst_7 = arith.constant 1.000000e-01 : f32
    %11 = vector.broadcast %cst_7 : f32 to vector<1x3xf32>
    %12 = arith.mulf %11, %8 : vector<1x3xf32>
    %13 = arith.select %10, %8, %12 : vector<1x3xi1>, vector<1x3xf32>
    %c0_8 = arith.constant 0 : index
    %c0_9 = arith.constant 0 : index
    %14 = vector.load %arg2[%c0_8, %c0_9] : memref<3x6xf32, #tpu.memory_space<vmem>>, vector<3x6xf32>
    %cst_10 = arith.constant dense<0.000000e+00> : vector<1x6xf32>
    %15 = tpu.matmul %13, %14, %cst_10 {dimension_numbers = #tpu.dot_dimension_numbers<[1], [0], [0], [1], [0, 0, 1, 1], [], []>} : vector<1x3xf32>, vector<3x6xf32>, vector<1x6xf32> -> vector<1x6xf32>
    %c0_11 = arith.constant 0 : index
    %c0_12 = arith.constant 0 : index
    %16 = vector.load %arg3[%c0_11, %c0_12] : memref<6x3xf32, #tpu.memory_space<vmem>>, vector<6x3xf32>
    %cst_13 = arith.constant dense<0.000000e+00> : vector<1x3xf32>
    %17 = tpu.matmul %6, %16, %cst_13 {dimension_numbers = #tpu.dot_dimension_numbers<[1], [0], [0], [1], [0, 0, 1, 1], [], []>} : vector<1x6xf32>, vector<6x3xf32>, vector<1x3xf32> -> vector<1x3xf32>
    %cst_14 = arith.constant 0.000000e+00 : f32
    %18 = vector.broadcast %cst_14 : f32 to vector<1x3xf32>
    %19 = arith.cmpf oge, %17, %18 : vector<1x3xf32>
    %cst_15 = arith.constant 1.000000e-01 : f32
    %20 = vector.broadcast %cst_15 : f32 to vector<1x3xf32>
    %21 = arith.mulf %20, %17 : vector<1x3xf32>
    %22 = arith.select %19, %17, %21 : vector<1x3xi1>, vector<1x3xf32>
    %c0_16 = arith.constant 0 : index
    %c0_17 = arith.constant 0 : index
    %23 = vector.load %arg4[%c0_16, %c0_17] : memref<3x6xf32, #tpu.memory_space<vmem>>, vector<3x6xf32>
    %cst_18 = arith.constant dense<0.000000e+00> : vector<1x6xf32>
    %24 = tpu.matmul %22, %23, %cst_18 {dimension_numbers = #tpu.dot_dimension_numbers<[1], [0], [0], [1], [0, 0, 1, 1], [], []>} : vector<1x3xf32>, vector<3x6xf32>, vector<1x6xf32> -> vector<1x6xf32>
    %25 = arith.addf %15, %24 : vector<1x6xf32>
    %cst_19 = arith.constant 0.000000e+00 : f32
    %26 = vector.broadcast %cst_19 : f32 to vector<1x6xf32>
    %27 = arith.subf %26, %25 : vector<1x6xf32>
    %28 = math.exp %27 : vector<1x6xf32>
    %cst_20 = arith.constant 1.000000e+00 : f32
    %29 = vector.broadcast %cst_20 : f32 to vector<1x6xf32>
    %30 = arith.addf %29, %28 : vector<1x6xf32>
    %cst_21 = arith.constant 1.000000e+00 : f32
    %31 = vector.broadcast %cst_21 : f32 to vector<1x6xf32>
    %32 = arith.divf %31, %30 : vector<1x6xf32>
    %33 = vector.extract_strided_slice %0 {offsets = [0, 0], sizes = [64, 6], strides = [1, 1]} : vector<256x6xf32> to vector<64x6xf32>
    %34 = vector.extract_strided_slice %0 {offsets = [64, 0], sizes = [64, 6], strides = [1, 1]} : vector<256x6xf32> to vector<64x6xf32>
    %35 = arith.addf %33, %34 : vector<64x6xf32>
    %36 = vector.extract_strided_slice %0 {offsets = [128, 0], sizes = [64, 6], strides = [1, 1]} : vector<256x6xf32> to vector<64x6xf32>
    %37 = arith.addf %35, %36 : vector<64x6xf32>
    %38 = vector.extract_strided_slice %0 {offsets = [192, 0], sizes = [64, 6], strides = [1, 1]} : vector<256x6xf32> to vector<64x6xf32>
    %39 = arith.addf %37, %38 : vector<64x6xf32>
    %cst_22 = arith.constant 2.500000e-01 : f32
    %40 = vector.broadcast %cst_22 : f32 to vector<1x6xf32>
    %41 = arith.mulf %40, %32 : vector<1x6xf32>
    %42 = vector.broadcast %41 : vector<1x6xf32> to vector<64x6xf32>
    %43 = arith.mulf %42, %39 : vector<64x6xf32>
    %c0_23 = arith.constant 0 : index
    %c0_24 = arith.constant 0 : index
    %44 = vector.load %arg5[%c0_23, %c0_24] : memref<6x2xf32, #tpu.memory_space<vmem>>, vector<6x2xf32>
    %cst_25 = arith.constant dense<0.000000e+00> : vector<64x2xf32>
    %45 = tpu.matmul %43, %44, %cst_25 {dimension_numbers = #tpu.dot_dimension_numbers<[1], [0], [0], [1], [0, 0, 1, 1], [], []>} : vector<64x6xf32>, vector<6x2xf32>, vector<64x2xf32> -> vector<64x2xf32>
    %c0_26 = arith.constant 0 : index
    %c0_27 = arith.constant 0 : index
    %46 = vector.load %arg6[%c0_26, %c0_27] : memref<1x2xf32, #tpu.memory_space<vmem>>, vector<1x2xf32>
    %47 = vector.broadcast %46 : vector<1x2xf32> to vector<64x2xf32>
    %48 = arith.addf %45, %47 : vector<64x2xf32>
    %c0_28 = arith.constant 0 : index
    %c0_29 = arith.constant 0 : index
    %49 = vector.load %arg7[%c0_28, %c0_29] : memref<6x2xf32, #tpu.memory_space<vmem>>, vector<6x2xf32>
    %cst_30 = arith.constant dense<0.000000e+00> : vector<64x2xf32>
    %50 = tpu.matmul %43, %49, %cst_30 {dimension_numbers = #tpu.dot_dimension_numbers<[1], [0], [0], [1], [0, 0, 1, 1], [], []>} : vector<64x6xf32>, vector<6x2xf32>, vector<64x2xf32> -> vector<64x2xf32>
    %c0_31 = arith.constant 0 : index
    %c0_32 = arith.constant 0 : index
    %51 = vector.load %arg8[%c0_31, %c0_32] : memref<1x2xf32, #tpu.memory_space<vmem>>, vector<1x2xf32>
    %52 = vector.broadcast %51 : vector<1x2xf32> to vector<64x2xf32>
    %53 = arith.addf %50, %52 : vector<64x2xf32>
    %c0_33 = arith.constant 0 : index
    %c0_34 = arith.constant 0 : index
    %54 = vector.load %arg9[%c0_33, %c0_34] : memref<6x6xf32, #tpu.memory_space<vmem>>, vector<6x6xf32>
    %cst_35 = arith.constant dense<0.000000e+00> : vector<64x6xf32>
    %55 = tpu.matmul %43, %54, %cst_35 {dimension_numbers = #tpu.dot_dimension_numbers<[1], [0], [0], [1], [0, 0, 1, 1], [], []>} : vector<64x6xf32>, vector<6x6xf32>, vector<64x6xf32> -> vector<64x6xf32>
    %c0_36 = arith.constant 0 : index
    %c0_37 = arith.constant 0 : index
    %56 = vector.load %arg10[%c0_36, %c0_37] : memref<1x6xf32, #tpu.memory_space<vmem>>, vector<1x6xf32>
    %57 = vector.broadcast %56 : vector<1x6xf32> to vector<64x6xf32>
    %58 = arith.addf %55, %57 : vector<64x6xf32>
    %cst_38 = arith.constant dense<0.000000e+00> : vector<64x64xf32>
    %59 = tpu.matmul %53, %48, %cst_38 {dimension_numbers = #tpu.dot_dimension_numbers<[1], [1], [0], [0], [0, 0, 1, 0], [], []>} : vector<64x2xf32>, vector<64x2xf32>, vector<64x64xf32> -> vector<64x64xf32>
    %cst_39 = arith.constant dense<0xFF800000> : vector<64xf32>
    %60 = vector.multi_reduction <maximumf>, %59, %cst_39 [1] : vector<64x64xf32> to vector<64xf32>
    %61 = vector.shape_cast %60 : vector<64xf32> to vector<64x1xf32>
    %62 = vector.broadcast %61 : vector<64x1xf32> to vector<64x64xf32>
    %63 = arith.subf %59, %62 : vector<64x64xf32>
    %64 = math.exp %63 : vector<64x64xf32>
    %cst_40 = arith.constant dense<0.000000e+00> : vector<64xf32>
    %65 = vector.multi_reduction <add>, %64, %cst_40 [1] : vector<64x64xf32> to vector<64xf32>
    %66 = vector.shape_cast %65 : vector<64xf32> to vector<64x1xf32>
    %67 = tpu.reciprocal %66 {approx = true} : vector<64x1xf32> -> vector<64x1xf32>
    %68 = vector.broadcast %67 : vector<64x1xf32> to vector<64x64xf32>
    %69 = arith.mulf %64, %68 : vector<64x64xf32>
    %cst_41 = arith.constant dense<0.000000e+00> : vector<64x6xf32>
    %70 = tpu.matmul %69, %58, %cst_41 {dimension_numbers = #tpu.dot_dimension_numbers<[1], [0], [0], [1], [0, 0, 1, 1], [], []>} : vector<64x64xf32>, vector<64x6xf32>, vector<64x6xf32> -> vector<64x6xf32>
    %c0_42 = arith.constant 0 : index
    %c0_43 = arith.constant 0 : index
    %71 = memref.load %arg13[%c0_42, %c0_43] : memref<1x1xf32, #tpu.memory_space<smem>>
    %72 = vector.broadcast %71 : f32 to vector<64x6xf32>
    %73 = arith.mulf %72, %70 : vector<64x6xf32>
    %74 = arith.addf %73, %43 : vector<64x6xf32>
    %cst_44 = arith.constant 0.000000e+00 : f32
    %75 = vector.broadcast %cst_44 : f32 to vector<96x6xf32>
    %c0_45 = arith.constant 0 : index
    %c0_46 = arith.constant 0 : index
    %76 = vector.load %arg15[%c0_45, %c0_46] : memref<96x6xf32, #tpu.memory_space<vmem>>, vector<96x6xf32>
    tpu.vector_store %arg15[%c0_45, %c0_46], %75 {strides = array<i32>} : memref<96x6xf32, #tpu.memory_space<vmem>>, vector<96x6xf32>,
    %c16 = arith.constant 16 : index
    %c0_47 = arith.constant 0 : index
    %77 = vector.load %arg15[%c16, %c0_47] : memref<96x6xf32, #tpu.memory_space<vmem>>, vector<64x6xf32>
    tpu.vector_store %arg15[%c16, %c0_47], %74 {strides = array<i32>} : memref<96x6xf32, #tpu.memory_space<vmem>>, vector<64x6xf32>,
    %78 = tpu.iota {dimensions = array<i32: 0>} : vector<64x6xi32>
    %c8_i32 = arith.constant 8 : i32
    %c0_i32 = arith.constant 0 : i32
    %79 = arith.cmpi eq, %c8_i32, %c0_i32 : i32
    %c1_i32 = arith.constant 1 : i32
    %80 = arith.select %79, %c1_i32, %c8_i32 : i32
    %81 = vector.broadcast %80 : i32 to vector<64x6xi32>
    %82 = arith.remsi %78, %81 : vector<64x6xi32>
    %c0_i32_48 = arith.constant 0 : i32
    %83 = vector.broadcast %c0_i32_48 : i32 to vector<64x6xi32>
    %84 = arith.cmpi ne, %82, %83 : vector<64x6xi32>
    %c0_i32_49 = arith.constant 0 : i32
    %85 = vector.broadcast %c0_i32_49 : i32 to vector<64x6xi32>
    %86 = arith.cmpi slt, %82, %85 : vector<64x6xi32>
    %c0_i32_50 = arith.constant 0 : i32
    %87 = arith.cmpi slt, %80, %c0_i32_50 : i32
    %88 = vector.broadcast %87 : i1 to vector<64x6xi1>
    %89 = vector.broadcast %88 : vector<64x6xi1> to vector<64x6xi1>
    %90 = arith.xori %86, %89 : vector<64x6xi1>
    %91 = arith.andi %90, %84 : vector<64x6xi1>
    %92 = vector.broadcast %80 : i32 to vector<64x6xi32>
    %93 = arith.addi %82, %92 : vector<64x6xi32>
    %94 = arith.select %91, %93, %82 : vector<64x6xi1>, vector<64x6xi32>
    %cst_51 = arith.constant 0.000000e+00 : f32
    %95 = vector.broadcast %cst_51 : f32 to vector<64x6xf32>
    %cst_52 = arith.constant 0.000000e+00 : f32
    %96 = vector.broadcast %cst_52 : f32 to vector<64x6xf32>
    %cst_53 = arith.constant 0.000000e+00 : f32
    %97 = vector.broadcast %cst_53 : f32 to vector<64x6xf32>
    %cst_54 = arith.constant 0.000000e+00 : f32
    %98 = vector.broadcast %cst_54 : f32 to vector<64x6xf32>
    %c7 = arith.constant 7 : index
    %c0_55 = arith.constant 0 : index
    %99 = vector.load %arg15[%c7, %c0_55] : memref<96x6xf32, #tpu.memory_space<vmem>>, vector<64x6xf32>
    %c1_i32_56 = arith.constant 1 : i32
    %100 = vector.broadcast %c1_i32_56 : i32 to vector<64x6xi32>
    %101 = arith.cmpi sge, %94, %100 : vector<64x6xi32>
    %cst_57 = arith.constant 0.000000e+00 : f32
    %102 = vector.broadcast %cst_57 : f32 to vector<64x6xf32>
    %103 = arith.select %101, %99, %102 : vector<64x6xi1>, vector<64x6xf32>
    %c0_58 = arith.constant 0 : index
    %c0_59 = arith.constant 0 : index
    %c0_60 = arith.constant 0 : index
    %c0_61 = arith.constant 0 : index
    %c0_62 = arith.constant 0 : index
    %104 = vector.load %arg11[%c0_58, %c0_59, %c0_60, %c0_61, %c0_62] : memref<4x2x2x6x6xf32, #tpu.memory_space<vmem>>, vector<1x1x1x6x6xf32>
    %105 = vector.shape_cast %104 : vector<1x1x1x6x6xf32> to vector<6x6xf32>
    %cst_63 = arith.constant dense<0.000000e+00> : vector<64x6xf32>
    %106 = tpu.matmul %103, %105, %cst_63 {dimension_numbers = #tpu.dot_dimension_numbers<[1], [0], [0], [1], [0, 0, 1, 1], [], []>} : vector<64x6xf32>, vector<6x6xf32>, vector<64x6xf32> -> vector<64x6xf32>
    %107 = arith.addf %95, %106 : vector<64x6xf32>
    %c8 = arith.constant 8 : index
    %c0_64 = arith.constant 0 : index
    %108 = vector.load %arg15[%c8, %c0_64] : memref<96x6xf32, #tpu.memory_space<vmem>>, vector<64x6xf32>
    %c0_65 = arith.constant 0 : index
    %c0_66 = arith.constant 0 : index
    %c1 = arith.constant 1 : index
    %c0_67 = arith.constant 0 : index
    %c0_68 = arith.constant 0 : index
    %109 = vector.load %arg11[%c0_65, %c0_66, %c1, %c0_67, %c0_68] : memref<4x2x2x6x6xf32, #tpu.memory_space<vmem>>, vector<1x1x1x6x6xf32>
    %110 = vector.shape_cast %109 : vector<1x1x1x6x6xf32> to vector<6x6xf32>
    %cst_69 = arith.constant dense<0.000000e+00> : vector<64x6xf32>
    %111 = tpu.matmul %108, %110, %cst_69 {dimension_numbers = #tpu.dot_dimension_numbers<[1], [0], [0], [1], [0, 0, 1, 1], [], []>} : vector<64x6xf32>, vector<6x6xf32>, vector<64x6xf32> -> vector<64x6xf32>
    %112 = arith.addf %107, %111 : vector<64x6xf32>
    %c1_70 = arith.constant 1 : index
    %c0_71 = arith.constant 0 : index
    %c0_72 = arith.constant 0 : index
    %c0_73 = arith.constant 0 : index
    %c0_74 = arith.constant 0 : index
    %113 = vector.load %arg11[%c1_70, %c0_71, %c0_72, %c0_73, %c0_74] : memref<4x2x2x6x6xf32, #tpu.memory_space<vmem>>, vector<1x1x1x6x6xf32>
    %114 = vector.shape_cast %113 : vector<1x1x1x6x6xf32> to vector<6x6xf32>
    %cst_75 = arith.constant dense<0.000000e+00> : vector<64x6xf32>
    %115 = tpu.matmul %108, %114, %cst_75 {dimension_numbers = #tpu.dot_dimension_numbers<[1], [0], [0], [1], [0, 0, 1, 1], [], []>} : vector<64x6xf32>, vector<6x6xf32>, vector<64x6xf32> -> vector<64x6xf32>
    %116 = arith.addf %96, %115 : vector<64x6xf32>
    %c9 = arith.constant 9 : index
    %c0_76 = arith.constant 0 : index
    %117 = vector.load %arg15[%c9, %c0_76] : memref<96x6xf32, #tpu.memory_space<vmem>>, vector<64x6xf32>
    %c6_i32 = arith.constant 6 : i32
    %118 = vector.broadcast %c6_i32 : i32 to vector<64x6xi32>
    %119 = arith.cmpi sle, %94, %118 : vector<64x6xi32>
    %cst_77 = arith.constant 0.000000e+00 : f32
    %120 = vector.broadcast %cst_77 : f32 to vector<64x6xf32>
    %121 = arith.select %119, %117, %120 : vector<64x6xi1>, vector<64x6xf32>
    %c1_78 = arith.constant 1 : index
    %c0_79 = arith.constant 0 : index
    %c1_80 = arith.constant 1 : index
    %c0_81 = arith.constant 0 : index
    %c0_82 = arith.constant 0 : index
    %122 = vector.load %arg11[%c1_78, %c0_79, %c1_80, %c0_81, %c0_82] : memref<4x2x2x6x6xf32, #tpu.memory_space<vmem>>, vector<1x1x1x6x6xf32>
    %123 = vector.shape_cast %122 : vector<1x1x1x6x6xf32> to vector<6x6xf32>
    %cst_83 = arith.constant dense<0.000000e+00> : vector<64x6xf32>
    %124 = tpu.matmul %121, %123, %cst_83 {dimension_numbers = #tpu.dot_dimension_numbers<[1], [0], [0], [1], [0, 0, 1, 1], [], []>} : vector<64x6xf32>, vector<6x6xf32>, vector<64x6xf32> -> vector<64x6xf32>
    %125 = arith.addf %116, %124 : vector<64x6xf32>
    %c15 = arith.constant 15 : index
    %c0_84 = arith.constant 0 : index
    %126 = vector.load %arg15[%c15, %c0_84] : memref<96x6xf32, #tpu.memory_space<vmem>>, vector<64x6xf32>
    %c1_i32_85 = arith.constant 1 : i32
    %127 = vector.broadcast %c1_i32_85 : i32 to vector<64x6xi32>
    %128 = arith.cmpi sge, %94, %127 : vector<64x6xi32>
    %cst_86 = arith.constant 0.000000e+00 : f32
    %129 = vector.broadcast %cst_86 : f32 to vector<64x6xf32>
    %130 = arith.select %128, %126, %129 : vector<64x6xi1>, vector<64x6xf32>
    %c0_87 = arith.constant 0 : index
    %c1_88 = arith.constant 1 : index
    %c0_89 = arith.constant 0 : index
    %c0_90 = arith.constant 0 : index
    %c0_91 = arith.constant 0 : index
    %131 = vector.load %arg11[%c0_87, %c1_88, %c0_89, %c0_90, %c0_91] : memref<4x2x2x6x6xf32, #tpu.memory_space<vmem>>, vector<1x1x1x6x6xf32>
    %132 = vector.shape_cast %131 : vector<1x1x1x6x6xf32> to vector<6x6xf32>
    %cst_92 = arith.constant dense<0.000000e+00> : vector<64x6xf32>
    %133 = tpu.matmul %130, %132, %cst_92 {dimension_numbers = #tpu.dot_dimension_numbers<[1], [0], [0], [1], [0, 0, 1, 1], [], []>} : vector<64x6xf32>, vector<6x6xf32>, vector<64x6xf32> -> vector<64x6xf32>
    %134 = arith.addf %112, %133 : vector<64x6xf32>
    %c2 = arith.constant 2 : index
    %c0_93 = arith.constant 0 : index
    %c0_94 = arith.constant 0 : index
    %c0_95 = arith.constant 0 : index
    %c0_96 = arith.constant 0 : index
    %135 = vector.load %arg11[%c2, %c0_93, %c0_94, %c0_95, %c0_96] : memref<4x2x2x6x6xf32, #tpu.memory_space<vmem>>, vector<1x1x1x6x6xf32>
    %136 = vector.shape_cast %135 : vector<1x1x1x6x6xf32> to vector<6x6xf32>
    %cst_97 = arith.constant dense<0.000000e+00> : vector<64x6xf32>
    %137 = tpu.matmul %130, %136, %cst_97 {dimension_numbers = #tpu.dot_dimension_numbers<[1], [0], [0], [1], [0, 0, 1, 1], [], []>} : vector<64x6xf32>, vector<6x6xf32>, vector<64x6xf32> -> vector<64x6xf32>
    %138 = arith.addf %97, %137 : vector<64x6xf32>
    %c16_98 = arith.constant 16 : index
    %c0_99 = arith.constant 0 : index
    %139 = vector.load %arg15[%c16_98, %c0_99] : memref<96x6xf32, #tpu.memory_space<vmem>>, vector<64x6xf32>
    %c0_100 = arith.constant 0 : index
    %c1_101 = arith.constant 1 : index
    %c1_102 = arith.constant 1 : index
    %c0_103 = arith.constant 0 : index
    %c0_104 = arith.constant 0 : index
    %140 = vector.load %arg11[%c0_100, %c1_101, %c1_102, %c0_103, %c0_104] : memref<4x2x2x6x6xf32, #tpu.memory_space<vmem>>, vector<1x1x1x6x6xf32>
    %141 = vector.shape_cast %140 : vector<1x1x1x6x6xf32> to vector<6x6xf32>
    %cst_105 = arith.constant dense<0.000000e+00> : vector<64x6xf32>
    %142 = tpu.matmul %139, %141, %cst_105 {dimension_numbers = #tpu.dot_dimension_numbers<[1], [0], [0], [1], [0, 0, 1, 1], [], []>} : vector<64x6xf32>, vector<6x6xf32>, vector<64x6xf32> -> vector<64x6xf32>
    %143 = arith.addf %134, %142 : vector<64x6xf32>
    %c1_106 = arith.constant 1 : index
    %c1_107 = arith.constant 1 : index
    %c0_108 = arith.constant 0 : index
    %c0_109 = arith.constant 0 : index
    %c0_110 = arith.constant 0 : index
    %144 = vector.load %arg11[%c1_106, %c1_107, %c0_108, %c0_109, %c0_110] : memref<4x2x2x6x6xf32, #tpu.memory_space<vmem>>, vector<1x1x1x6x6xf32>
    %145 = vector.shape_cast %144 : vector<1x1x1x6x6xf32> to vector<6x6xf32>
    %cst_111 = arith.constant dense<0.000000e+00> : vector<64x6xf32>
    %146 = tpu.matmul %139, %145, %cst_111 {dimension_numbers = #tpu.dot_dimension_numbers<[1], [0], [0], [1], [0, 0, 1, 1], [], []>} : vector<64x6xf32>, vector<6x6xf32>, vector<64x6xf32> -> vector<64x6xf32>
    %147 = arith.addf %125, %146 : vector<64x6xf32>
    %c2_112 = arith.constant 2 : index
    %c0_113 = arith.constant 0 : index
    %c1_114 = arith.constant 1 : index
    %c0_115 = arith.constant 0 : index
    %c0_116 = arith.constant 0 : index
    %148 = vector.load %arg11[%c2_112, %c0_113, %c1_114, %c0_115, %c0_116] : memref<4x2x2x6x6xf32, #tpu.memory_space<vmem>>, vector<1x1x1x6x6xf32>
    %149 = vector.shape_cast %148 : vector<1x1x1x6x6xf32> to vector<6x6xf32>
    %cst_117 = arith.constant dense<0.000000e+00> : vector<64x6xf32>
    %150 = tpu.matmul %139, %149, %cst_117 {dimension_numbers = #tpu.dot_dimension_numbers<[1], [0], [0], [1], [0, 0, 1, 1], [], []>} : vector<64x6xf32>, vector<6x6xf32>, vector<64x6xf32> -> vector<64x6xf32>
    %151 = arith.addf %138, %150 : vector<64x6xf32>
    %c3 = arith.constant 3 : index
    %c0_118 = arith.constant 0 : index
    %c0_119 = arith.constant 0 : index
    %c0_120 = arith.constant 0 : index
    %c0_121 = arith.constant 0 : index
    %152 = vector.load %arg11[%c3, %c0_118, %c0_119, %c0_120, %c0_121] : memref<4x2x2x6x6xf32, #tpu.memory_space<vmem>>, vector<1x1x1x6x6xf32>
    %153 = vector.shape_cast %152 : vector<1x1x1x6x6xf32> to vector<6x6xf32>
    %cst_122 = arith.constant dense<0.000000e+00> : vector<64x6xf32>
    %154 = tpu.matmul %139, %153, %cst_122 {dimension_numbers = #tpu.dot_dimension_numbers<[1], [0], [0], [1], [0, 0, 1, 1], [], []>} : vector<64x6xf32>, vector<6x6xf32>, vector<64x6xf32> -> vector<64x6xf32>
    %155 = arith.addf %98, %154 : vector<64x6xf32>
    %c17 = arith.constant 17 : index
    %c0_123 = arith.constant 0 : index
    %156 = vector.load %arg15[%c17, %c0_123] : memref<96x6xf32, #tpu.memory_space<vmem>>, vector<64x6xf32>
    %c6_i32_124 = arith.constant 6 : i32
    %157 = vector.broadcast %c6_i32_124 : i32 to vector<64x6xi32>
    %158 = arith.cmpi sle, %94, %157 : vector<64x6xi32>
    %cst_125 = arith.constant 0.000000e+00 : f32
    %159 = vector.broadcast %cst_125 : f32 to vector<64x6xf32>
    %160 = arith.select %158, %156, %159 : vector<64x6xi1>, vector<64x6xf32>
    %c1_126 = arith.constant 1 : index
    %c1_127 = arith.constant 1 : index
    %c1_128 = arith.constant 1 : index
    %c0_129 = arith.constant 0 : index
    %c0_130 = arith.constant 0 : index
    %161 = vector.load %arg11[%c1_126, %c1_127, %c1_128, %c0_129, %c0_130] : memref<4x2x2x6x6xf32, #tpu.memory_space<vmem>>, vector<1x1x1x6x6xf32>
    %162 = vector.shape_cast %161 : vector<1x1x1x6x6xf32> to vector<6x6xf32>
    %cst_131 = arith.constant dense<0.000000e+00> : vector<64x6xf32>
    %163 = tpu.matmul %160, %162, %cst_131 {dimension_numbers = #tpu.dot_dimension_numbers<[1], [0], [0], [1], [0, 0, 1, 1], [], []>} : vector<64x6xf32>, vector<6x6xf32>, vector<64x6xf32> -> vector<64x6xf32>
    %164 = arith.addf %147, %163 : vector<64x6xf32>
    %c3_132 = arith.constant 3 : index
    %c0_133 = arith.constant 0 : index
    %c1_134 = arith.constant 1 : index
    %c0_135 = arith.constant 0 : index
    %c0_136 = arith.constant 0 : index
    %165 = vector.load %arg11[%c3_132, %c0_133, %c1_134, %c0_135, %c0_136] : memref<4x2x2x6x6xf32, #tpu.memory_space<vmem>>, vector<1x1x1x6x6xf32>
    %166 = vector.shape_cast %165 : vector<1x1x1x6x6xf32> to vector<6x6xf32>
    %cst_137 = arith.constant dense<0.000000e+00> : vector<64x6xf32>
    %167 = tpu.matmul %160, %166, %cst_137 {dimension_numbers = #tpu.dot_dimension_numbers<[1], [0], [0], [1], [0, 0, 1, 1], [], []>} : vector<64x6xf32>, vector<6x6xf32>, vector<64x6xf32> -> vector<64x6xf32>
    %168 = arith.addf %155, %167 : vector<64x6xf32>
    %c23 = arith.constant 23 : index
    %c0_138 = arith.constant 0 : index
    %169 = vector.load %arg15[%c23, %c0_138] : memref<96x6xf32, #tpu.memory_space<vmem>>, vector<64x6xf32>
    %c1_i32_139 = arith.constant 1 : i32
    %170 = vector.broadcast %c1_i32_139 : i32 to vector<64x6xi32>
    %171 = arith.cmpi sge, %94, %170 : vector<64x6xi32>
    %cst_140 = arith.constant 0.000000e+00 : f32
    %172 = vector.broadcast %cst_140 : f32 to vector<64x6xf32>
    %173 = arith.select %171, %169, %172 : vector<64x6xi1>, vector<64x6xf32>
    %c2_141 = arith.constant 2 : index
    %c1_142 = arith.constant 1 : index
    %c0_143 = arith.constant 0 : index
    %c0_144 = arith.constant 0 : index
    %c0_145 = arith.constant 0 : index
    %174 = vector.load %arg11[%c2_141, %c1_142, %c0_143, %c0_144, %c0_145] : memref<4x2x2x6x6xf32, #tpu.memory_space<vmem>>, vector<1x1x1x6x6xf32>
    %175 = vector.shape_cast %174 : vector<1x1x1x6x6xf32> to vector<6x6xf32>
    %cst_146 = arith.constant dense<0.000000e+00> : vector<64x6xf32>
    %176 = tpu.matmul %173, %175, %cst_146 {dimension_numbers = #tpu.dot_dimension_numbers<[1], [0], [0], [1], [0, 0, 1, 1], [], []>} : vector<64x6xf32>, vector<6x6xf32>, vector<64x6xf32> -> vector<64x6xf32>
    %177 = arith.addf %151, %176 : vector<64x6xf32>
    %c24 = arith.constant 24 : index
    %c0_147 = arith.constant 0 : index
    %178 = vector.load %arg15[%c24, %c0_147] : memref<96x6xf32, #tpu.memory_space<vmem>>, vector<64x6xf32>
    %c2_148 = arith.constant 2 : index
    %c1_149 = arith.constant 1 : index
    %c1_150 = arith.constant 1 : index
    %c0_151 = arith.constant 0 : index
    %c0_152 = arith.constant 0 : index
    %179 = vector.load %arg11[%c2_148, %c1_149, %c1_150, %c0_151, %c0_152] : memref<4x2x2x6x6xf32, #tpu.memory_space<vmem>>, vector<1x1x1x6x6xf32>
    %180 = vector.shape_cast %179 : vector<1x1x1x6x6xf32> to vector<6x6xf32>
    %cst_153 = arith.constant dense<0.000000e+00> : vector<64x6xf32>
    %181 = tpu.matmul %178, %180, %cst_153 {dimension_numbers = #tpu.dot_dimension_numbers<[1], [0], [0], [1], [0, 0, 1, 1], [], []>} : vector<64x6xf32>, vector<6x6xf32>, vector<64x6xf32> -> vector<64x6xf32>
    %182 = arith.addf %177, %181 : vector<64x6xf32>
    %c3_154 = arith.constant 3 : index
    %c1_155 = arith.constant 1 : index
    %c0_156 = arith.constant 0 : index
    %c0_157 = arith.constant 0 : index
    %c0_158 = arith.constant 0 : index
    %183 = vector.load %arg11[%c3_154, %c1_155, %c0_156, %c0_157, %c0_158] : memref<4x2x2x6x6xf32, #tpu.memory_space<vmem>>, vector<1x1x1x6x6xf32>
    %184 = vector.shape_cast %183 : vector<1x1x1x6x6xf32> to vector<6x6xf32>
    %cst_159 = arith.constant dense<0.000000e+00> : vector<64x6xf32>
    %185 = tpu.matmul %178, %184, %cst_159 {dimension_numbers = #tpu.dot_dimension_numbers<[1], [0], [0], [1], [0, 0, 1, 1], [], []>} : vector<64x6xf32>, vector<6x6xf32>, vector<64x6xf32> -> vector<64x6xf32>
    %186 = arith.addf %168, %185 : vector<64x6xf32>
    %c25 = arith.constant 25 : index
    %c0_160 = arith.constant 0 : index
    %187 = vector.load %arg15[%c25, %c0_160] : memref<96x6xf32, #tpu.memory_space<vmem>>, vector<64x6xf32>
    %c6_i32_161 = arith.constant 6 : i32
    %188 = vector.broadcast %c6_i32_161 : i32 to vector<64x6xi32>
    %189 = arith.cmpi sle, %94, %188 : vector<64x6xi32>
    %cst_162 = arith.constant 0.000000e+00 : f32
    %190 = vector.broadcast %cst_162 : f32 to vector<64x6xf32>
    %191 = arith.select %189, %187, %190 : vector<64x6xi1>, vector<64x6xf32>
    %c3_163 = arith.constant 3 : index
    %c1_164 = arith.constant 1 : index
    %c1_165 = arith.constant 1 : index
    %c0_166 = arith.constant 0 : index
    %c0_167 = arith.constant 0 : index
    %192 = vector.load %arg11[%c3_163, %c1_164, %c1_165, %c0_166, %c0_167] : memref<4x2x2x6x6xf32, #tpu.memory_space<vmem>>, vector<1x1x1x6x6xf32>
    %193 = vector.shape_cast %192 : vector<1x1x1x6x6xf32> to vector<6x6xf32>
    %cst_168 = arith.constant dense<0.000000e+00> : vector<64x6xf32>
    %194 = tpu.matmul %191, %193, %cst_168 {dimension_numbers = #tpu.dot_dimension_numbers<[1], [0], [0], [1], [0, 0, 1, 1], [], []>} : vector<64x6xf32>, vector<6x6xf32>, vector<64x6xf32> -> vector<64x6xf32>
    %195 = arith.addf %186, %194 : vector<64x6xf32>
    %c0_169 = arith.constant 0 : index
    %c0_170 = arith.constant 0 : index
    %196 = vector.load %arg12[%c0_169, %c0_170] : memref<1x6xf32, #tpu.memory_space<vmem>>, vector<1x6xf32>
    %c0_171 = arith.constant 0 : index
    %c0_172 = arith.constant 0 : index
    %197 = vector.load %arg0[%c0_171, %c0_172] : memref<256x6xf32, #tpu.memory_space<vmem>>, vector<64x6xf32>
    %198 = vector.broadcast %196 : vector<1x6xf32> to vector<64x6xf32>
    %199 = arith.addf %143, %198 : vector<64x6xf32>
    %200 = vector.broadcast %32 : vector<1x6xf32> to vector<64x6xf32>
    %201 = arith.mulf %200, %199 : vector<64x6xf32>
    %202 = arith.mulf %197, %201 : vector<64x6xf32>
    %203 = arith.addf %197, %202 : vector<64x6xf32>
    %c0_173 = arith.constant 0 : index
    %c0_174 = arith.constant 0 : index
    %204 = vector.load %arg14[%c0_173, %c0_174] : memref<256x6xf32, #tpu.memory_space<vmem>>, vector<64x6xf32>
    tpu.vector_store %arg14[%c0_173, %c0_174], %203 {strides = array<i32>} : memref<256x6xf32, #tpu.memory_space<vmem>>, vector<64x6xf32>,
    %c64 = arith.constant 64 : index
    %c0_175 = arith.constant 0 : index
    %205 = vector.load %arg0[%c64, %c0_175] : memref<256x6xf32, #tpu.memory_space<vmem>>, vector<64x6xf32>
    %206 = vector.broadcast %196 : vector<1x6xf32> to vector<64x6xf32>
    %207 = arith.addf %164, %206 : vector<64x6xf32>
    %208 = vector.broadcast %32 : vector<1x6xf32> to vector<64x6xf32>
    %209 = arith.mulf %208, %207 : vector<64x6xf32>
    %210 = arith.mulf %205, %209 : vector<64x6xf32>
    %211 = arith.addf %205, %210 : vector<64x6xf32>
    %c64_176 = arith.constant 64 : index
    %c0_177 = arith.constant 0 : index
    %212 = vector.load %arg14[%c64_176, %c0_177] : memref<256x6xf32, #tpu.memory_space<vmem>>, vector<64x6xf32>
    tpu.vector_store %arg14[%c64_176, %c0_177], %211 {strides = array<i32>} : memref<256x6xf32, #tpu.memory_space<vmem>>, vector<64x6xf32>,
    %c128 = arith.constant 128 : index
    %c0_178 = arith.constant 0 : index
    %213 = vector.load %arg0[%c128, %c0_178] : memref<256x6xf32, #tpu.memory_space<vmem>>, vector<64x6xf32>
    %214 = vector.broadcast %196 : vector<1x6xf32> to vector<64x6xf32>
    %215 = arith.addf %182, %214 : vector<64x6xf32>
    %216 = vector.broadcast %32 : vector<1x6xf32> to vector<64x6xf32>
    %217 = arith.mulf %216, %215 : vector<64x6xf32>
    %218 = arith.mulf %213, %217 : vector<64x6xf32>
    %219 = arith.addf %213, %218 : vector<64x6xf32>
    %c128_179 = arith.constant 128 : index
    %c0_180 = arith.constant 0 : index
    %220 = vector.load %arg14[%c128_179, %c0_180] : memref<256x6xf32, #tpu.memory_space<vmem>>, vector<64x6xf32>
    tpu.vector_store %arg14[%c128_179, %c0_180], %219 {strides = array<i32>} : memref<256x6xf32, #tpu.memory_space<vmem>>, vector<64x6xf32>,
    %c192 = arith.constant 192 : index
    %c0_181 = arith.constant 0 : index
    %221 = vector.load %arg0[%c192, %c0_181] : memref<256x6xf32, #tpu.memory_space<vmem>>, vector<64x6xf32>
    %222 = vector.broadcast %196 : vector<1x6xf32> to vector<64x6xf32>
    %223 = arith.addf %195, %222 : vector<64x6xf32>
    %224 = vector.broadcast %32 : vector<1x6xf32> to vector<64x6xf32>
    %225 = arith.mulf %224, %223 : vector<64x6xf32>
    %226 = arith.mulf %221, %225 : vector<64x6xf32>
    %227 = arith.addf %221, %226 : vector<64x6xf32>
    %c192_182 = arith.constant 192 : index
    %c0_183 = arith.constant 0 : index
    %228 = vector.load %arg14[%c192_182, %c0_183] : memref<256x6xf32, #tpu.memory_space<vmem>>, vector<64x6xf32>
    tpu.vector_store %arg14[%c192_182, %c0_183], %227 {strides = array<i32>} : memref<256x6xf32, #tpu.memory_space<vmem>>, vector<64x6xf32>,
    return
  }
}

</mosaic_0001>

<llo_original>
// kernel: dam_forward.1
$region0: #{dam_forward.1}
  #allocation0 [shape = 'u32[]', space=smem, size = 0x4, offset = 0x4, fixed_abs, tag = 'smem constant byte address 0x4 - core index']
  #allocation1 [shape = 'u32[144,128]{1,0:T(1,128)}', space=vmem, size = 0x12000, scoped, tag = 'internal scratch']
  #allocation2 [shape = 'f32[96,6]{1,0:T(8,128)}', space=vmem, size = 0xc000, scoped, tag = 'scratch operand']
  #allocation3 [shape = 'f32[1,1]{1,0:T(1,128)S(6)}', space=smem, size = 0x200, scoped, tag = 'scoped memory for dam_forward.1']
  %s0 = inlined_call_operand.vmem [shape: f32[256,6], index: 0, kind: input, shape index: {}]
  %s1 = inlined_call_operand.vmem [shape: f32[6,3], index: 1, kind: input, shape index: {}]
  %s2 = inlined_call_operand.vmem [shape: f32[3,6], index: 2, kind: input, shape index: {}]
  %s3 = inlined_call_operand.vmem [shape: f32[6,3], index: 3, kind: input, shape index: {}]
  %s4 = inlined_call_operand.vmem [shape: f32[3,6], index: 4, kind: input, shape index: {}]
  %s5 = inlined_call_operand.vmem [shape: f32[6,2], index: 5, kind: input, shape index: {}]
  %s6 = inlined_call_operand.vmem [shape: f32[1,2], index: 6, kind: input, shape index: {}]
  %s7 = inlined_call_operand.vmem [shape: f32[6,2], index: 7, kind: input, shape index: {}]
  %s8 = inlined_call_operand.vmem [shape: f32[1,2], index: 8, kind: input, shape index: {}]
  %s9 = inlined_call_operand.vmem [shape: f32[6,6], index: 9, kind: input, shape index: {}]
  %s10 = inlined_call_operand.vmem [shape: f32[1,6], index: 10, kind: input, shape index: {}]
  %s11 = inlined_call_operand.vmem [shape: f32[4,2,2,6,6], index: 11, kind: input, shape index: {}]
  %s12 = inlined_call_operand.vmem [shape: f32[1,6], index: 12, kind: input, shape index: {}]
  %s13 = inlined_call_operand.<no memory space> [shape: f32[1,1], index: 13, kind: input, shape index: {}]
  %s14 = inlined_call_operand.vmem [shape: f32[256,6], index: 14, kind: output, shape index: {}]
  %s15 = sld [smem:[#allocation0]]
  $region66: #{dam_forward.1} parent=0
    _
  %s17 = ssub.s32 1, %s15
  %s18 = scalar_select 0, %s17, %s15
  %19 = sst [smem:[#allocation3]] %s13
  // Predicated region
  $region2: #{dam_forward.1} parent=0 // pred_check
    _
  $region3: #{dam_forward.1} parent=0 // pred_check_branch
    %21 = sbr.rel (0) target = $region5
  $region4: #{dam_forward.1} parent=0 // pred_region
    _
  $region5: #{dam_forward.1} parent=0 // pred_fallthru
    _
  // Predicated region
  $region6: #{dam_forward.1} parent=0 // pred_check
    _
  $region7: #{dam_forward.1} parent=0 // pred_check_branch
    %23 = sbr.rel (0) target = $region9
  $region8: #{dam_forward.1} parent=0 // pred_region
    _
  $region9: #{dam_forward.1} parent=0 // pred_fallthru
    _
  // Predicated region
  $region10: #{dam_forward.1} parent=0 // pred_check
    _
  $region11: #{dam_forward.1} parent=0 // pred_check_branch
    %25 = sbr.rel (0) target = $region13
  $region12: #{dam_forward.1} parent=0 // pred_region
    _
  $region13: #{dam_forward.1} parent=0 // pred_fallthru
    _
  // Predicated region
  $region14: #{dam_forward.1} parent=0 // pred_check
    _
  $region15: #{dam_forward.1} parent=0 // pred_check_branch
    %27 = sbr.rel (0) target = $region17
  $region16: #{dam_forward.1} parent=0 // pred_region
    _
  $region17: #{dam_forward.1} parent=0 // pred_fallthru
    _
  // Predicated region
  $region18: #{dam_forward.1} parent=0 // pred_check
    _
  $region19: #{dam_forward.1} parent=0 // pred_check_branch
    %29 = sbr.rel (0) target = $region21
  $region20: #{dam_forward.1} parent=0 // pred_region
    _
  $region21: #{dam_forward.1} parent=0 // pred_fallthru
    _
  // Predicated region
  $region22: #{dam_forward.1} parent=0 // pred_check
    _
  $region23: #{dam_forward.1} parent=0 // pred_check_branch
    %31 = sbr.rel (0) target = $region25
  $region24: #{dam_forward.1} parent=0 // pred_region
    _
  $region25: #{dam_forward.1} parent=0 // pred_fallthru
    _
  // Predicated region
  $region26: #{dam_forward.1} parent=0 // pred_check
    _
  $region27: #{dam_forward.1} parent=0 // pred_check_branch
    %33 = sbr.rel (0) target = $region29
  $region28: #{dam_forward.1} parent=0 // pred_region
    _
  $region29: #{dam_forward.1} parent=0 // pred_fallthru
    _
  // Predicated region
  $region30: #{dam_forward.1} parent=0 // pred_check
    _
  $region31: #{dam_forward.1} parent=0 // pred_check_branch
    %35 = sbr.rel (0) target = $region33
  $region32: #{dam_forward.1} parent=0 // pred_region
    _
  $region33: #{dam_forward.1} parent=0 // pred_fallthru
    _
  // Predicated region
  $region34: #{dam_forward.1} parent=0 // pred_check
    _
  $region35: #{dam_forward.1} parent=0 // pred_check_branch
    %37 = sbr.rel (0) target = $region37
  $region36: #{dam_forward.1} parent=0 // pred_region
    _
  $region37: #{dam_forward.1} parent=0 // pred_fallthru
    _
  // Predicated region
  $region38: #{dam_forward.1} parent=0 // pred_check
    _
  $region39: #{dam_forward.1} parent=0 // pred_check_branch
    %39 = sbr.rel (0) target = $region41
  $region40: #{dam_forward.1} parent=0 // pred_region
    _
  $region41: #{dam_forward.1} parent=0 // pred_fallthru
    _
  // Predicated region
  $region42: #{dam_forward.1} parent=0 // pred_check
    _
  $region43: #{dam_forward.1} parent=0 // pred_check_branch
    %41 = sbr.rel (0) target = $region45
  $region44: #{dam_forward.1} parent=0 // pred_region
    _
  $region45: #{dam_forward.1} parent=0 // pred_fallthru
    _
  // Predicated region
  $region46: #{dam_forward.1} parent=0 // pred_check
    _
  $region47: #{dam_forward.1} parent=0 // pred_check_branch
    %43 = sbr.rel (0) target = $region49
  $region48: #{dam_forward.1} parent=0 // pred_region
    _
  $region49: #{dam_forward.1} parent=0 // pred_fallthru
    _
  // Predicated region
  $region50: #{dam_forward.1} parent=0 // pred_check
    _
  $region51: #{dam_forward.1} parent=0 // pred_check_branch
    %45 = sbr.rel (0) target = $region53
  $region52: #{dam_forward.1} parent=0 // pred_region
    _
  $region53: #{dam_forward.1} parent=0 // pred_fallthru
    _
  // Predicated region
  $region54: #{dam_forward.1} parent=0 // pred_check
    _
  $region55: #{dam_forward.1} parent=0 // pred_check_branch
    %47 = sbr.rel (0) target = $region57
  $region56: #{dam_forward.1} parent=0 // pred_region
    _
  $region57: #{dam_forward.1} parent=0 // pred_fallthru
    _
  %v48 = vld [vmem:[%s0] sm:$0xff]
  %v49 = vld [vmem:[%s0 + $0x8] sm:$0xff]
  %v50 = vld [vmem:[%s0 + $0x10] sm:$0xff]
  %v51 = vld [vmem:[%s0 + $0x18] sm:$0xff]
  %v52 = vld [vmem:[%s0 + $0x20] sm:$0xff]
  %v53 = vld [vmem:[%s0 + $0x28] sm:$0xff]
  %v54 = vld [vmem:[%s0 + $0x30] sm:$0xff]
  %v55 = vld [vmem:[%s0 + $0x38] sm:$0xff]
  %v56 = vld [vmem:[%s0 + $0x40] sm:$0xff]
  %v57 = vld [vmem:[%s0 + $0x48] sm:$0xff]
  %v58 = vld [vmem:[%s0 + $0x50] sm:$0xff]
  %v59 = vld [vmem:[%s0 + $0x58] sm:$0xff]
  %v60 = vld [vmem:[%s0 + $0x60] sm:$0xff]
  %v61 = vld [vmem:[%s0 + $0x68] sm:$0xff]
  %v62 = vld [vmem:[%s0 + $0x70] sm:$0xff]
  %v63 = vld [vmem:[%s0 + $0x78] sm:$0xff]
  %v64 = vld [vmem:[%s0 + $0x80] sm:$0xff]
  %v65 = vld [vmem:[%s0 + $0x88] sm:$0xff]
  %v66 = vld [vmem:[%s0 + $0x90] sm:$0xff]
  %v67 = vld [vmem:[%s0 + $0x98] sm:$0xff]
  %v68 = vld [vmem:[%s0 + $0xa0] sm:$0xff]
  %v69 = vld [vmem:[%s0 + $0xa8] sm:$0xff]
  %v70 = vld [vmem:[%s0 + $0xb0] sm:$0xff]
  %v71 = vld [vmem:[%s0 + $0xb8] sm:$0xff]
  %v72 = vld [vmem:[%s0 + $0xc0] sm:$0xff]
  %v73 = vld [vmem:[%s0 + $0xc8] sm:$0xff]
  %v74 = vld [vmem:[%s0 + $0xd0] sm:$0xff]
  %v75 = vld [vmem:[%s0 + $0xd8] sm:$0xff]
  %v76 = vld [vmem:[%s0 + $0xe0] sm:$0xff]
  %v77 = vld [vmem:[%s0 + $0xe8] sm:$0xff]
  %v78 = vld [vmem:[%s0 + $0xf0] sm:$0xff]
  %v79 = vld [vmem:[%s0 + $0xf8] sm:$0xff]
  %vm80 = vcmask 48128
  %v81 = vsel %vm80, %v48, 0.0
  %v82 = vsel %vm80, %v49, 0.0
  %v83 = vadd.f32 %v81, %v82
  %v84 = vsel %vm80, %v50, 0.0
  %v85 = vadd.f32 %v83, %v84
  %v86 = vsel %vm80, %v51, 0.0
  %v87 = vadd.f32 %v85, %v86
  %v88 = vsel %vm80, %v52, 0.0
  %v89 = vadd.f32 %v87, %v88
  %v90 = vsel %vm80, %v53, 0.0
  %v91 = vadd.f32 %v89, %v90
  %v92 = vsel %vm80, %v54, 0.0
  %v93 = vadd.f32 %v91, %v92
  %v94 = vsel %vm80, %v55, 0.0
  %v95 = vadd.f32 %v93, %v94
  %v96 = vsel %vm80, %v56, 0.0
  %v97 = vadd.f32 %v95, %v96
  %v98 = vsel %vm80, %v57, 0.0
  %v99 = vadd.f32 %v97, %v98
  %v100 = vsel %vm80, %v58, 0.0
  %v101 = vadd.f32 %v99, %v100
  %v102 = vsel %vm80, %v59, 0.0
  %v103 = vadd.f32 %v101, %v102
  %v104 = vsel %vm80, %v60, 0.0
  %v105 = vadd.f32 %v103, %v104
  %v106 = vsel %vm80, %v61, 0.0
  %v107 = vadd.f32 %v105, %v106
  %v108 = vsel %vm80, %v62, 0.0
  %v109 = vadd.f32 %v107, %v108
  %v110 = vsel %vm80, %v63, 0.0
  %v111 = vadd.f32 %v109, %v110
  %v112 = vsel %vm80, %v64, 0.0
  %v113 = vadd.f32 %v111, %v112
  %v114 = vsel %vm80, %v65, 0.0
  %v115 = vadd.f32 %v113, %v114
  %v116 = vsel %vm80, %v66, 0.0
  %v117 = vadd.f32 %v115, %v116
  %v118 = vsel %vm80, %v67, 0.0
  %v119 = vadd.f32 %v117, %v118
  %v120 = vsel %vm80, %v68, 0.0
  %v121 = vadd.f32 %v119, %v120
  %v122 = vsel %vm80, %v69, 0.0
  %v123 = vadd.f32 %v121, %v122
  %v124 = vsel %vm80, %v70, 0.0
  %v125 = vadd.f32 %v123, %v124
  %v126 = vsel %vm80, %v71, 0.0
  %v127 = vadd.f32 %v125, %v126
  %v128 = vsel %vm80, %v72, 0.0
  %v129 = vadd.f32 %v127, %v128
  %v130 = vsel %vm80, %v73, 0.0
  %v131 = vadd.f32 %v129, %v130
  %v132 = vsel %vm80, %v74, 0.0
  %v133 = vadd.f32 %v131, %v132
  %v134 = vsel %vm80, %v75, 0.0
  %v135 = vadd.f32 %v133, %v134
  %v136 = vsel %vm80, %v76, 0.0
  %v137 = vadd.f32 %v135, %v136
  %v138 = vsel %vm80, %v77, 0.0
  %v139 = vadd.f32 %v137, %v138
  %v140 = vsel %vm80, %v78, 0.0
  %v141 = vadd.f32 %v139, %v140
  %v142 = vsel %vm80, %v79, 0.0
  %v143 = vadd.f32 %v141, %v142
  %v144 = vrot.slane %v143, 4
  %v145 = vadd.f32 %v143, %v144
  %v146 = vrot.slane %v145, 2
  %v147 = vadd.f32 %v145, %v146
  %v148 = vrot.slane %v147, 1
  %v149 = vadd.f32 %v147, %v148
  %v150 = vmul.f32 %v149, 0.00390625
  %v151 = vsel %vm80, %v48, -inf
  %v152 = vsel %vm80, %v49, -inf
  %v153 = vsel %vm80, %v50, -inf
  %v154 = vsel %vm80, %v51, -inf
  %v155 = vsel %vm80, %v52, -inf
  %v156 = vmax.f32 %v151, %v155
  %v157 = vsel %vm80, %v53, -inf
  %v158 = vmax.f32 %v152, %v157
  %v159 = vsel %vm80, %v54, -inf
  %v160 = vmax.f32 %v153, %v159
  %v161 = vsel %vm80, %v55, -inf
  %v162 = vmax.f32 %v154, %v161
  %v163 = vsel %vm80, %v56, -inf
  %v164 = vmax.f32 %v156, %v163
  %v165 = vsel %vm80, %v57, -inf
  %v166 = vmax.f32 %v158, %v165
  %v167 = vsel %vm80, %v58, -inf
  %v168 = vmax.f32 %v160, %v167
  %v169 = vsel %vm80, %v59, -inf
  %v170 = vmax.f32 %v162, %v169
  %v171 = vsel %vm80, %v60, -inf
  %v172 = vmax.f32 %v164, %v171
  %v173 = vsel %vm80, %v61, -inf
  %v174 = vmax.f32 %v166, %v173
  %v175 = vsel %vm80, %v62, -inf
  %v176 = vmax.f32 %v168, %v175
  %v177 = vsel %vm80, %v63, -inf
  %v178 = vmax.f32 %v170, %v177
  %v179 = vsel %vm80, %v64, -inf
  %v180 = vmax.f32 %v172, %v179
  %v181 = vsel %vm80, %v65, -inf
  %v182 = vmax.f32 %v174, %v181
  %v183 = vsel %vm80, %v66, -inf
  %v184 = vmax.f32 %v176, %v183
  %v185 = vsel %vm80, %v67, -inf
  %v186 = vmax.f32 %v178, %v185
  %v187 = vsel %vm80, %v68, -inf
  %v188 = vmax.f32 %v180, %v187
  %v189 = vsel %vm80, %v69, -inf
  %v190 = vmax.f32 %v182, %v189
  %v191 = vsel %vm80, %v70, -inf
  %v192 = vmax.f32 %v184, %v191
  %v193 = vsel %vm80, %v71, -inf
  %v194 = vmax.f32 %v186, %v193
  %v195 = vsel %vm80, %v72, -inf
  %v196 = vmax.f32 %v188, %v195
  %v197 = vsel %vm80, %v73, -inf
  %v198 = vmax.f32 %v190, %v197
  %v199 = vsel %vm80, %v74, -inf
  %v200 = vmax.f32 %v192, %v199
  %v201 = vsel %vm80, %v75, -inf
  %v202 = vmax.f32 %v194, %v201
  %v203 = vsel %vm80, %v76, -inf
  %v204 = vmax.f32 %v196, %v203
  %v205 = vsel %vm80, %v77, -inf
  %v206 = vmax.f32 %v198, %v205
  %v207 = vsel %vm80, %v78, -inf
  %v208 = vmax.f32 %v200, %v207
  %v209 = vsel %vm80, %v79, -inf
  %v210 = vmax.f32 %v202, %v209
  %v211 = vmax.f32 %v204, %v206
  %v212 = vmax.f32 %v208, %v210
  %v213 = vmax.f32 %v211, %v212
  %v214 = vrot.slane %v213, 4
  %v215 = vmax.f32 %v213, %v214
  %v216 = vrot.slane %v215, 2
  %v217 = vmax.f32 %v215, %v216
  %v218 = vrot.slane %v217, 1
  %v219 = vmax.f32 %v217, %v218
  %v220 = vld [vmem:[%s1] sm:$0x3f]
  %v222 = vsel %vm80, %v150, 0
  %vm224 = vcmask 1045504
  %v226 = vsel %vm224, %v220, 0
  %228 = vmatprep.subr.mxu0 0.0
  %229 = vmatpush1.msra.mxu0 %v226
  %230 = vmatprep.subr.mxu0 0.0
  %231 = vmatpush1.msra.mxu0 0.0
  %232 = vmatprep.subr.mxu0 0.0
  %233 = vmatpush1.msra.mxu0 0.0
  %234 = vmatprep.subr.mxu0 0.0
  %235 = vmatpush1.msra.mxu0 0.0
  %236 = vmatprep.subr.mxu0 0.0
  %237 = vmatpush1.msra.mxu0 0.0
  %238 = vmatprep.subr.mxu0 0.0
  %239 = vmatpush1.msra.mxu0 0.0
  %240 = vmatprep.subr.mxu0 0.0
  %241 = vmatpush1.msra.mxu0 0.0
  %242 = vmatprep.subr.mxu0 0.0
  %243 = vmatpush1.msra.mxu0 0.0
  %244 = vmatprep.subr.mxu0 0.0
  %245 = vmatpush1.msra.mxu0 0.0
  %246 = vmatprep.subr.mxu0 0.0
  %247 = vmatpush1.msra.mxu0 0.0
  %248 = vmatprep.subr.mxu0 0.0
  %249 = vmatpush1.msra.mxu0 0.0
  %250 = vmatprep.subr.mxu0 0.0
  %251 = vmatpush1.msra.mxu0 0.0
  %252 = vmatprep.subr.mxu0 0.0
  %253 = vmatpush1.msra.mxu0 0.0
  %254 = vmatprep.subr.mxu0 0.0
  %255 = vmatpush1.msra.mxu0 0.0
  %256 = vmatprep.subr.mxu0 0.0
  %257 = vmatpush1.msra.mxu0 0.0
  %258 = vmatprep.subr.mxu0 0.0
  %259 = vmatpush1.msra.mxu0 0.0
  %260 = vmatprep.subr.mxu0 0.0
  %261 = vmatpush1.msra.mxu0 0.0
  %262 = vmatprep.subr.mxu0 0.0
  %263 = vmatpush1.msra.mxu0 0.0
  %264 = vmatprep.subr.mxu0 0.0
  %265 = vmatpush1.msra.mxu0 0.0
  %266 = vmatprep.subr.mxu0 0.0
  %267 = vmatpush1.msra.mxu0 0.0
  %268 = vmatprep.subr.mxu0 0.0
  %269 = vmatpush1.msra.mxu0 0.0
  %270 = vmatprep.subr.mxu0 0.0
  %271 = vmatpush1.msra.mxu0 0.0
  %272 = vmatprep.subr.mxu0 0.0
  %273 = vmatpush1.msra.mxu0 0.0
  %274 = vmatprep.subr.mxu0 0.0
  %275 = vmatpush1.msra.mxu0 0.0
  %276 = vmatprep.subr.mxu0 0.0
  %277 = vmatpush1.msra.mxu0 0.0
  %278 = vmatprep.subr.mxu0 0.0
  %279 = vmatpush1.msra.mxu0 0.0
  %280 = vmatprep.subr.mxu0 0.0
  %281 = vmatpush1.msra.mxu0 0.0
  %282 = vmatprep.subr.mxu0 0.0
  %283 = vmatpush1.msra.mxu0 0.0
  %284 = vmatprep.subr.mxu0 0.0
  %285 = vmatpush1.msra.mxu0 0.0
  %286 = vmatprep.subr.mxu0 0.0
  %287 = vmatpush1.msra.mxu0 0.0
  %288 = vmatprep.subr.mxu0 0.0
  %289 = vmatpush1.msra.mxu0 0.0
  %290 = vmatprep.subr.mxu0 0.0
  %291 = vmatpush1.msra.mxu0 0.0
  %292 = vmatprep.mubr.f32.mxu0 0.0
  %293 = vmatmul.mubr.f32.gmra.mrb[0].mxu0 %v222
  %v294 = vpop.f32.mrb[0].mxu0
  %v295 = vadd.f32 0.0, %v294
  %v296 = vpop.f32.mrb[0].mxu0
  %297 = vdwg.mxu0
  %vm298 = vcmp.ge.f32.partialorder %v295, 0.0
  %v299 = vmul.f32 %v295, 0.1
  %v300 = vsel %vm298, %v295, %v299
  %v301 = vld [vmem:[%s2] sm:$0x7]
  %v302 = vld [vmem:[%s3] sm:$0x3f]
  %v304 = vsel %vm80, %v219, 0
  %v307 = vsel %vm224, %v302, 0
  %309 = vmatprep.subr.mxu0 0.0
  %310 = vmatpush1.msra.mxu0 %v307
  %311 = vmatprep.subr.mxu0 0.0
  %312 = vmatpush1.msra.mxu0 0.0
  %313 = vmatprep.subr.mxu0 0.0
  %314 = vmatpush1.msra.mxu0 0.0
  %315 = vmatprep.subr.mxu0 0.0
  %316 = vmatpush1.msra.mxu0 0.0
  %317 = vmatprep.subr.mxu0 0.0
  %318 = vmatpush1.msra.mxu0 0.0
  %319 = vmatprep.subr.mxu0 0.0
  %320 = vmatpush1.msra.mxu0 0.0
  %321 = vmatprep.subr.mxu0 0.0
  %322 = vmatpush1.msra.mxu0 0.0
  %323 = vmatprep.subr.mxu0 0.0
  %324 = vmatpush1.msra.mxu0 0.0
  %325 = vmatprep.subr.mxu0 0.0
  %326 = vmatpush1.msra.mxu0 0.0
  %327 = vmatprep.subr.mxu0 0.0
  %328 = vmatpush1.msra.mxu0 0.0
  %329 = vmatprep.subr.mxu0 0.0
  %330 = vmatpush1.msra.mxu0 0.0
  %331 = vmatprep.subr.mxu0 0.0
  %332 = vmatpush1.msra.mxu0 0.0
  %333 = vmatprep.subr.mxu0 0.0
  %334 = vmatpush1.msra.mxu0 0.0
  %335 = vmatprep.subr.mxu0 0.0
  %336 = vmatpush1.msra.mxu0 0.0
  %337 = vmatprep.subr.mxu0 0.0
  %338 = vmatpush1.msra.mxu0 0.0
  %339 = vmatprep.subr.mxu0 0.0
  %340 = vmatpush1.msra.mxu0 0.0
  %341 = vmatprep.subr.mxu0 0.0
  %342 = vmatpush1.msra.mxu0 0.0
  %343 = vmatprep.subr.mxu0 0.0
  %344 = vmatpush1.msra.mxu0 0.0
  %345 = vmatprep.subr.mxu0 0.0
  %346 = vmatpush1.msra.mxu0 0.0
  %347 = vmatprep.subr.mxu0 0.0
  %348 = vmatpush1.msra.mxu0 0.0
  %349 = vmatprep.subr.mxu0 0.0
  %350 = vmatpush1.msra.mxu0 0.0
  %351 = vmatprep.subr.mxu0 0.0
  %352 = vmatpush1.msra.mxu0 0.0
  %353 = vmatprep.subr.mxu0 0.0
  %354 = vmatpush1.msra.mxu0 0.0
  %355 = vmatprep.subr.mxu0 0.0
  %356 = vmatpush1.msra.mxu0 0.0
  %357 = vmatprep.subr.mxu0 0.0
  %358 = vmatpush1.msra.mxu0 0.0
  %359 = vmatprep.subr.mxu0 0.0
  %360 = vmatpush1.msra.mxu0 0.0
  %361 = vmatprep.subr.mxu0 0.0
  %362 = vmatpush1.msra.mxu0 0.0
  %363 = vmatprep.subr.mxu0 0.0
  %364 = vmatpush1.msra.mxu0 0.0
  %365 = vmatprep.subr.mxu0 0.0
  %366 = vmatpush1.msra.mxu0 0.0
  %367 = vmatprep.subr.mxu0 0.0
  %368 = vmatpush1.msra.mxu0 0.0
  %369 = vmatprep.subr.mxu0 0.0
  %370 = vmatpush1.msra.mxu0 0.0
  %371 = vmatprep.subr.mxu0 0.0
  %372 = vmatpush1.msra.mxu0 0.0
  %373 = vmatprep.mubr.f32.mxu0 0.0
  %374 = vmatmul.mubr.f32.gmra.mrb[0].mxu0 %v304
  %v375 = vpop.f32.mrb[0].mxu0
  %v376 = vadd.f32 0.0, %v375
  %v377 = vpop.f32.mrb[0].mxu0
  %378 = vdwg.mxu0
  %vm379 = vcmp.ge.f32.partialorder %v376, 0.0
  %v380 = vmul.f32 %v376, 0.1
  %v381 = vsel %vm379, %v376, %v380
  %v382 = vld [vmem:[%s4] sm:$0x7]
  %vm383 = vcmask 23552
  %v385 = vsel %vm383, %v381, 0
  %vm387 = vcmask 1042432
  %v389 = vsel %vm387, %v382, 0
  %391 = vmatprep.subr.mxu0 0.0
  %392 = vmatpush1.msra.mxu0 %v389
  %393 = vmatprep.subr.mxu0 0.0
  %394 = vmatpush1.msra.mxu0 0.0
  %395 = vmatprep.subr.mxu0 0.0
  %396 = vmatpush1.msra.mxu0 0.0
  %397 = vmatprep.subr.mxu0 0.0
  %398 = vmatpush1.msra.mxu0 0.0
  %399 = vmatprep.subr.mxu0 0.0
  %400 = vmatpush1.msra.mxu0 0.0
  %401 = vmatprep.subr.mxu0 0.0
  %402 = vmatpush1.msra.mxu0 0.0
  %403 = vmatprep.subr.mxu0 0.0
  %404 = vmatpush1.msra.mxu0 0.0
  %405 = vmatprep.subr.mxu0 0.0
  %406 = vmatpush1.msra.mxu0 0.0
  %407 = vmatprep.subr.mxu0 0.0
  %408 = vmatpush1.msra.mxu0 0.0
  %409 = vmatprep.subr.mxu0 0.0
  %410 = vmatpush1.msra.mxu0 0.0
  %411 = vmatprep.subr.mxu0 0.0
  %412 = vmatpush1.msra.mxu0 0.0
  %413 = vmatprep.subr.mxu0 0.0
  %414 = vmatpush1.msra.mxu0 0.0
  %415 = vmatprep.subr.mxu0 0.0
  %416 = vmatpush1.msra.mxu0 0.0
  %417 = vmatprep.subr.mxu0 0.0
  %418 = vmatpush1.msra.mxu0 0.0
  %419 = vmatprep.subr.mxu0 0.0
  %420 = vmatpush1.msra.mxu0 0.0
  %421 = vmatprep.subr.mxu0 0.0
  %422 = vmatpush1.msra.mxu0 0.0
  %423 = vmatprep.subr.mxu0 0.0
  %424 = vmatpush1.msra.mxu0 0.0
  %425 = vmatprep.subr.mxu0 0.0
  %426 = vmatpush1.msra.mxu0 0.0
  %427 = vmatprep.subr.mxu0 0.0
  %428 = vmatpush1.msra.mxu0 0.0
  %429 = vmatprep.subr.mxu0 0.0
  %430 = vmatpush1.msra.mxu0 0.0
  %431 = vmatprep.subr.mxu0 0.0
  %432 = vmatpush1.msra.mxu0 0.0
  %433 = vmatprep.subr.mxu0 0.0
  %434 = vmatpush1.msra.mxu0 0.0
  %435 = vmatprep.subr.mxu0 0.0
  %436 = vmatpush1.msra.mxu0 0.0
  %437 = vmatprep.subr.mxu0 0.0
  %438 = vmatpush1.msra.mxu0 0.0
  %439 = vmatprep.subr.mxu0 0.0
  %440 = vmatpush1.msra.mxu0 0.0
  %441 = vmatprep.subr.mxu0 0.0
  %442 = vmatpush1.msra.mxu0 0.0
  %443 = vmatprep.subr.mxu0 0.0
  %444 = vmatpush1.msra.mxu0 0.0
  %445 = vmatprep.subr.mxu0 0.0
  %446 = vmatpush1.msra.mxu0 0.0
  %447 = vmatprep.subr.mxu0 0.0
  %448 = vmatpush1.msra.mxu0 0.0
  %449 = vmatprep.subr.mxu0 0.0
  %450 = vmatpush1.msra.mxu0 0.0
  %451 = vmatprep.subr.mxu0 0.0
  %452 = vmatpush1.msra.mxu0 0.0
  %453 = vmatprep.subr.mxu0 0.0
  %454 = vmatpush1.msra.mxu0 0.0
  %455 = vmatprep.mubr.f32.mxu0 0.0
  %456 = vmatmul.mubr.f32.gmra.mrb[0].mxu0 %v385
  %v457 = vpop.f32.mrb[0].mxu0
  %v458 = vadd.f32 0.0, %v457
  %v459 = vpop.f32.mrb[0].mxu0
  %460 = vdwg.mxu0
  %v462 = vsel %vm383, %v300, 0
  %v465 = vsel %vm387, %v301, 0
  %467 = vmatprep.subr.mxu0 0.0
  %468 = vmatpush1.msra.mxu0 %v465
  %469 = vmatprep.subr.mxu0 0.0
  %470 = vmatpush1.msra.mxu0 0.0
  %471 = vmatprep.subr.mxu0 0.0
  %472 = vmatpush1.msra.mxu0 0.0
  %473 = vmatprep.subr.mxu0 0.0
  %474 = vmatpush1.msra.mxu0 0.0
  %475 = vmatprep.subr.mxu0 0.0
  %476 = vmatpush1.msra.mxu0 0.0
  %477 = vmatprep.subr.mxu0 0.0
  %478 = vmatpush1.msra.mxu0 0.0
  %479 = vmatprep.subr.mxu0 0.0
  %480 = vmatpush1.msra.mxu0 0.0
  %481 = vmatprep.subr.mxu0 0.0
  %482 = vmatpush1.msra.mxu0 0.0
  %483 = vmatprep.subr.mxu0 0.0
  %484 = vmatpush1.msra.mxu0 0.0
  %485 = vmatprep.subr.mxu0 0.0
  %486 = vmatpush1.msra.mxu0 0.0
  %487 = vmatprep.subr.mxu0 0.0
  %488 = vmatpush1.msra.mxu0 0.0
  %489 = vmatprep.subr.mxu0 0.0
  %490 = vmatpush1.msra.mxu0 0.0
  %491 = vmatprep.subr.mxu0 0.0
  %492 = vmatpush1.msra.mxu0 0.0
  %493 = vmatprep.subr.mxu0 0.0
  %494 = vmatpush1.msra.mxu0 0.0
  %495 = vmatprep.subr.mxu0 0.0
  %496 = vmatpush1.msra.mxu0 0.0
  %497 = vmatprep.subr.mxu0 0.0
  %498 = vmatpush1.msra.mxu0 0.0
  %499 = vmatprep.subr.mxu0 0.0
  %500 = vmatpush1.msra.mxu0 0.0
  %501 = vmatprep.subr.mxu0 0.0
  %502 = vmatpush1.msra.mxu0 0.0
  %503 = vmatprep.subr.mxu0 0.0
  %504 = vmatpush1.msra.mxu0 0.0
  %505 = vmatprep.subr.mxu0 0.0
  %506 = vmatpush1.msra.mxu0 0.0
  %507 = vmatprep.subr.mxu0 0.0
  %508 = vmatpush1.msra.mxu0 0.0
  %509 = vmatprep.subr.mxu0 0.0
  %510 = vmatpush1.msra.mxu0 0.0
  %511 = vmatprep.subr.mxu0 0.0
  %512 = vmatpush1.msra.mxu0 0.0
  %513 = vmatprep.subr.mxu0 0.0
  %514 = vmatpush1.msra.mxu0 0.0
  %515 = vmatprep.subr.mxu0 0.0
  %516 = vmatpush1.msra.mxu0 0.0
  %517 = vmatprep.subr.mxu0 0.0
  %518 = vmatpush1.msra.mxu0 0.0
  %519 = vmatprep.subr.mxu0 0.0
  %520 = vmatpush1.msra.mxu0 0.0
  %521 = vmatprep.subr.mxu0 0.0
  %522 = vmatpush1.msra.mxu0 0.0
  %523 = vmatprep.subr.mxu0 0.0
  %524 = vmatpush1.msra.mxu0 0.0
  %525 = vmatprep.subr.mxu0 0.0
  %526 = vmatpush1.msra.mxu0 0.0
  %527 = vmatprep.subr.mxu0 0.0
  %528 = vmatpush1.msra.mxu0 0.0
  %529 = vmatprep.subr.mxu0 0.0
  %530 = vmatpush1.msra.mxu0 0.0
  %531 = vmatprep.mubr.f32.mxu0 0.0
  %532 = vmatmul.mubr.f32.gmra.mrb[0].mxu0 %v462
  %v533 = vpop.f32.mrb[0].mxu0
  %v534 = vadd.f32 %v458, %v533
  %v535 = vpop.f32.mrb[0].mxu0
  %536 = vdwg.mxu0
  %v537 = vsub.f32 0.0, %v534
  %v538 = vmul.f32 %v537, 1.442695
  %v539 = vpow.pop %v538
  %v540 = vadd.f32 %v539, 1.0
  %v541 = vrcp.pop %v540
  %v542 = vmul.f32 1.0, %v541
  %v543 = vadd.f32 %v48, %v56
  %v544 = vadd.f32 %v49, %v57
  %v545 = vadd.f32 %v50, %v58
  %v546 = vadd.f32 %v51, %v59
  %v547 = vadd.f32 %v52, %v60
  %v548 = vadd.f32 %v53, %v61
  %v549 = vadd.f32 %v54, %v62
  %v550 = vadd.f32 %v55, %v63
  %v551 = vadd.f32 %v543, %v64
  %v552 = vadd.f32 %v544, %v65
  %v553 = vadd.f32 %v545, %v66
  %v554 = vadd.f32 %v546, %v67
  %v555 = vadd.f32 %v547, %v68
  %v556 = vadd.f32 %v548, %v69
  %v557 = vadd.f32 %v549, %v70
  %v558 = vadd.f32 %v550, %v71
  %v559 = vadd.f32 %v551, %v72
  %v560 = vadd.f32 %v552, %v73
  %v561 = vadd.f32 %v553, %v74
  %v562 = vadd.f32 %v554, %v75
  %v563 = vadd.f32 %v555, %v76
  %v564 = vadd.f32 %v556, %v77
  %v565 = vadd.f32 %v557, %v78
  %v566 = vadd.f32 %v558, %v79
  %v567 = vmul.f32 %v542, 0.25
  %v568 = vlaneseq
  %v569 = vshrl.u32 %v568, 7
  %v570 = vsub.s32 0, %v569
  %v571 = vrot.slane %v567, %v570
  %v572 = vmul.f32 %v571, %v559
  %v573 = vmul.f32 %v571, %v560
  %v574 = vmul.f32 %v571, %v561
  %v575 = vmul.f32 %v571, %v562
  %v576 = vmul.f32 %v571, %v563
  %v577 = vmul.f32 %v571, %v564
  %v578 = vmul.f32 %v571, %v565
  %v579 = vmul.f32 %v571, %v566
  %v580 = vld [vmem:[%s5] sm:$0x3f]
  %v581 = vld [vmem:[%s6] sm:$0x1]
  %v583 = vlaneseq
  %v584 = vshrl.u32 %v583, 7
  %v585 = vsub.s32 0, %v584
  %v586 = vrot.slane %v581, %v585
  %v589 = vsel %vm80, %v572, 0
  %v592 = vsel %vm80, %v573, 0
  %v595 = vsel %vm80, %v574, 0
  %v598 = vsel %vm80, %v575, 0
  %v601 = vsel %vm80, %v576, 0
  %v604 = vsel %vm80, %v577, 0
  %v607 = vsel %vm80, %v578, 0
  %v610 = vsel %vm80, %v579, 0
  %v613 = vsel %vm224, %v580, 0
  %615 = vmatprep.subr.mxu0 0.0
  %616 = vmatpush1.msra.mxu0 %v613
  %617 = vmatprep.subr.mxu0 0.0
  %618 = vmatpush1.msra.mxu0 0.0
  %619 = vmatprep.subr.mxu0 0.0
  %620 = vmatpush1.msra.mxu0 0.0
  %621 = vmatprep.subr.mxu0 0.0
  %622 = vmatpush1.msra.mxu0 0.0
  %623 = vmatprep.subr.mxu0 0.0
  %624 = vmatpush1.msra.mxu0 0.0
  %625 = vmatprep.subr.mxu0 0.0
  %626 = vmatpush1.msra.mxu0 0.0
  %627 = vmatprep.subr.mxu0 0.0
  %628 = vmatpush1.msra.mxu0 0.0
  %629 = vmatprep.subr.mxu0 0.0
  %630 = vmatpush1.msra.mxu0 0.0
  %631 = vmatprep.subr.mxu0 0.0
  %632 = vmatpush1.msra.mxu0 0.0
  %633 = vmatprep.subr.mxu0 0.0
  %634 = vmatpush1.msra.mxu0 0.0
  %635 = vmatprep.subr.mxu0 0.0
  %636 = vmatpush1.msra.mxu0 0.0
  %637 = vmatprep.subr.mxu0 0.0
  %638 = vmatpush1.msra.mxu0 0.0
  %639 = vmatprep.subr.mxu0 0.0
  %640 = vmatpush1.msra.mxu0 0.0
  %641 = vmatprep.subr.mxu0 0.0
  %642 = vmatpush1.msra.mxu0 0.0
  %643 = vmatprep.subr.mxu0 0.0
  %644 = vmatpush1.msra.mxu0 0.0
  %645 = vmatprep.subr.mxu0 0.0
  %646 = vmatpush1.msra.mxu0 0.0
  %647 = vmatprep.subr.mxu0 0.0
  %648 = vmatpush1.msra.mxu0 0.0
  %649 = vmatprep.subr.mxu0 0.0
  %650 = vmatpush1.msra.mxu0 0.0
  %651 = vmatprep.subr.mxu0 0.0
  %652 = vmatpush1.msra.mxu0 0.0
  %653 = vmatprep.subr.mxu0 0.0
  %654 = vmatpush1.msra.mxu0 0.0
  %655 = vmatprep.subr.mxu0 0.0
  %656 = vmatpush1.msra.mxu0 0.0
  %657 = vmatprep.subr.mxu0 0.0
  %658 = vmatpush1.msra.mxu0 0.0
  %659 = vmatprep.subr.mxu0 0.0
  %660 = vmatpush1.msra.mxu0 0.0
  %661 = vmatprep.subr.mxu0 0.0
  %662 = vmatpush1.msra.mxu0 0.0
  %663 = vmatprep.subr.mxu0 0.0
  %664 = vmatpush1.msra.mxu0 0.0
  %665 = vmatprep.subr.mxu0 0.0
  %666 = vmatpush1.msra.mxu0 0.0
  %667 = vmatprep.subr.mxu0 0.0
  %668 = vmatpush1.msra.mxu0 0.0
  %669 = vmatprep.subr.mxu0 0.0
  %670 = vmatpush1.msra.mxu0 0.0
  %671 = vmatprep.subr.mxu0 0.0
  %672 = vmatpush1.msra.mxu0 0.0
  %673 = vmatprep.subr.mxu0 0.0
  %674 = vmatpush1.msra.mxu0 0.0
  %675 = vmatprep.subr.mxu0 0.0
  %676 = vmatpush1.msra.mxu0 0.0
  %677 = vmatprep.subr.mxu0 0.0
  %678 = vmatpush1.msra.mxu0 0.0
  %679 = vmatprep.mubr.f32.mxu0 0.0
  %680 = vmatmul.mubr.f32.gmra.mrb[0].mxu0 %v589
  %v681 = vpop.f32.mrb[0].mxu0
  %v682 = vadd.f32 %v586, %v681
  %v683 = vpop.f32.mrb[0].mxu0
  %684 = vmatprep.mubr.f32.mxu0 0.0
  %685 = vmatmul.mubr.f32.gmra.mrb[0].mxu0 %v592
  %v686 = vpop.f32.mrb[0].mxu0
  %v687 = vadd.f32 %v586, %v686
  %v688 = vpop.f32.mrb[0].mxu0
  %689 = vmatprep.mubr.f32.mxu0 0.0
  %690 = vmatmul.mubr.f32.gmra.mrb[0].mxu0 %v595
  %v691 = vpop.f32.mrb[0].mxu0
  %v692 = vadd.f32 %v586, %v691
  %v693 = vpop.f32.mrb[0].mxu0
  %694 = vmatprep.mubr.f32.mxu0 0.0
  %695 = vmatmul.mubr.f32.gmra.mrb[0].mxu0 %v598
  %v696 = vpop.f32.mrb[0].mxu0
  %v697 = vadd.f32 %v586, %v696
  %v698 = vpop.f32.mrb[0].mxu0
  %699 = vmatprep.mubr.f32.mxu0 0.0
  %700 = vmatmul.mubr.f32.gmra.mrb[0].mxu0 %v601
  %v701 = vpop.f32.mrb[0].mxu0
  %v702 = vadd.f32 %v586, %v701
  %v703 = vpop.f32.mrb[0].mxu0
  %704 = vmatprep.mubr.f32.mxu0 0.0
  %705 = vmatmul.mubr.f32.gmra.mrb[0].mxu0 %v604
  %v706 = vpop.f32.mrb[0].mxu0
  %v707 = vadd.f32 %v586, %v706
  %v708 = vpop.f32.mrb[0].mxu0
  %709 = vmatprep.mubr.f32.mxu0 0.0
  %710 = vmatmul.mubr.f32.gmra.mrb[0].mxu0 %v607
  %v711 = vpop.f32.mrb[0].mxu0
  %v712 = vadd.f32 %v586, %v711
  %v713 = vpop.f32.mrb[0].mxu0
  %714 = vmatprep.mubr.f32.mxu0 0.0
  %715 = vmatmul.mubr.f32.gmra.mrb[0].mxu0 %v610
  %v716 = vpop.f32.mrb[0].mxu0
  %v717 = vadd.f32 %v586, %v716
  %v718 = vpop.f32.mrb[0].mxu0
  %719 = vdwg.mxu0
  %v720 = vld [vmem:[%s7] sm:$0x3f]
  %v721 = vld [vmem:[%s8] sm:$0x1]
  %v723 = vlaneseq
  %v724 = vshrl.u32 %v723, 7
  %v725 = vsub.s32 0, %v724
  %v726 = vrot.slane %v721, %v725
  %v729 = vsel %vm224, %v720, 0
  %731 = vmatprep.subr.mxu0 0.0
  %732 = vmatpush1.msra.mxu0 %v729
  %733 = vmatprep.subr.mxu0 0.0
  %734 = vmatpush1.msra.mxu0 0.0
  %735 = vmatprep.subr.mxu0 0.0
  %736 = vmatpush1.msra.mxu0 0.0
  %737 = vmatprep.subr.mxu0 0.0
  %738 = vmatpush1.msra.mxu0 0.0
  %739 = vmatprep.subr.mxu0 0.0
  %740 = vmatpush1.msra.mxu0 0.0
  %741 = vmatprep.subr.mxu0 0.0
  %742 = vmatpush1.msra.mxu0 0.0
  %743 = vmatprep.subr.mxu0 0.0
  %744 = vmatpush1.msra.mxu0 0.0
  %745 = vmatprep.subr.mxu0 0.0
  %746 = vmatpush1.msra.mxu0 0.0
  %747 = vmatprep.subr.mxu0 0.0
  %748 = vmatpush1.msra.mxu0 0.0
  %749 = vmatprep.subr.mxu0 0.0
  %750 = vmatpush1.msra.mxu0 0.0
  %751 = vmatprep.subr.mxu0 0.0
  %752 = vmatpush1.msra.mxu0 0.0
  %753 = vmatprep.subr.mxu0 0.0
  %754 = vmatpush1.msra.mxu0 0.0
  %755 = vmatprep.subr.mxu0 0.0
  %756 = vmatpush1.msra.mxu0 0.0
  %757 = vmatprep.subr.mxu0 0.0
  %758 = vmatpush1.msra.mxu0 0.0
  %759 = vmatprep.subr.mxu0 0.0
  %760 = vmatpush1.msra.mxu0 0.0
  %761 = vmatprep.subr.mxu0 0.0
  %762 = vmatpush1.msra.mxu0 0.0
  %763 = vmatprep.subr.mxu0 0.0
  %764 = vmatpush1.msra.mxu0 0.0
  %765 = vmatprep.subr.mxu0 0.0
  %766 = vmatpush1.msra.mxu0 0.0
  %767 = vmatprep.subr.mxu0 0.0
  %768 = vmatpush1.msra.mxu0 0.0
  %769 = vmatprep.subr.mxu0 0.0
  %770 = vmatpush1.msra.mxu0 0.0
  %771 = vmatprep.subr.mxu0 0.0
  %772 = vmatpush1.msra.mxu0 0.0
  %773 = vmatprep.subr.mxu0 0.0
  %774 = vmatpush1.msra.mxu0 0.0
  %775 = vmatprep.subr.mxu0 0.0
  %776 = vmatpush1.msra.mxu0 0.0
  %777 = vmatprep.subr.mxu0 0.0
  %778 = vmatpush1.msra.mxu0 0.0
  %779 = vmatprep.subr.mxu0 0.0
  %780 = vmatpush1.msra.mxu0 0.0
  %781 = vmatprep.subr.mxu0 0.0
  %782 = vmatpush1.msra.mxu0 0.0
  %783 = vmatprep.subr.mxu0 0.0
  %784 = vmatpush1.msra.mxu0 0.0
  %785 = vmatprep.subr.mxu0 0.0
  %786 = vmatpush1.msra.mxu0 0.0
  %787 = vmatprep.subr.mxu0 0.0
  %788 = vmatpush1.msra.mxu0 0.0
  %789 = vmatprep.subr.mxu0 0.0
  %790 = vmatpush1.msra.mxu0 0.0
  %791 = vmatprep.subr.mxu0 0.0
  %792 = vmatpush1.msra.mxu0 0.0
  %793 = vmatprep.subr.mxu0 0.0
  %794 = vmatpush1.msra.mxu0 0.0
  %795 = vmatprep.mubr.f32.mxu0 0.0
  %796 = vmatmul.mubr.f32.gmra.mrb[0].mxu0 %v589
  %v797 = vpop.f32.mrb[0].mxu0
  %v798 = vadd.f32 %v726, %v797
  %v799 = vpop.f32.mrb[0].mxu0
  %800 = vmatprep.mubr.f32.mxu0 0.0
  %801 = vmatmul.mubr.f32.gmra.mrb[0].mxu0 %v592
  %v802 = vpop.f32.mrb[0].mxu0
  %v803 = vadd.f32 %v726, %v802
  %v804 = vpop.f32.mrb[0].mxu0
  %805 = vmatprep.mubr.f32.mxu0 0.0
  %806 = vmatmul.mubr.f32.gmra.mrb[0].mxu0 %v595
  %v807 = vpop.f32.mrb[0].mxu0
  %v808 = vadd.f32 %v726, %v807
  %v809 = vpop.f32.mrb[0].mxu0
  %810 = vmatprep.mubr.f32.mxu0 0.0
  %811 = vmatmul.mubr.f32.gmra.mrb[0].mxu0 %v598
  %v812 = vpop.f32.mrb[0].mxu0
  %v813 = vadd.f32 %v726, %v812
  %v814 = vpop.f32.mrb[0].mxu0
  %815 = vmatprep.mubr.f32.mxu0 0.0
  %816 = vmatmul.mubr.f32.gmra.mrb[0].mxu0 %v601
  %v817 = vpop.f32.mrb[0].mxu0
  %v818 = vadd.f32 %v726, %v817
  %v819 = vpop.f32.mrb[0].mxu0
  %820 = vmatprep.mubr.f32.mxu0 0.0
  %821 = vmatmul.mubr.f32.gmra.mrb[0].mxu0 %v604
  %v822 = vpop.f32.mrb[0].mxu0
  %v823 = vadd.f32 %v726, %v822
  %v824 = vpop.f32.mrb[0].mxu0
  %825 = vmatprep.mubr.f32.mxu0 0.0
  %826 = vmatmul.mubr.f32.gmra.mrb[0].mxu0 %v607
  %v827 = vpop.f32.mrb[0].mxu0
  %v828 = vadd.f32 %v726, %v827
  %v829 = vpop.f32.mrb[0].mxu0
  %830 = vmatprep.mubr.f32.mxu0 0.0
  %831 = vmatmul.mubr.f32.gmra.mrb[0].mxu0 %v610
  %v832 = vpop.f32.mrb[0].mxu0
  %v833 = vadd.f32 %v726, %v832
  %v834 = vpop.f32.mrb[0].mxu0
  %835 = vdwg.mxu0
  %v836 = vld [vmem:[%s9] sm:$0x3f]
  %v837 = vld [vmem:[%s10] sm:$0x1]
  %v839 = vlaneseq
  %v840 = vshrl.u32 %v839, 7
  %v841 = vsub.s32 0, %v840
  %v842 = vrot.slane %v837, %v841
  %v845 = vsel %vm224, %v836, 0
  %847 = vmatprep.subr.mxu0 0.0
  %848 = vmatpush1.msra.mxu0 %v845
  %849 = vmatprep.subr.mxu0 0.0
  %850 = vmatpush1.msra.mxu0 0.0
  %851 = vmatprep.subr.mxu0 0.0
  %852 = vmatpush1.msra.mxu0 0.0
  %853 = vmatprep.subr.mxu0 0.0
  %854 = vmatpush1.msra.mxu0 0.0
  %855 = vmatprep.subr.mxu0 0.0
  %856 = vmatpush1.msra.mxu0 0.0
  %857 = vmatprep.subr.mxu0 0.0
  %858 = vmatpush1.msra.mxu0 0.0
  %859 = vmatprep.subr.mxu0 0.0
  %860 = vmatpush1.msra.mxu0 0.0
  %861 = vmatprep.subr.mxu0 0.0
  %862 = vmatpush1.msra.mxu0 0.0
  %863 = vmatprep.subr.mxu0 0.0
  %864 = vmatpush1.msra.mxu0 0.0
  %865 = vmatprep.subr.mxu0 0.0
  %866 = vmatpush1.msra.mxu0 0.0
  %867 = vmatprep.subr.mxu0 0.0
  %868 = vmatpush1.msra.mxu0 0.0
  %869 = vmatprep.subr.mxu0 0.0
  %870 = vmatpush1.msra.mxu0 0.0
  %871 = vmatprep.subr.mxu0 0.0
  %872 = vmatpush1.msra.mxu0 0.0
  %873 = vmatprep.subr.mxu0 0.0
  %874 = vmatpush1.msra.mxu0 0.0
  %875 = vmatprep.subr.mxu0 0.0
  %876 = vmatpush1.msra.mxu0 0.0
  %877 = vmatprep.subr.mxu0 0.0
  %878 = vmatpush1.msra.mxu0 0.0
  %879 = vmatprep.subr.mxu0 0.0
  %880 = vmatpush1.msra.mxu0 0.0
  %881 = vmatprep.subr.mxu0 0.0
  %882 = vmatpush1.msra.mxu0 0.0
  %883 = vmatprep.subr.mxu0 0.0
  %884 = vmatpush1.msra.mxu0 0.0
  %885 = vmatprep.subr.mxu0 0.0
  %886 = vmatpush1.msra.mxu0 0.0
  %887 = vmatprep.subr.mxu0 0.0
  %888 = vmatpush1.msra.mxu0 0.0
  %889 = vmatprep.subr.mxu0 0.0
  %890 = vmatpush1.msra.mxu0 0.0
  %891 = vmatprep.subr.mxu0 0.0
  %892 = vmatpush1.msra.mxu0 0.0
  %893 = vmatprep.subr.mxu0 0.0
  %894 = vmatpush1.msra.mxu0 0.0
  %895 = vmatprep.subr.mxu0 0.0
  %896 = vmatpush1.msra.mxu0 0.0
  %897 = vmatprep.subr.mxu0 0.0
  %898 = vmatpush1.msra.mxu0 0.0
  %899 = vmatprep.subr.mxu0 0.0
  %900 = vmatpush1.msra.mxu0 0.0
  %901 = vmatprep.subr.mxu0 0.0
  %902 = vmatpush1.msra.mxu0 0.0
  %903 = vmatprep.subr.mxu0 0.0
  %904 = vmatpush1.msra.mxu0 0.0
  %905 = vmatprep.subr.mxu0 0.0
  %906 = vmatpush1.msra.mxu0 0.0
  %907 = vmatprep.subr.mxu0 0.0
  %908 = vmatpush1.msra.mxu0 0.0
  %909 = vmatprep.subr.mxu0 0.0
  %910 = vmatpush1.msra.mxu0 0.0
  %911 = vmatprep.mubr.f32.mxu0 0.0
  %912 = vmatmul.mubr.f32.gmra.mrb[0].mxu0 %v589
  %v913 = vpop.f32.mrb[0].mxu0
  %v914 = vadd.f32 %v842, %v913
  %v915 = vpop.f32.mrb[0].mxu0
  %916 = vmatprep.mubr.f32.mxu0 0.0
  %917 = vmatmul.mubr.f32.gmra.mrb[0].mxu0 %v592
  %v918 = vpop.f32.mrb[0].mxu0
  %v919 = vadd.f32 %v842, %v918
  %v920 = vpop.f32.mrb[0].mxu0
  %921 = vmatprep.mubr.f32.mxu0 0.0
  %922 = vmatmul.mubr.f32.gmra.mrb[0].mxu0 %v595
  %v923 = vpop.f32.mrb[0].mxu0
  %v924 = vadd.f32 %v842, %v923
  %v925 = vpop.f32.mrb[0].mxu0
  %926 = vmatprep.mubr.f32.mxu0 0.0
  %927 = vmatmul.mubr.f32.gmra.mrb[0].mxu0 %v598
  %v928 = vpop.f32.mrb[0].mxu0
  %v929 = vadd.f32 %v842, %v928
  %v930 = vpop.f32.mrb[0].mxu0
  %931 = vmatprep.mubr.f32.mxu0 0.0
  %932 = vmatmul.mubr.f32.gmra.mrb[0].mxu0 %v601
  %v933 = vpop.f32.mrb[0].mxu0
  %v934 = vadd.f32 %v842, %v933
  %v935 = vpop.f32.mrb[0].mxu0
  %936 = vmatprep.mubr.f32.mxu0 0.0
  %937 = vmatmul.mubr.f32.gmra.mrb[0].mxu0 %v604
  %v938 = vpop.f32.mrb[0].mxu0
  %v939 = vadd.f32 %v842, %v938
  %v940 = vpop.f32.mrb[0].mxu0
  %941 = vmatprep.mubr.f32.mxu0 0.0
  %942 = vmatmul.mubr.f32.gmra.mrb[0].mxu0 %v607
  %v943 = vpop.f32.mrb[0].mxu0
  %v944 = vadd.f32 %v842, %v943
  %v945 = vpop.f32.mrb[0].mxu0
  %946 = vmatprep.mubr.f32.mxu0 0.0
  %947 = vmatmul.mubr.f32.gmra.mrb[0].mxu0 %v610
  %v948 = vpop.f32.mrb[0].mxu0
  %v949 = vadd.f32 %v842, %v948
  %v950 = vpop.f32.mrb[0].mxu0
  %951 = vdwg.mxu0
  %vm952 = vcmask 15360
  %v954 = vsel %vm952, %v798, 0
  %v957 = vsel %vm952, %v803, 0
  %v960 = vsel %vm952, %v808, 0
  %v963 = vsel %vm952, %v813, 0
  %v966 = vsel %vm952, %v818, 0
  %v969 = vsel %vm952, %v823, 0
  %v972 = vsel %vm952, %v828, 0
  %v975 = vsel %vm952, %v833, 0
  %v978 = vsel %vm952, %v682, 0
  %v981 = vsel %vm952, %v687, 0
  %v984 = vsel %vm952, %v692, 0
  %v987 = vsel %vm952, %v697, 0
  %v990 = vsel %vm952, %v702, 0
  %v993 = vsel %vm952, %v707, 0
  %v996 = vsel %vm952, %v712, 0
  %v999 = vsel %vm952, %v717, 0
  %1001 = vmatprep.subr.mxu0 0.0
  %1002 = vmatpush1.xpose.msra.mxu0 %v978
  %1003 = vmatprep.subr.mxu0 0.0
  %1004 = vmatpush1.xpose.msra.mxu0 %v981
  %1005 = vmatprep.subr.mxu0 0.0
  %1006 = vmatpush1.xpose.msra.mxu0 %v984
  %1007 = vmatprep.subr.mxu0 0.0
  %1008 = vmatpush1.xpose.msra.mxu0 %v987
  %1009 = vmatprep.subr.mxu0 0.0
  %1010 = vmatpush1.xpose.msra.mxu0 %v990
  %1011 = vmatprep.subr.mxu0 0.0
  %1012 = vmatpush1.xpose.msra.mxu0 %v993
  %1013 = vmatprep.subr.mxu0 0.0
  %1014 = vmatpush1.xpose.msra.mxu0 %v996
  %1015 = vmatprep.subr.mxu0 0.0
  %1016 = vmatpush1.xpose.msra.mxu0 %v999
  %1017 = vmatprep.subr.mxu0 0.0
  %1018 = vmatpush1.xpose.msra.mxu0 0.0
  %1019 = vmatprep.subr.mxu0 0.0
  %1020 = vmatpush1.xpose.msra.mxu0 0.0
  %1021 = vmatprep.subr.mxu0 0.0
  %1022 = vmatpush1.xpose.msra.mxu0 0.0
  %1023 = vmatprep.subr.mxu0 0.0
  %1024 = vmatpush1.xpose.msra.mxu0 0.0
  %1025 = vmatprep.subr.mxu0 0.0
  %1026 = vmatpush1.xpose.msra.mxu0 0.0
  %1027 = vmatprep.subr.mxu0 0.0
  %1028 = vmatpush1.xpose.msra.mxu0 0.0
  %1029 = vmatprep.subr.mxu0 0.0
  %1030 = vmatpush1.xpose.msra.mxu0 0.0
  %1031 = vmatprep.subr.mxu0 0.0
  %1032 = vmatpush1.xpose.msra.mxu0 0.0
  %1033 = vmatprep.subr.mxu0 0.0
  %1034 = vmatpush1.xpose.msra.mxu0 0.0
  %1035 = vmatprep.subr.mxu0 0.0
  %1036 = vmatpush1.xpose.msra.mxu0 0.0
  %1037 = vmatprep.subr.mxu0 0.0
  %1038 = vmatpush1.xpose.msra.mxu0 0.0
  %1039 = vmatprep.subr.mxu0 0.0
  %1040 = vmatpush1.xpose.msra.mxu0 0.0
  %1041 = vmatprep.subr.mxu0 0.0
  %1042 = vmatpush1.xpose.msra.mxu0 0.0
  %1043 = vmatprep.subr.mxu0 0.0
  %1044 = vmatpush1.xpose.msra.mxu0 0.0
  %1045 = vmatprep.subr.mxu0 0.0
  %1046 = vmatpush1.xpose.msra.mxu0 0.0
  %1047 = vmatprep.subr.mxu0 0.0
  %1048 = vmatpush1.xpose.msra.mxu0 0.0
  %1049 = vmatprep.subr.mxu0 0.0
  %1050 = vmatpush1.xpose.msra.mxu0 0.0
  %1051 = vmatprep.subr.mxu0 0.0
  %1052 = vmatpush1.xpose.msra.mxu0 0.0
  %1053 = vmatprep.subr.mxu0 0.0
  %1054 = vmatpush1.xpose.msra.mxu0 0.0
  %1055 = vmatprep.subr.mxu0 0.0
  %1056 = vmatpush1.xpose.msra.mxu0 0.0
  %1057 = vmatprep.subr.mxu0 0.0
  %1058 = vmatpush1.xpose.msra.mxu0 0.0
  %1059 = vmatprep.subr.mxu0 0.0
  %1060 = vmatpush1.xpose.msra.mxu0 0.0
  %1061 = vmatprep.subr.mxu0 0.0
  %1062 = vmatpush1.xpose.msra.mxu0 0.0
  %1063 = vmatprep.subr.mxu0 0.0
  %1064 = vmatpush1.xpose.msra.mxu0 0.0
  %1065 = vmatprep.mubr.f32.mxu0 0.0
  %1066 = vmatmul.mubr.f32.gmra.mrb[0].mxu0 %v954
  %v1067 = vpop.f32.mrb[0].mxu0
  %v1068 = vadd.f32 0.0, %v1067
  %v1069 = vpop.f32.mrb[0].mxu0
  %1070 = vmatprep.mubr.f32.mxu0 0.0
  %1071 = vmatmul.mubr.f32.gmra.mrb[0].mxu0 %v957
  %v1072 = vpop.f32.mrb[0].mxu0
  %v1073 = vadd.f32 0.0, %v1072
  %v1074 = vpop.f32.mrb[0].mxu0
  %1075 = vmatprep.mubr.f32.mxu0 0.0
  %1076 = vmatmul.mubr.f32.gmra.mrb[0].mxu0 %v960
  %v1077 = vpop.f32.mrb[0].mxu0
  %v1078 = vadd.f32 0.0, %v1077
  %v1079 = vpop.f32.mrb[0].mxu0
  %1080 = vmatprep.mubr.f32.mxu0 0.0
  %1081 = vmatmul.mubr.f32.gmra.mrb[0].mxu0 %v963
  %v1082 = vpop.f32.mrb[0].mxu0
  %v1083 = vadd.f32 0.0, %v1082
  %v1084 = vpop.f32.mrb[0].mxu0
  %1085 = vmatprep.mubr.f32.mxu0 0.0
  %1086 = vmatmul.mubr.f32.gmra.mrb[0].mxu0 %v966
  %v1087 = vpop.f32.mrb[0].mxu0
  %v1088 = vadd.f32 0.0, %v1087
  %v1089 = vpop.f32.mrb[0].mxu0
  %1090 = vmatprep.mubr.f32.mxu0 0.0
  %1091 = vmatmul.mubr.f32.gmra.mrb[0].mxu0 %v969
  %v1092 = vpop.f32.mrb[0].mxu0
  %v1093 = vadd.f32 0.0, %v1092
  %v1094 = vpop.f32.mrb[0].mxu0
  %1095 = vmatprep.mubr.f32.mxu0 0.0
  %1096 = vmatmul.mubr.f32.gmra.mrb[0].mxu0 %v972
  %v1097 = vpop.f32.mrb[0].mxu0
  %v1098 = vadd.f32 0.0, %v1097
  %v1099 = vpop.f32.mrb[0].mxu0
  %1100 = vmatprep.mubr.f32.mxu0 0.0
  %1101 = vmatmul.mubr.f32.gmra.mrb[0].mxu0 %v975
  %v1102 = vpop.f32.mrb[0].mxu0
  %v1103 = vadd.f32 0.0, %v1102
  %v1104 = vpop.f32.mrb[0].mxu0
  %1105 = vdwg.mxu0
  %vm1106 = vcmask 523264
  %v1107 = vsel %vm1106, %v1068, -inf
  %1108 = vmax.xlane.f32.xlu0 %v1107
  %v1109 = vpop.xlane.xlu0 %1108
  %v1110 = vsel %vm1106, %v1073, -inf
  %1111 = vmax.xlane.f32.xlu0 %v1110
  %v1112 = vpop.xlane.xlu0 %1111
  %v1113 = vsel %vm1106, %v1078, -inf
  %1114 = vmax.xlane.f32.xlu0 %v1113
  %v1115 = vpop.xlane.xlu0 %1114
  %v1116 = vsel %vm1106, %v1083, -inf
  %1117 = vmax.xlane.f32.xlu0 %v1116
  %v1118 = vpop.xlane.xlu0 %1117
  %v1119 = vsel %vm1106, %v1088, -inf
  %1120 = vmax.xlane.f32.xlu0 %v1119
  %v1121 = vpop.xlane.xlu0 %1120
  %v1122 = vsel %vm1106, %v1093, -inf
  %1123 = vmax.xlane.f32.xlu0 %v1122
  %v1124 = vpop.xlane.xlu0 %1123
  %v1125 = vsel %vm1106, %v1098, -inf
  %1126 = vmax.xlane.f32.xlu0 %v1125
  %v1127 = vpop.xlane.xlu0 %1126
  %v1128 = vsel %vm1106, %v1103, -inf
  %1129 = vmax.xlane.f32.xlu0 %v1128
  %v1130 = vpop.xlane.xlu0 %1129
  %v1131 = vsub.f32 %v1068, %v1109
  %v1132 = vsub.f32 %v1073, %v1112
  %v1133 = vsub.f32 %v1078, %v1115
  %v1134 = vsub.f32 %v1083, %v1118
  %v1135 = vsub.f32 %v1088, %v1121
  %v1136 = vsub.f32 %v1093, %v1124
  %v1137 = vsub.f32 %v1098, %v1127
  %v1138 = vsub.f32 %v1103, %v1130
  %v1139 = vmul.f32 %v1131, 1.442695
  %v1140 = vpow.pop %v1139
  %v1141 = vmul.f32 %v1132, 1.442695
  %v1142 = vpow.pop %v1141
  %v1143 = vmul.f32 %v1133, 1.442695
  %v1144 = vpow.pop %v1143
  %v1145 = vmul.f32 %v1134, 1.442695
  %v1146 = vpow.pop %v1145
  %v1147 = vmul.f32 %v1135, 1.442695
  %v1148 = vpow.pop %v1147
  %v1149 = vmul.f32 %v1136, 1.442695
  %v1150 = vpow.pop %v1149
  %v1151 = vmul.f32 %v1137, 1.442695
  %v1152 = vpow.pop %v1151
  %v1153 = vmul.f32 %v1138, 1.442695
  %v1154 = vpow.pop %v1153
  %v1155 = vsel %vm1106, %v1140, 0.0
  %1156 = vadd.xlane.f32.xlu0 %v1155
  %v1157 = vpop.xlane.xlu0 %1156
  %v1158 = vsel %vm1106, %v1142, 0.0
  %1159 = vadd.xlane.f32.xlu0 %v1158
  %v1160 = vpop.xlane.xlu0 %1159
  %v1161 = vsel %vm1106, %v1144, 0.0
  %1162 = vadd.xlane.f32.xlu0 %v1161
  %v1163 = vpop.xlane.xlu0 %1162
  %v1164 = vsel %vm1106, %v1146, 0.0
  %1165 = vadd.xlane.f32.xlu0 %v1164
  %v1166 = vpop.xlane.xlu0 %1165
  %v1167 = vsel %vm1106, %v1148, 0.0
  %1168 = vadd.xlane.f32.xlu0 %v1167
  %v1169 = vpop.xlane.xlu0 %1168
  %v1170 = vsel %vm1106, %v1150, 0.0
  %1171 = vadd.xlane.f32.xlu0 %v1170
  %v1172 = vpop.xlane.xlu0 %1171
  %v1173 = vsel %vm1106, %v1152, 0.0
  %1174 = vadd.xlane.f32.xlu0 %v1173
  %v1175 = vpop.xlane.xlu0 %1174
  %v1176 = vsel %vm1106, %v1154, 0.0
  %1177 = vadd.xlane.f32.xlu0 %v1176
  %v1178 = vpop.xlane.xlu0 %1177
  %v1179 = vrcp.pop %v1157
  %v1180 = vrcp.pop %v1160
  %v1181 = vrcp.pop %v1163
  %v1182 = vrcp.pop %v1166
  %v1183 = vrcp.pop %v1169
  %v1184 = vrcp.pop %v1172
  %v1185 = vrcp.pop %v1175
  %v1186 = vrcp.pop %v1178
  %v1187 = vmul.f32 %v1140, %v1179
  %v1188 = vmul.f32 %v1142, %v1180
  %v1189 = vmul.f32 %v1144, %v1181
  %v1190 = vmul.f32 %v1146, %v1182
  %v1191 = vmul.f32 %v1148, %v1183
  %v1192 = vmul.f32 %v1150, %v1184
  %v1193 = vmul.f32 %v1152, %v1185
  %v1194 = vmul.f32 %v1154, %v1186
  %v1196 = vsel %vm1106, %v1187, 0
  %v1199 = vsel %vm1106, %v1188, 0
  %v1202 = vsel %vm1106, %v1189, 0
  %v1205 = vsel %vm1106, %v1190, 0
  %v1208 = vsel %vm1106, %v1191, 0
  %v1211 = vsel %vm1106, %v1192, 0
  %v1214 = vsel %vm1106, %v1193, 0
  %v1217 = vsel %vm1106, %v1194, 0
  %1219 = vmatprep.subr.mxu0 0.0
  %1220 = vmatpush1.msra.mxu0 %v914
  %1221 = vmatprep.subr.mxu0 0.0
  %1222 = vmatpush1.msra.mxu0 %v919
  %1223 = vmatprep.subr.mxu0 0.0
  %1224 = vmatpush1.msra.mxu0 %v924
  %1225 = vmatprep.subr.mxu0 0.0
  %1226 = vmatpush1.msra.mxu0 %v929
  %1227 = vmatprep.subr.mxu0 0.0
  %1228 = vmatpush1.msra.mxu0 %v934
  %1229 = vmatprep.subr.mxu0 0.0
  %1230 = vmatpush1.msra.mxu0 %v939
  %1231 = vmatprep.subr.mxu0 0.0
  %1232 = vmatpush1.msra.mxu0 %v944
  %1233 = vmatprep.subr.mxu0 0.0
  %1234 = vmatpush1.msra.mxu0 %v949
  %1235 = vmatprep.subr.mxu0 0.0
  %1236 = vmatpush1.msra.mxu0 0.0
  %1237 = vmatprep.subr.mxu0 0.0
  %1238 = vmatpush1.msra.mxu0 0.0
  %1239 = vmatprep.subr.mxu0 0.0
  %1240 = vmatpush1.msra.mxu0 0.0
  %1241 = vmatprep.subr.mxu0 0.0
  %1242 = vmatpush1.msra.mxu0 0.0
  %1243 = vmatprep.subr.mxu0 0.0
  %1244 = vmatpush1.msra.mxu0 0.0
  %1245 = vmatprep.subr.mxu0 0.0
  %1246 = vmatpush1.msra.mxu0 0.0
  %1247 = vmatprep.subr.mxu0 0.0
  %1248 = vmatpush1.msra.mxu0 0.0
  %1249 = vmatprep.subr.mxu0 0.0
  %1250 = vmatpush1.msra.mxu0 0.0
  %1251 = vmatprep.subr.mxu0 0.0
  %1252 = vmatpush1.msra.mxu0 0.0
  %1253 = vmatprep.subr.mxu0 0.0
  %1254 = vmatpush1.msra.mxu0 0.0
  %1255 = vmatprep.subr.mxu0 0.0
  %1256 = vmatpush1.msra.mxu0 0.0
  %1257 = vmatprep.subr.mxu0 0.0
  %1258 = vmatpush1.msra.mxu0 0.0
  %1259 = vmatprep.subr.mxu0 0.0
  %1260 = vmatpush1.msra.mxu0 0.0
  %1261 = vmatprep.subr.mxu0 0.0
  %1262 = vmatpush1.msra.mxu0 0.0
  %1263 = vmatprep.subr.mxu0 0.0
  %1264 = vmatpush1.msra.mxu0 0.0
  %1265 = vmatprep.subr.mxu0 0.0
  %1266 = vmatpush1.msra.mxu0 0.0
  %1267 = vmatprep.subr.mxu0 0.0
  %1268 = vmatpush1.msra.mxu0 0.0
  %1269 = vmatprep.subr.mxu0 0.0
  %1270 = vmatpush1.msra.mxu0 0.0
  %1271 = vmatprep.subr.mxu0 0.0
  %1272 = vmatpush1.msra.mxu0 0.0
  %1273 = vmatprep.subr.mxu0 0.0
  %1274 = vmatpush1.msra.mxu0 0.0
  %1275 = vmatprep.subr.mxu0 0.0
  %1276 = vmatpush1.msra.mxu0 0.0
  %1277 = vmatprep.subr.mxu0 0.0
  %1278 = vmatpush1.msra.mxu0 0.0
  %1279 = vmatprep.subr.mxu0 0.0
  %1280 = vmatpush1.msra.mxu0 0.0
  %1281 = vmatprep.subr.mxu0 0.0
  %1282 = vmatpush1.msra.mxu0 0.0
  %1283 = vmatprep.mubr.f32.mxu0 0.0
  %1284 = vmatmul.mubr.f32.gmra.mrb[0].mxu0 %v1196
  %v1285 = vpop.f32.mrb[0].mxu0
  %v1286 = vadd.f32 0.0, %v1285
  %v1287 = vpop.f32.mrb[0].mxu0
  %1288 = vmatprep.mubr.f32.mxu0 0.0
  %1289 = vmatmul.mubr.f32.gmra.mrb[0].mxu0 %v1199
  %v1290 = vpop.f32.mrb[0].mxu0
  %v1291 = vadd.f32 0.0, %v1290
  %v1292 = vpop.f32.mrb[0].mxu0
  %1293 = vmatprep.mubr.f32.mxu0 0.0
  %1294 = vmatmul.mubr.f32.gmra.mrb[0].mxu0 %v1202
  %v1295 = vpop.f32.mrb[0].mxu0
  %v1296 = vadd.f32 0.0, %v1295
  %v1297 = vpop.f32.mrb[0].mxu0
  %1298 = vmatprep.mubr.f32.mxu0 0.0
  %1299 = vmatmul.mubr.f32.gmra.mrb[0].mxu0 %v1205
  %v1300 = vpop.f32.mrb[0].mxu0
  %v1301 = vadd.f32 0.0, %v1300
  %v1302 = vpop.f32.mrb[0].mxu0
  %1303 = vmatprep.mubr.f32.mxu0 0.0
  %1304 = vmatmul.mubr.f32.gmra.mrb[0].mxu0 %v1208
  %v1305 = vpop.f32.mrb[0].mxu0
  %v1306 = vadd.f32 0.0, %v1305
  %v1307 = vpop.f32.mrb[0].mxu0
  %1308 = vmatprep.mubr.f32.mxu0 0.0
  %1309 = vmatmul.mubr.f32.gmra.mrb[0].mxu0 %v1211
  %v1310 = vpop.f32.mrb[0].mxu0
  %v1311 = vadd.f32 0.0, %v1310
  %v1312 = vpop.f32.mrb[0].mxu0
  %1313 = vmatprep.mubr.f32.mxu0 0.0
  %1314 = vmatmul.mubr.f32.gmra.mrb[0].mxu0 %v1214
  %v1315 = vpop.f32.mrb[0].mxu0
  %v1316 = vadd.f32 0.0, %v1315
  %v1317 = vpop.f32.mrb[0].mxu0
  %1318 = vmatprep.mubr.f32.mxu0 0.0
  %1319 = vmatmul.mubr.f32.gmra.mrb[0].mxu0 %v1217
  %v1320 = vpop.f32.mrb[0].mxu0
  %v1321 = vadd.f32 0.0, %v1320
  %v1322 = vpop.f32.mrb[0].mxu0
  %1323 = vdwg.mxu0
  %s1324 = sld [smem:[#allocation3]]
  %v1325 = vstv %s1324
  %v1326 = vmul.f32 %v1325, %v1286
  %v1327 = vmul.f32 %v1325, %v1291
  %v1328 = vmul.f32 %v1325, %v1296
  %v1329 = vmul.f32 %v1325, %v1301
  %v1330 = vmul.f32 %v1325, %v1306
  %v1331 = vmul.f32 %v1325, %v1311
  %v1332 = vmul.f32 %v1325, %v1316
  %v1333 = vmul.f32 %v1325, %v1321
  %v1334 = vadd.f32 %v1326, %v572
  %v1335 = vadd.f32 %v1327, %v573
  %v1336 = vadd.f32 %v1328, %v574
  %v1337 = vadd.f32 %v1329, %v575
  %v1338 = vadd.f32 %v1330, %v576
  %v1339 = vadd.f32 %v1331, %v577
  %v1340 = vadd.f32 %v1332, %v578
  %v1341 = vadd.f32 %v1333, %v579
  %1342 = vst.msk [vmem:[#allocation2] sm:$0xff] %vm80, 0.0
  %1343 = vst.msk [vmem:[#allocation2 + $0x8] sm:$0xff] %vm80, 0.0
  %1344 = vst.msk [vmem:[#allocation2 + $0x10] sm:$0xff] %vm80, 0.0
  %1345 = vst.msk [vmem:[#allocation2 + $0x18] sm:$0xff] %vm80, 0.0
  %1346 = vst.msk [vmem:[#allocation2 + $0x20] sm:$0xff] %vm80, 0.0
  %1347 = vst.msk [vmem:[#allocation2 + $0x28] sm:$0xff] %vm80, 0.0
  %1348 = vst.msk [vmem:[#allocation2 + $0x30] sm:$0xff] %vm80, 0.0
  %1349 = vst.msk [vmem:[#allocation2 + $0x38] sm:$0xff] %vm80, 0.0
  %1350 = vst.msk [vmem:[#allocation2 + $0x40] sm:$0xff] %vm80, 0.0
  %1351 = vst.msk [vmem:[#allocation2 + $0x48] sm:$0xff] %vm80, 0.0
  %1352 = vst.msk [vmem:[#allocation2 + $0x50] sm:$0xff] %vm80, 0.0
  %1353 = vst.msk [vmem:[#allocation2 + $0x58] sm:$0xff] %vm80, 0.0
  %1354 = vst.msk [vmem:[#allocation2 + $0x10] sm:$0xff] %vm80, %v1334
  %1355 = vst.msk [vmem:[#allocation2 + $0x18] sm:$0xff] %vm80, %v1335
  %1356 = vst.msk [vmem:[#allocation2 + $0x20] sm:$0xff] %vm80, %v1336
  %1357 = vst.msk [vmem:[#allocation2 + $0x28] sm:$0xff] %vm80, %v1337
  %1358 = vst.msk [vmem:[#allocation2 + $0x30] sm:$0xff] %vm80, %v1338
  %1359 = vst.msk [vmem:[#allocation2 + $0x38] sm:$0xff] %vm80, %v1339
  %1360 = vst.msk [vmem:[#allocation2 + $0x40] sm:$0xff] %vm80, %v1340
  %1361 = vst.msk [vmem:[#allocation2 + $0x48] sm:$0xff] %vm80, %v1341
  %v1362 = vlaneseq
  %v1363 = vshrl.u32 %v1362, 7
  %v1364 = vadd.s32 %v1363, 8
  %v1365 = vadd.s32 %v1363, 16
  %v1366 = vadd.s32 %v1363, 24
  %v1367 = vadd.s32 %v1363, 32
  %v1368 = vadd.s32 %v1363, 40
  %v1369 = vadd.s32 %v1363, 48
  %v1370 = vadd.s32 %v1363, 56
  %vm1371 = vcmp.lt.s32.totalorder %v1363, 0
  %v1372 = vsub.s32 0, %v1363
  %v1373 = vsel %vm1371, %v1372, %v1363
  %v1374 = vshrl.u32 %v1373, 3
  %v1375 = vand.u32 %v1373, 7
  %v1376 = vsub.s32 0, %v1375
  %v1377 = vsel %vm1371, %v1376, %v1375
  %vm1378 = vcmp.lt.s32.totalorder %v1364, 0
  %v1379 = vsub.s32 0, %v1364
  %v1380 = vsel %vm1378, %v1379, %v1364
  %v1381 = vshrl.u32 %v1380, 3
  %v1382 = vand.u32 %v1380, 7
  %v1383 = vsub.s32 0, %v1382
  %v1384 = vsel %vm1378, %v1383, %v1382
  %vm1385 = vcmp.lt.s32.totalorder %v1365, 0
  %v1386 = vsub.s32 0, %v1365
  %v1387 = vsel %vm1385, %v1386, %v1365
  %v1388 = vshrl.u32 %v1387, 3
  %v1389 = vand.u32 %v1387, 7
  %v1390 = vsub.s32 0, %v1389
  %v1391 = vsel %vm1385, %v1390, %v1389
  %vm1392 = vcmp.lt.s32.totalorder %v1366, 0
  %v1393 = vsub.s32 0, %v1366
  %v1394 = vsel %vm1392, %v1393, %v1366
  %v1395 = vshrl.u32 %v1394, 3
  %v1396 = vand.u32 %v1394, 7
  %v1397 = vsub.s32 0, %v1396
  %v1398 = vsel %vm1392, %v1397, %v1396
  %vm1399 = vcmp.lt.s32.totalorder %v1367, 0
  %v1400 = vsub.s32 0, %v1367
  %v1401 = vsel %vm1399, %v1400, %v1367
  %v1402 = vshrl.u32 %v1401, 3
  %v1403 = vand.u32 %v1401, 7
  %v1404 = vsub.s32 0, %v1403
  %v1405 = vsel %vm1399, %v1404, %v1403
  %vm1406 = vcmp.lt.s32.totalorder %v1368, 0
  %v1407 = vsub.s32 0, %v1368
  %v1408 = vsel %vm1406, %v1407, %v1368
  %v1409 = vshrl.u32 %v1408, 3
  %v1410 = vand.u32 %v1408, 7
  %v1411 = vsub.s32 0, %v1410
  %v1412 = vsel %vm1406, %v1411, %v1410
  %vm1413 = vcmp.lt.s32.totalorder %v1369, 0
  %v1414 = vsub.s32 0, %v1369
  %v1415 = vsel %vm1413, %v1414, %v1369
  %v1416 = vshrl.u32 %v1415, 3
  %v1417 = vand.u32 %v1415, 7
  %v1418 = vsub.s32 0, %v1417
  %v1419 = vsel %vm1413, %v1418, %v1417
  %vm1420 = vcmp.lt.s32.totalorder %v1370, 0
  %v1421 = vsub.s32 0, %v1370
  %v1422 = vsel %vm1420, %v1421, %v1370
  %v1423 = vshrl.u32 %v1422, 3
  %v1424 = vand.u32 %v1422, 7
  %v1425 = vsub.s32 0, %v1424
  %v1426 = vsel %vm1420, %v1425, %v1424
  %vm1427 = vcmp.ne.s32.totalorder %v1377, 0
  %vm1428 = vcmp.ne.s32.totalorder %v1384, 0
  %vm1429 = vcmp.ne.s32.totalorder %v1391, 0
  %vm1430 = vcmp.ne.s32.totalorder %v1398, 0
  %vm1431 = vcmp.ne.s32.totalorder %v1405, 0
  %vm1432 = vcmp.ne.s32.totalorder %v1412, 0
  %vm1433 = vcmp.ne.s32.totalorder %v1419, 0
  %vm1434 = vcmp.ne.s32.totalorder %v1426, 0
  %vm1435 = vcmp.lt.s32.totalorder %v1377, 0
  %vm1436 = vcmp.lt.s32.totalorder %v1384, 0
  %vm1437 = vcmp.lt.s32.totalorder %v1391, 0
  %vm1438 = vcmp.lt.s32.totalorder %v1398, 0
  %vm1439 = vcmp.lt.s32.totalorder %v1405, 0
  %vm1440 = vcmp.lt.s32.totalorder %v1412, 0
  %vm1441 = vcmp.lt.s32.totalorder %v1419, 0
  %vm1442 = vcmp.lt.s32.totalorder %v1426, 0
  %vm1443 = vmand %vm1435, %vm1427
  %vm1444 = vmand %vm1436, %vm1428
  %vm1445 = vmand %vm1437, %vm1429
  %vm1446 = vmand %vm1438, %vm1430
  %vm1447 = vmand %vm1439, %vm1431
  %vm1448 = vmand %vm1440, %vm1432
  %vm1449 = vmand %vm1441, %vm1433
  %vm1450 = vmand %vm1442, %vm1434
  %v1451 = vadd.s32 %v1377, 8
  %v1452 = vadd.s32 %v1384, 8
  %v1453 = vadd.s32 %v1391, 8
  %v1454 = vadd.s32 %v1398, 8
  %v1455 = vadd.s32 %v1405, 8
  %v1456 = vadd.s32 %v1412, 8
  %v1457 = vadd.s32 %v1419, 8
  %v1458 = vadd.s32 %v1426, 8
  %v1459 = vsel %vm1443, %v1451, %v1377
  %v1460 = vsel %vm1444, %v1452, %v1384
  %v1461 = vsel %vm1445, %v1453, %v1391
  %v1462 = vsel %vm1446, %v1454, %v1398
  %v1463 = vsel %vm1447, %v1455, %v1405
  %v1464 = vsel %vm1448, %v1456, %v1412
  %v1465 = vsel %vm1449, %v1457, %v1419
  %v1466 = vsel %vm1450, %v1458, %v1426
  %v1467 = vld [vmem:[#allocation2 + $0x7] sm:$0xff]
  %v1468 = vld [vmem:[#allocation2 + $0xf] sm:$0xff]
  %v1469 = vld [vmem:[#allocation2 + $0x17] sm:$0xff]
  %v1470 = vld [vmem:[#allocation2 + $0x1f] sm:$0xff]
  %v1471 = vld [vmem:[#allocation2 + $0x27] sm:$0xff]
  %v1472 = vld [vmem:[#allocation2 + $0x2f] sm:$0xff]
  %v1473 = vld [vmem:[#allocation2 + $0x37] sm:$0xff]
  %v1474 = vld [vmem:[#allocation2 + $0x3f] sm:$0xff]
  %vm1475 = vcmp.ge.s32.totalorder %v1459, 1
  %vm1476 = vcmp.ge.s32.totalorder %v1460, 1
  %vm1477 = vcmp.ge.s32.totalorder %v1461, 1
  %vm1478 = vcmp.ge.s32.totalorder %v1462, 1
  %vm1479 = vcmp.ge.s32.totalorder %v1463, 1
  %vm1480 = vcmp.ge.s32.totalorder %v1464, 1
  %vm1481 = vcmp.ge.s32.totalorder %v1465, 1
  %vm1482 = vcmp.ge.s32.totalorder %v1466, 1
  %v1483 = vsel %vm1475, %v1467, 0.0
  %v1484 = vsel %vm1476, %v1468, 0.0
  %v1485 = vsel %vm1477, %v1469, 0.0
  %v1486 = vsel %vm1478, %v1470, 0.0
  %v1487 = vsel %vm1479, %v1471, 0.0
  %v1488 = vsel %vm1480, %v1472, 0.0
  %v1489 = vsel %vm1481, %v1473, 0.0
  %v1490 = vsel %vm1482, %v1474, 0.0
  %v1491 = vld [vmem:[%s11] sm:$0x3f]
  %v1492 = vld [vmem:[#allocation2 + $0x8] sm:$0xff]
  %v1493 = vld [vmem:[#allocation2 + $0x10] sm:$0xff]
  %v1494 = vld [vmem:[#allocation2 + $0x18] sm:$0xff]
  %v1495 = vld [vmem:[#allocation2 + $0x20] sm:$0xff]
  %v1496 = vld [vmem:[#allocation2 + $0x28] sm:$0xff]
  %v1497 = vld [vmem:[#allocation2 + $0x30] sm:$0xff]
  %v1498 = vld [vmem:[#allocation2 + $0x38] sm:$0xff]
  %v1499 = vld [vmem:[#allocation2 + $0x40] sm:$0xff]
  %s1500 = scalar_lea.vmem %s11, 8
  %v1501 = vld [vmem:[%s1500] sm:$0x3f]
  %v1503 = vsel %vm80, %v1492, 0
  %v1506 = vsel %vm80, %v1493, 0
  %v1509 = vsel %vm80, %v1494, 0
  %v1512 = vsel %vm80, %v1495, 0
  %v1515 = vsel %vm80, %v1496, 0
  %v1518 = vsel %vm80, %v1497, 0
  %v1521 = vsel %vm80, %v1498, 0
  %v1524 = vsel %vm80, %v1499, 0
  %v1527 = vsel %vm224, %v1501, 0
  %1529 = vmatprep.subr.mxu0 0.0
  %1530 = vmatpush1.msra.mxu0 %v1527
  %1531 = vmatprep.subr.mxu0 0.0
  %1532 = vmatpush1.msra.mxu0 0.0
  %1533 = vmatprep.subr.mxu0 0.0
  %1534 = vmatpush1.msra.mxu0 0.0
  %1535 = vmatprep.subr.mxu0 0.0
  %1536 = vmatpush1.msra.mxu0 0.0
  %1537 = vmatprep.subr.mxu0 0.0
  %1538 = vmatpush1.msra.mxu0 0.0
  %1539 = vmatprep.subr.mxu0 0.0
  %1540 = vmatpush1.msra.mxu0 0.0
  %1541 = vmatprep.subr.mxu0 0.0
  %1542 = vmatpush1.msra.mxu0 0.0
  %1543 = vmatprep.subr.mxu0 0.0
  %1544 = vmatpush1.msra.mxu0 0.0
  %1545 = vmatprep.subr.mxu0 0.0
  %1546 = vmatpush1.msra.mxu0 0.0
  %1547 = vmatprep.subr.mxu0 0.0
  %1548 = vmatpush1.msra.mxu0 0.0
  %1549 = vmatprep.subr.mxu0 0.0
  %1550 = vmatpush1.msra.mxu0 0.0
  %1551 = vmatprep.subr.mxu0 0.0
  %1552 = vmatpush1.msra.mxu0 0.0
  %1553 = vmatprep.subr.mxu0 0.0
  %1554 = vmatpush1.msra.mxu0 0.0
  %1555 = vmatprep.subr.mxu0 0.0
  %1556 = vmatpush1.msra.mxu0 0.0
  %1557 = vmatprep.subr.mxu0 0.0
  %1558 = vmatpush1.msra.mxu0 0.0
  %1559 = vmatprep.subr.mxu0 0.0
  %1560 = vmatpush1.msra.mxu0 0.0
  %1561 = vmatprep.subr.mxu0 0.0
  %1562 = vmatpush1.msra.mxu0 0.0
  %1563 = vmatprep.subr.mxu0 0.0
  %1564 = vmatpush1.msra.mxu0 0.0
  %1565 = vmatprep.subr.mxu0 0.0
  %1566 = vmatpush1.msra.mxu0 0.0
  %1567 = vmatprep.subr.mxu0 0.0
  %1568 = vmatpush1.msra.mxu0 0.0
  %1569 = vmatprep.subr.mxu0 0.0
  %1570 = vmatpush1.msra.mxu0 0.0
  %1571 = vmatprep.subr.mxu0 0.0
  %1572 = vmatpush1.msra.mxu0 0.0
  %1573 = vmatprep.subr.mxu0 0.0
  %1574 = vmatpush1.msra.mxu0 0.0
  %1575 = vmatprep.subr.mxu0 0.0
  %1576 = vmatpush1.msra.mxu0 0.0
  %1577 = vmatprep.subr.mxu0 0.0
  %1578 = vmatpush1.msra.mxu0 0.0
  %1579 = vmatprep.subr.mxu0 0.0
  %1580 = vmatpush1.msra.mxu0 0.0
  %1581 = vmatprep.subr.mxu0 0.0
  %1582 = vmatpush1.msra.mxu0 0.0
  %1583 = vmatprep.subr.mxu0 0.0
  %1584 = vmatpush1.msra.mxu0 0.0
  %1585 = vmatprep.subr.mxu0 0.0
  %1586 = vmatpush1.msra.mxu0 0.0
  %1587 = vmatprep.subr.mxu0 0.0
  %1588 = vmatpush1.msra.mxu0 0.0
  %1589 = vmatprep.subr.mxu0 0.0
  %1590 = vmatpush1.msra.mxu0 0.0
  %1591 = vmatprep.subr.mxu0 0.0
  %1592 = vmatpush1.msra.mxu0 0.0
  %1593 = vmatprep.mubr.f32.mxu0 0.0
  %1594 = vmatmul.mubr.f32.gmra.mrb[0].mxu0 %v1503
  %v1595 = vpop.f32.mrb[0].mxu0
  %v1596 = vadd.f32 0.0, %v1595
  %v1597 = vpop.f32.mrb[0].mxu0
  %1598 = vmatprep.mubr.f32.mxu0 0.0
  %1599 = vmatmul.mubr.f32.gmra.mrb[0].mxu0 %v1506
  %v1600 = vpop.f32.mrb[0].mxu0
  %v1601 = vadd.f32 0.0, %v1600
  %v1602 = vpop.f32.mrb[0].mxu0
  %1603 = vmatprep.mubr.f32.mxu0 0.0
  %1604 = vmatmul.mubr.f32.gmra.mrb[0].mxu0 %v1509
  %v1605 = vpop.f32.mrb[0].mxu0
  %v1606 = vadd.f32 0.0, %v1605
  %v1607 = vpop.f32.mrb[0].mxu0
  %1608 = vmatprep.mubr.f32.mxu0 0.0
  %1609 = vmatmul.mubr.f32.gmra.mrb[0].mxu0 %v1512
  %v1610 = vpop.f32.mrb[0].mxu0
  %v1611 = vadd.f32 0.0, %v1610
  %v1612 = vpop.f32.mrb[0].mxu0
  %1613 = vmatprep.mubr.f32.mxu0 0.0
  %1614 = vmatmul.mubr.f32.gmra.mrb[0].mxu0 %v1515
  %v1615 = vpop.f32.mrb[0].mxu0
  %v1616 = vadd.f32 0.0, %v1615
  %v1617 = vpop.f32.mrb[0].mxu0
  %1618 = vmatprep.mubr.f32.mxu0 0.0
  %1619 = vmatmul.mubr.f32.gmra.mrb[0].mxu0 %v1518
  %v1620 = vpop.f32.mrb[0].mxu0
  %v1621 = vadd.f32 0.0, %v1620
  %v1622 = vpop.f32.mrb[0].mxu0
  %1623 = vmatprep.mubr.f32.mxu0 0.0
  %1624 = vmatmul.mubr.f32.gmra.mrb[0].mxu0 %v1521
  %v1625 = vpop.f32.mrb[0].mxu0
  %v1626 = vadd.f32 0.0, %v1625
  %v1627 = vpop.f32.mrb[0].mxu0
  %1628 = vmatprep.mubr.f32.mxu0 0.0
  %1629 = vmatmul.mubr.f32.gmra.mrb[0].mxu0 %v1524
  %v1630 = vpop.f32.mrb[0].mxu0
  %v1631 = vadd.f32 0.0, %v1630
  %v1632 = vpop.f32.mrb[0].mxu0
  %1633 = vdwg.mxu0
  %v1635 = vsel %vm80, %v1483, 0
  %v1638 = vsel %vm80, %v1484, 0
  %v1641 = vsel %vm80, %v1485, 0
  %v1644 = vsel %vm80, %v1486, 0
  %v1647 = vsel %vm80, %v1487, 0
  %v1650 = vsel %vm80, %v1488, 0
  %v1653 = vsel %vm80, %v1489, 0
  %v1656 = vsel %vm80, %v1490, 0
  %v1659 = vsel %vm224, %v1491, 0
  %1661 = vmatprep.subr.mxu0 0.0
  %1662 = vmatpush1.msra.mxu0 %v1659
  %1663 = vmatprep.subr.mxu0 0.0
  %1664 = vmatpush1.msra.mxu0 0.0
  %1665 = vmatprep.subr.mxu0 0.0
  %1666 = vmatpush1.msra.mxu0 0.0
  %1667 = vmatprep.subr.mxu0 0.0
  %1668 = vmatpush1.msra.mxu0 0.0
  %1669 = vmatprep.subr.mxu0 0.0
  %1670 = vmatpush1.msra.mxu0 0.0
  %1671 = vmatprep.subr.mxu0 0.0
  %1672 = vmatpush1.msra.mxu0 0.0
  %1673 = vmatprep.subr.mxu0 0.0
  %1674 = vmatpush1.msra.mxu0 0.0
  %1675 = vmatprep.subr.mxu0 0.0
  %1676 = vmatpush1.msra.mxu0 0.0
  %1677 = vmatprep.subr.mxu0 0.0
  %1678 = vmatpush1.msra.mxu0 0.0
  %1679 = vmatprep.subr.mxu0 0.0
  %1680 = vmatpush1.msra.mxu0 0.0
  %1681 = vmatprep.subr.mxu0 0.0
  %1682 = vmatpush1.msra.mxu0 0.0
  %1683 = vmatprep.subr.mxu0 0.0
  %1684 = vmatpush1.msra.mxu0 0.0
  %1685 = vmatprep.subr.mxu0 0.0
  %1686 = vmatpush1.msra.mxu0 0.0
  %1687 = vmatprep.subr.mxu0 0.0
  %1688 = vmatpush1.msra.mxu0 0.0
  %1689 = vmatprep.subr.mxu0 0.0
  %1690 = vmatpush1.msra.mxu0 0.0
  %1691 = vmatprep.subr.mxu0 0.0
  %1692 = vmatpush1.msra.mxu0 0.0
  %1693 = vmatprep.subr.mxu0 0.0
  %1694 = vmatpush1.msra.mxu0 0.0
  %1695 = vmatprep.subr.mxu0 0.0
  %1696 = vmatpush1.msra.mxu0 0.0
  %1697 = vmatprep.subr.mxu0 0.0
  %1698 = vmatpush1.msra.mxu0 0.0
  %1699 = vmatprep.subr.mxu0 0.0
  %1700 = vmatpush1.msra.mxu0 0.0
  %1701 = vmatprep.subr.mxu0 0.0
  %1702 = vmatpush1.msra.mxu0 0.0
  %1703 = vmatprep.subr.mxu0 0.0
  %1704 = vmatpush1.msra.mxu0 0.0
  %1705 = vmatprep.subr.mxu0 0.0
  %1706 = vmatpush1.msra.mxu0 0.0
  %1707 = vmatprep.subr.mxu0 0.0
  %1708 = vmatpush1.msra.mxu0 0.0
  %1709 = vmatprep.subr.mxu0 0.0
  %1710 = vmatpush1.msra.mxu0 0.0
  %1711 = vmatprep.subr.mxu0 0.0
  %1712 = vmatpush1.msra.mxu0 0.0
  %1713 = vmatprep.subr.mxu0 0.0
  %1714 = vmatpush1.msra.mxu0 0.0
  %1715 = vmatprep.subr.mxu0 0.0
  %1716 = vmatpush1.msra.mxu0 0.0
  %1717 = vmatprep.subr.mxu0 0.0
  %1718 = vmatpush1.msra.mxu0 0.0
  %1719 = vmatprep.subr.mxu0 0.0
  %1720 = vmatpush1.msra.mxu0 0.0
  %1721 = vmatprep.subr.mxu0 0.0
  %1722 = vmatpush1.msra.mxu0 0.0
  %1723 = vmatprep.subr.mxu0 0.0
  %1724 = vmatpush1.msra.mxu0 0.0
  %1725 = vmatprep.mubr.f32.mxu0 0.0
  %1726 = vmatmul.mubr.f32.gmra.mrb[0].mxu0 %v1635
  %v1727 = vpop.f32.mrb[0].mxu0
  %v1728 = vadd.f32 %v1596, %v1727
  %v1729 = vpop.f32.mrb[0].mxu0
  %1730 = vmatprep.mubr.f32.mxu0 0.0
  %1731 = vmatmul.mubr.f32.gmra.mrb[0].mxu0 %v1638
  %v1732 = vpop.f32.mrb[0].mxu0
  %v1733 = vadd.f32 %v1601, %v1732
  %v1734 = vpop.f32.mrb[0].mxu0
  %1735 = vmatprep.mubr.f32.mxu0 0.0
  %1736 = vmatmul.mubr.f32.gmra.mrb[0].mxu0 %v1641
  %v1737 = vpop.f32.mrb[0].mxu0
  %v1738 = vadd.f32 %v1606, %v1737
  %v1739 = vpop.f32.mrb[0].mxu0
  %1740 = vmatprep.mubr.f32.mxu0 0.0
  %1741 = vmatmul.mubr.f32.gmra.mrb[0].mxu0 %v1644
  %v1742 = vpop.f32.mrb[0].mxu0
  %v1743 = vadd.f32 %v1611, %v1742
  %v1744 = vpop.f32.mrb[0].mxu0
  %1745 = vmatprep.mubr.f32.mxu0 0.0
  %1746 = vmatmul.mubr.f32.gmra.mrb[0].mxu0 %v1647
  %v1747 = vpop.f32.mrb[0].mxu0
  %v1748 = vadd.f32 %v1616, %v1747
  %v1749 = vpop.f32.mrb[0].mxu0
  %1750 = vmatprep.mubr.f32.mxu0 0.0
  %1751 = vmatmul.mubr.f32.gmra.mrb[0].mxu0 %v1650
  %v1752 = vpop.f32.mrb[0].mxu0
  %v1753 = vadd.f32 %v1621, %v1752
  %v1754 = vpop.f32.mrb[0].mxu0
  %1755 = vmatprep.mubr.f32.mxu0 0.0
  %1756 = vmatmul.mubr.f32.gmra.mrb[0].mxu0 %v1653
  %v1757 = vpop.f32.mrb[0].mxu0
  %v1758 = vadd.f32 %v1626, %v1757
  %v1759 = vpop.f32.mrb[0].mxu0
  %1760 = vmatprep.mubr.f32.mxu0 0.0
  %1761 = vmatmul.mubr.f32.gmra.mrb[0].mxu0 %v1656
  %v1762 = vpop.f32.mrb[0].mxu0
  %v1763 = vadd.f32 %v1631, %v1762
  %v1764 = vpop.f32.mrb[0].mxu0
  %1765 = vdwg.mxu0
  %s1766 = scalar_lea.vmem %s11, 32
  %v1767 = vld [vmem:[%s1766] sm:$0x3f]
  %v1768 = vld [vmem:[#allocation2 + $0x9] sm:$0xff]
  %v1769 = vld [vmem:[#allocation2 + $0x11] sm:$0xff]
  %v1770 = vld [vmem:[#allocation2 + $0x19] sm:$0xff]
  %v1771 = vld [vmem:[#allocation2 + $0x21] sm:$0xff]
  %v1772 = vld [vmem:[#allocation2 + $0x29] sm:$0xff]
  %v1773 = vld [vmem:[#allocation2 + $0x31] sm:$0xff]
  %v1774 = vld [vmem:[#allocation2 + $0x39] sm:$0xff]
  %v1775 = vld [vmem:[#allocation2 + $0x41] sm:$0xff]
  %vm1776 = vcmp.le.s32.totalorder %v1459, 6
  %vm1777 = vcmp.le.s32.totalorder %v1460, 6
  %vm1778 = vcmp.le.s32.totalorder %v1461, 6
  %vm1779 = vcmp.le.s32.totalorder %v1462, 6
  %vm1780 = vcmp.le.s32.totalorder %v1463, 6
  %vm1781 = vcmp.le.s32.totalorder %v1464, 6
  %vm1782 = vcmp.le.s32.totalorder %v1465, 6
  %vm1783 = vcmp.le.s32.totalorder %v1466, 6
  %v1784 = vsel %vm1776, %v1768, 0.0
  %v1785 = vsel %vm1777, %v1769, 0.0
  %v1786 = vsel %vm1778, %v1770, 0.0
  %v1787 = vsel %vm1779, %v1771, 0.0
  %v1788 = vsel %vm1780, %v1772, 0.0
  %v1789 = vsel %vm1781, %v1773, 0.0
  %v1790 = vsel %vm1782, %v1774, 0.0
  %v1791 = vsel %vm1783, %v1775, 0.0
  %s1792 = scalar_lea.vmem %s11, 40
  %v1793 = vld [vmem:[%s1792] sm:$0x3f]
  %v1795 = vsel %vm80, %v1784, 0
  %v1798 = vsel %vm80, %v1785, 0
  %v1801 = vsel %vm80, %v1786, 0
  %v1804 = vsel %vm80, %v1787, 0
  %v1807 = vsel %vm80, %v1788, 0
  %v1810 = vsel %vm80, %v1789, 0
  %v1813 = vsel %vm80, %v1790, 0
  %v1816 = vsel %vm80, %v1791, 0
  %v1819 = vsel %vm224, %v1793, 0
  %1821 = vmatprep.subr.mxu0 0.0
  %1822 = vmatpush1.msra.mxu0 %v1819
  %1823 = vmatprep.subr.mxu0 0.0
  %1824 = vmatpush1.msra.mxu0 0.0
  %1825 = vmatprep.subr.mxu0 0.0
  %1826 = vmatpush1.msra.mxu0 0.0
  %1827 = vmatprep.subr.mxu0 0.0
  %1828 = vmatpush1.msra.mxu0 0.0
  %1829 = vmatprep.subr.mxu0 0.0
  %1830 = vmatpush1.msra.mxu0 0.0
  %1831 = vmatprep.subr.mxu0 0.0
  %1832 = vmatpush1.msra.mxu0 0.0
  %1833 = vmatprep.subr.mxu0 0.0
  %1834 = vmatpush1.msra.mxu0 0.0
  %1835 = vmatprep.subr.mxu0 0.0
  %1836 = vmatpush1.msra.mxu0 0.0
  %1837 = vmatprep.subr.mxu0 0.0
  %1838 = vmatpush1.msra.mxu0 0.0
  %1839 = vmatprep.subr.mxu0 0.0
  %1840 = vmatpush1.msra.mxu0 0.0
  %1841 = vmatprep.subr.mxu0 0.0
  %1842 = vmatpush1.msra.mxu0 0.0
  %1843 = vmatprep.subr.mxu0 0.0
  %1844 = vmatpush1.msra.mxu0 0.0
  %1845 = vmatprep.subr.mxu0 0.0
  %1846 = vmatpush1.msra.mxu0 0.0
  %1847 = vmatprep.subr.mxu0 0.0
  %1848 = vmatpush1.msra.mxu0 0.0
  %1849 = vmatprep.subr.mxu0 0.0
  %1850 = vmatpush1.msra.mxu0 0.0
  %1851 = vmatprep.subr.mxu0 0.0
  %1852 = vmatpush1.msra.mxu0 0.0
  %1853 = vmatprep.subr.mxu0 0.0
  %1854 = vmatpush1.msra.mxu0 0.0
  %1855 = vmatprep.subr.mxu0 0.0
  %1856 = vmatpush1.msra.mxu0 0.0
  %1857 = vmatprep.subr.mxu0 0.0
  %1858 = vmatpush1.msra.mxu0 0.0
  %1859 = vmatprep.subr.mxu0 0.0
  %1860 = vmatpush1.msra.mxu0 0.0
  %1861 = vmatprep.subr.mxu0 0.0
  %1862 = vmatpush1.msra.mxu0 0.0
  %1863 = vmatprep.subr.mxu0 0.0
  %1864 = vmatpush1.msra.mxu0 0.0
  %1865 = vmatprep.subr.mxu0 0.0
  %1866 = vmatpush1.msra.mxu0 0.0
  %1867 = vmatprep.subr.mxu0 0.0
  %1868 = vmatpush1.msra.mxu0 0.0
  %1869 = vmatprep.subr.mxu0 0.0
  %1870 = vmatpush1.msra.mxu0 0.0
  %1871 = vmatprep.subr.mxu0 0.0
  %1872 = vmatpush1.msra.mxu0 0.0
  %1873 = vmatprep.subr.mxu0 0.0
  %1874 = vmatpush1.msra.mxu0 0.0
  %1875 = vmatprep.subr.mxu0 0.0
  %1876 = vmatpush1.msra.mxu0 0.0
  %1877 = vmatprep.subr.mxu0 0.0
  %1878 = vmatpush1.msra.mxu0 0.0
  %1879 = vmatprep.subr.mxu0 0.0
  %1880 = vmatpush1.msra.mxu0 0.0
  %1881 = vmatprep.subr.mxu0 0.0
  %1882 = vmatpush1.msra.mxu0 0.0
  %1883 = vmatprep.subr.mxu0 0.0
  %1884 = vmatpush1.msra.mxu0 0.0
  %1885 = vmatprep.mubr.f32.mxu0 0.0
  %1886 = vmatmul.mubr.f32.gmra.mrb[0].mxu0 %v1795
  %v1887 = vpop.f32.mrb[0].mxu0
  %v1888 = vadd.f32 0.0, %v1887
  %v1889 = vpop.f32.mrb[0].mxu0
  %1890 = vmatprep.mubr.f32.mxu0 0.0
  %1891 = vmatmul.mubr.f32.gmra.mrb[0].mxu0 %v1798
  %v1892 = vpop.f32.mrb[0].mxu0
  %v1893 = vadd.f32 0.0, %v1892
  %v1894 = vpop.f32.mrb[0].mxu0
  %1895 = vmatprep.mubr.f32.mxu0 0.0
  %1896 = vmatmul.mubr.f32.gmra.mrb[0].mxu0 %v1801
  %v1897 = vpop.f32.mrb[0].mxu0
  %v1898 = vadd.f32 0.0, %v1897
  %v1899 = vpop.f32.mrb[0].mxu0
  %1900 = vmatprep.mubr.f32.mxu0 0.0
  %1901 = vmatmul.mubr.f32.gmra.mrb[0].mxu0 %v1804
  %v1902 = vpop.f32.mrb[0].mxu0
  %v1903 = vadd.f32 0.0, %v1902
  %v1904 = vpop.f32.mrb[0].mxu0
  %1905 = vmatprep.mubr.f32.mxu0 0.0
  %1906 = vmatmul.mubr.f32.gmra.mrb[0].mxu0 %v1807
  %v1907 = vpop.f32.mrb[0].mxu0
  %v1908 = vadd.f32 0.0, %v1907
  %v1909 = vpop.f32.mrb[0].mxu0
  %1910 = vmatprep.mubr.f32.mxu0 0.0
  %1911 = vmatmul.mubr.f32.gmra.mrb[0].mxu0 %v1810
  %v1912 = vpop.f32.mrb[0].mxu0
  %v1913 = vadd.f32 0.0, %v1912
  %v1914 = vpop.f32.mrb[0].mxu0
  %1915 = vmatprep.mubr.f32.mxu0 0.0
  %1916 = vmatmul.mubr.f32.gmra.mrb[0].mxu0 %v1813
  %v1917 = vpop.f32.mrb[0].mxu0
  %v1918 = vadd.f32 0.0, %v1917
  %v1919 = vpop.f32.mrb[0].mxu0
  %1920 = vmatprep.mubr.f32.mxu0 0.0
  %1921 = vmatmul.mubr.f32.gmra.mrb[0].mxu0 %v1816
  %v1922 = vpop.f32.mrb[0].mxu0
  %v1923 = vadd.f32 0.0, %v1922
  %v1924 = vpop.f32.mrb[0].mxu0
  %1925 = vdwg.mxu0
  %v1927 = vsel %vm224, %v1767, 0
  %1929 = vmatprep.subr.mxu0 0.0
  %1930 = vmatpush1.msra.mxu0 %v1927
  %1931 = vmatprep.subr.mxu0 0.0
  %1932 = vmatpush1.msra.mxu0 0.0
  %1933 = vmatprep.subr.mxu0 0.0
  %1934 = vmatpush1.msra.mxu0 0.0
  %1935 = vmatprep.subr.mxu0 0.0
  %1936 = vmatpush1.msra.mxu0 0.0
  %1937 = vmatprep.subr.mxu0 0.0
  %1938 = vmatpush1.msra.mxu0 0.0
  %1939 = vmatprep.subr.mxu0 0.0
  %1940 = vmatpush1.msra.mxu0 0.0
  %1941 = vmatprep.subr.mxu0 0.0
  %1942 = vmatpush1.msra.mxu0 0.0
  %1943 = vmatprep.subr.mxu0 0.0
  %1944 = vmatpush1.msra.mxu0 0.0
  %1945 = vmatprep.subr.mxu0 0.0
  %1946 = vmatpush1.msra.mxu0 0.0
  %1947 = vmatprep.subr.mxu0 0.0
  %1948 = vmatpush1.msra.mxu0 0.0
  %1949 = vmatprep.subr.mxu0 0.0
  %1950 = vmatpush1.msra.mxu0 0.0
  %1951 = vmatprep.subr.mxu0 0.0
  %1952 = vmatpush1.msra.mxu0 0.0
  %1953 = vmatprep.subr.mxu0 0.0
  %1954 = vmatpush1.msra.mxu0 0.0
  %1955 = vmatprep.subr.mxu0 0.0
  %1956 = vmatpush1.msra.mxu0 0.0
  %1957 = vmatprep.subr.mxu0 0.0
  %1958 = vmatpush1.msra.mxu0 0.0
  %1959 = vmatprep.subr.mxu0 0.0
  %1960 = vmatpush1.msra.mxu0 0.0
  %1961 = vmatprep.subr.mxu0 0.0
  %1962 = vmatpush1.msra.mxu0 0.0
  %1963 = vmatprep.subr.mxu0 0.0
  %1964 = vmatpush1.msra.mxu0 0.0
  %1965 = vmatprep.subr.mxu0 0.0
  %1966 = vmatpush1.msra.mxu0 0.0
  %1967 = vmatprep.subr.mxu0 0.0
  %1968 = vmatpush1.msra.mxu0 0.0
  %1969 = vmatprep.subr.mxu0 0.0
  %1970 = vmatpush1.msra.mxu0 0.0
  %1971 = vmatprep.subr.mxu0 0.0
  %1972 = vmatpush1.msra.mxu0 0.0
  %1973 = vmatprep.subr.mxu0 0.0
  %1974 = vmatpush1.msra.mxu0 0.0
  %1975 = vmatprep.subr.mxu0 0.0
  %1976 = vmatpush1.msra.mxu0 0.0
  %1977 = vmatprep.subr.mxu0 0.0
  %1978 = vmatpush1.msra.mxu0 0.0
  %1979 = vmatprep.subr.mxu0 0.0
  %1980 = vmatpush1.msra.mxu0 0.0
  %1981 = vmatprep.subr.mxu0 0.0
  %1982 = vmatpush1.msra.mxu0 0.0
  %1983 = vmatprep.subr.mxu0 0.0
  %1984 = vmatpush1.msra.mxu0 0.0
  %1985 = vmatprep.subr.mxu0 0.0
  %1986 = vmatpush1.msra.mxu0 0.0
  %1987 = vmatprep.subr.mxu0 0.0
  %1988 = vmatpush1.msra.mxu0 0.0
  %1989 = vmatprep.subr.mxu0 0.0
  %1990 = vmatpush1.msra.mxu0 0.0
  %1991 = vmatprep.subr.mxu0 0.0
  %1992 = vmatpush1.msra.mxu0 0.0
  %1993 = vmatprep.mubr.f32.mxu0 0.0
  %1994 = vmatmul.mubr.f32.gmra.mrb[0].mxu0 %v1503
  %v1995 = vpop.f32.mrb[0].mxu0
  %v1996 = vadd.f32 %v1888, %v1995
  %v1997 = vpop.f32.mrb[0].mxu0
  %1998 = vmatprep.mubr.f32.mxu0 0.0
  %1999 = vmatmul.mubr.f32.gmra.mrb[0].mxu0 %v1506
  %v2000 = vpop.f32.mrb[0].mxu0
  %v2001 = vadd.f32 %v1893, %v2000
  %v2002 = vpop.f32.mrb[0].mxu0
  %2003 = vmatprep.mubr.f32.mxu0 0.0
  %2004 = vmatmul.mubr.f32.gmra.mrb[0].mxu0 %v1509
  %v2005 = vpop.f32.mrb[0].mxu0
  %v2006 = vadd.f32 %v1898, %v2005
  %v2007 = vpop.f32.mrb[0].mxu0
  %2008 = vmatprep.mubr.f32.mxu0 0.0
  %2009 = vmatmul.mubr.f32.gmra.mrb[0].mxu0 %v1512
  %v2010 = vpop.f32.mrb[0].mxu0
  %v2011 = vadd.f32 %v1903, %v2010
  %v2012 = vpop.f32.mrb[0].mxu0
  %2013 = vmatprep.mubr.f32.mxu0 0.0
  %2014 = vmatmul.mubr.f32.gmra.mrb[0].mxu0 %v1515
  %v2015 = vpop.f32.mrb[0].mxu0
  %v2016 = vadd.f32 %v1908, %v2015
  %v2017 = vpop.f32.mrb[0].mxu0
  %2018 = vmatprep.mubr.f32.mxu0 0.0
  %2019 = vmatmul.mubr.f32.gmra.mrb[0].mxu0 %v1518
  %v2020 = vpop.f32.mrb[0].mxu0
  %v2021 = vadd.f32 %v1913, %v2020
  %v2022 = vpop.f32.mrb[0].mxu0
  %2023 = vmatprep.mubr.f32.mxu0 0.0
  %2024 = vmatmul.mubr.f32.gmra.mrb[0].mxu0 %v1521
  %v2025 = vpop.f32.mrb[0].mxu0
  %v2026 = vadd.f32 %v1918, %v2025
  %v2027 = vpop.f32.mrb[0].mxu0
  %2028 = vmatprep.mubr.f32.mxu0 0.0
  %2029 = vmatmul.mubr.f32.gmra.mrb[0].mxu0 %v1524
  %v2030 = vpop.f32.mrb[0].mxu0
  %v2031 = vadd.f32 %v1923, %v2030
  %v2032 = vpop.f32.mrb[0].mxu0
  %2033 = vdwg.mxu0
  %v2034 = vld [vmem:[#allocation2 + $0xf] sm:$0xff]
  %v2035 = vld [vmem:[#allocation2 + $0x17] sm:$0xff]
  %v2036 = vld [vmem:[#allocation2 + $0x1f] sm:$0xff]
  %v2037 = vld [vmem:[#allocation2 + $0x27] sm:$0xff]
  %v2038 = vld [vmem:[#allocation2 + $0x2f] sm:$0xff]
  %v2039 = vld [vmem:[#allocation2 + $0x37] sm:$0xff]
  %v2040 = vld [vmem:[#allocation2 + $0x3f] sm:$0xff]
  %v2041 = vld [vmem:[#allocation2 + $0x47] sm:$0xff]
  %v2042 = vsel %vm1475, %v2034, 0.0
  %v2043 = vsel %vm1476, %v2035, 0.0
  %v2044 = vsel %vm1477, %v2036, 0.0
  %v2045 = vsel %vm1478, %v2037, 0.0
  %v2046 = vsel %vm1479, %v2038, 0.0
  %v2047 = vsel %vm1480, %v2039, 0.0
  %v2048 = vsel %vm1481, %v2040, 0.0
  %v2049 = vsel %vm1482, %v2041, 0.0
  %s2050 = scalar_lea.vmem %s11, 16
  %v2051 = vld [vmem:[%s2050] sm:$0x3f]
  %v2053 = vsel %vm80, %v2042, 0
  %v2056 = vsel %vm80, %v2043, 0
  %v2059 = vsel %vm80, %v2044, 0
  %v2062 = vsel %vm80, %v2045, 0
  %v2065 = vsel %vm80, %v2046, 0
  %v2068 = vsel %vm80, %v2047, 0
  %v2071 = vsel %vm80, %v2048, 0
  %v2074 = vsel %vm80, %v2049, 0
  %v2077 = vsel %vm224, %v2051, 0
  %2079 = vmatprep.subr.mxu0 0.0
  %2080 = vmatpush1.msra.mxu0 %v2077
  %2081 = vmatprep.subr.mxu0 0.0
  %2082 = vmatpush1.msra.mxu0 0.0
  %2083 = vmatprep.subr.mxu0 0.0
  %2084 = vmatpush1.msra.mxu0 0.0
  %2085 = vmatprep.subr.mxu0 0.0
  %2086 = vmatpush1.msra.mxu0 0.0
  %2087 = vmatprep.subr.mxu0 0.0
  %2088 = vmatpush1.msra.mxu0 0.0
  %2089 = vmatprep.subr.mxu0 0.0
  %2090 = vmatpush1.msra.mxu0 0.0
  %2091 = vmatprep.subr.mxu0 0.0
  %2092 = vmatpush1.msra.mxu0 0.0
  %2093 = vmatprep.subr.mxu0 0.0
  %2094 = vmatpush1.msra.mxu0 0.0
  %2095 = vmatprep.subr.mxu0 0.0
  %2096 = vmatpush1.msra.mxu0 0.0
  %2097 = vmatprep.subr.mxu0 0.0
  %2098 = vmatpush1.msra.mxu0 0.0
  %2099 = vmatprep.subr.mxu0 0.0
  %2100 = vmatpush1.msra.mxu0 0.0
  %2101 = vmatprep.subr.mxu0 0.0
  %2102 = vmatpush1.msra.mxu0 0.0
  %2103 = vmatprep.subr.mxu0 0.0
  %2104 = vmatpush1.msra.mxu0 0.0
  %2105 = vmatprep.subr.mxu0 0.0
  %2106 = vmatpush1.msra.mxu0 0.0
  %2107 = vmatprep.subr.mxu0 0.0
  %2108 = vmatpush1.msra.mxu0 0.0
  %2109 = vmatprep.subr.mxu0 0.0
  %2110 = vmatpush1.msra.mxu0 0.0
  %2111 = vmatprep.subr.mxu0 0.0
  %2112 = vmatpush1.msra.mxu0 0.0
  %2113 = vmatprep.subr.mxu0 0.0
  %2114 = vmatpush1.msra.mxu0 0.0
  %2115 = vmatprep.subr.mxu0 0.0
  %2116 = vmatpush1.msra.mxu0 0.0
  %2117 = vmatprep.subr.mxu0 0.0
  %2118 = vmatpush1.msra.mxu0 0.0
  %2119 = vmatprep.subr.mxu0 0.0
  %2120 = vmatpush1.msra.mxu0 0.0
  %2121 = vmatprep.subr.mxu0 0.0
  %2122 = vmatpush1.msra.mxu0 0.0
  %2123 = vmatprep.subr.mxu0 0.0
  %2124 = vmatpush1.msra.mxu0 0.0
  %2125 = vmatprep.subr.mxu0 0.0
  %2126 = vmatpush1.msra.mxu0 0.0
  %2127 = vmatprep.subr.mxu0 0.0
  %2128 = vmatpush1.msra.mxu0 0.0
  %2129 = vmatprep.subr.mxu0 0.0
  %2130 = vmatpush1.msra.mxu0 0.0
  %2131 = vmatprep.subr.mxu0 0.0
  %2132 = vmatpush1.msra.mxu0 0.0
  %2133 = vmatprep.subr.mxu0 0.0
  %2134 = vmatpush1.msra.mxu0 0.0
  %2135 = vmatprep.subr.mxu0 0.0
  %2136 = vmatpush1.msra.mxu0 0.0
  %2137 = vmatprep.subr.mxu0 0.0
  %2138 = vmatpush1.msra.mxu0 0.0
  %2139 = vmatprep.subr.mxu0 0.0
  %2140 = vmatpush1.msra.mxu0 0.0
  %2141 = vmatprep.subr.mxu0 0.0
  %2142 = vmatpush1.msra.mxu0 0.0
  %2143 = vmatprep.mubr.f32.mxu0 0.0
  %2144 = vmatmul.mubr.f32.gmra.mrb[0].mxu0 %v2053
  %v2145 = vpop.f32.mrb[0].mxu0
  %v2146 = vadd.f32 0.0, %v2145
  %v2147 = vpop.f32.mrb[0].mxu0
  %2148 = vmatprep.mubr.f32.mxu0 0.0
  %2149 = vmatmul.mubr.f32.gmra.mrb[0].mxu0 %v2056
  %v2150 = vpop.f32.mrb[0].mxu0
  %v2151 = vadd.f32 0.0, %v2150
  %v2152 = vpop.f32.mrb[0].mxu0
  %2153 = vmatprep.mubr.f32.mxu0 0.0
  %2154 = vmatmul.mubr.f32.gmra.mrb[0].mxu0 %v2059
  %v2155 = vpop.f32.mrb[0].mxu0
  %v2156 = vadd.f32 0.0, %v2155
  %v2157 = vpop.f32.mrb[0].mxu0
  %2158 = vmatprep.mubr.f32.mxu0 0.0
  %2159 = vmatmul.mubr.f32.gmra.mrb[0].mxu0 %v2062
  %v2160 = vpop.f32.mrb[0].mxu0
  %v2161 = vadd.f32 0.0, %v2160
  %v2162 = vpop.f32.mrb[0].mxu0
  %2163 = vmatprep.mubr.f32.mxu0 0.0
  %2164 = vmatmul.mubr.f32.gmra.mrb[0].mxu0 %v2065
  %v2165 = vpop.f32.mrb[0].mxu0
  %v2166 = vadd.f32 0.0, %v2165
  %v2167 = vpop.f32.mrb[0].mxu0
  %2168 = vmatprep.mubr.f32.mxu0 0.0
  %2169 = vmatmul.mubr.f32.gmra.mrb[0].mxu0 %v2068
  %v2170 = vpop.f32.mrb[0].mxu0
  %v2171 = vadd.f32 0.0, %v2170
  %v2172 = vpop.f32.mrb[0].mxu0
  %2173 = vmatprep.mubr.f32.mxu0 0.0
  %2174 = vmatmul.mubr.f32.gmra.mrb[0].mxu0 %v2071
  %v2175 = vpop.f32.mrb[0].mxu0
  %v2176 = vadd.f32 0.0, %v2175
  %v2177 = vpop.f32.mrb[0].mxu0
  %2178 = vmatprep.mubr.f32.mxu0 0.0
  %2179 = vmatmul.mubr.f32.gmra.mrb[0].mxu0 %v2074
  %v2180 = vpop.f32.mrb[0].mxu0
  %v2181 = vadd.f32 0.0, %v2180
  %v2182 = vpop.f32.mrb[0].mxu0
  %2183 = vdwg.mxu0
  %v2184 = vadd.f32 %v1728, %v2146
  %v2185 = vadd.f32 %v1733, %v2151
  %v2186 = vadd.f32 %v1738, %v2156
  %v2187 = vadd.f32 %v1743, %v2161
  %v2188 = vadd.f32 %v1748, %v2166
  %v2189 = vadd.f32 %v1753, %v2171
  %v2190 = vadd.f32 %v1758, %v2176
  %v2191 = vadd.f32 %v1763, %v2181
  %s2192 = scalar_lea.vmem %s11, 64
  %v2193 = vld [vmem:[%s2192] sm:$0x3f]
  %v2194 = vld [vmem:[#allocation2 + $0x10] sm:$0xff]
  %v2195 = vld [vmem:[#allocation2 + $0x18] sm:$0xff]
  %v2196 = vld [vmem:[#allocation2 + $0x20] sm:$0xff]
  %v2197 = vld [vmem:[#allocation2 + $0x28] sm:$0xff]
  %v2198 = vld [vmem:[#allocation2 + $0x30] sm:$0xff]
  %v2199 = vld [vmem:[#allocation2 + $0x38] sm:$0xff]
  %v2200 = vld [vmem:[#allocation2 + $0x40] sm:$0xff]
  %v2201 = vld [vmem:[#allocation2 + $0x48] sm:$0xff]
  %s2202 = scalar_lea.vmem %s11, 24
  %v2203 = vld [vmem:[%s2202] sm:$0x3f]
  %v2205 = vsel %vm80, %v2194, 0
  %v2208 = vsel %vm80, %v2195, 0
  %v2211 = vsel %vm80, %v2196, 0
  %v2214 = vsel %vm80, %v2197, 0
  %v2217 = vsel %vm80, %v2198, 0
  %v2220 = vsel %vm80, %v2199, 0
  %v2223 = vsel %vm80, %v2200, 0
  %v2226 = vsel %vm80, %v2201, 0
  %v2229 = vsel %vm224, %v2203, 0
  %2231 = vmatprep.subr.mxu0 0.0
  %2232 = vmatpush1.msra.mxu0 %v2229
  %2233 = vmatprep.subr.mxu0 0.0
  %2234 = vmatpush1.msra.mxu0 0.0
  %2235 = vmatprep.subr.mxu0 0.0
  %2236 = vmatpush1.msra.mxu0 0.0
  %2237 = vmatprep.subr.mxu0 0.0
  %2238 = vmatpush1.msra.mxu0 0.0
  %2239 = vmatprep.subr.mxu0 0.0
  %2240 = vmatpush1.msra.mxu0 0.0
  %2241 = vmatprep.subr.mxu0 0.0
  %2242 = vmatpush1.msra.mxu0 0.0
  %2243 = vmatprep.subr.mxu0 0.0
  %2244 = vmatpush1.msra.mxu0 0.0
  %2245 = vmatprep.subr.mxu0 0.0
  %2246 = vmatpush1.msra.mxu0 0.0
  %2247 = vmatprep.subr.mxu0 0.0
  %2248 = vmatpush1.msra.mxu0 0.0
  %2249 = vmatprep.subr.mxu0 0.0
  %2250 = vmatpush1.msra.mxu0 0.0
  %2251 = vmatprep.subr.mxu0 0.0
  %2252 = vmatpush1.msra.mxu0 0.0
  %2253 = vmatprep.subr.mxu0 0.0
  %2254 = vmatpush1.msra.mxu0 0.0
  %2255 = vmatprep.subr.mxu0 0.0
  %2256 = vmatpush1.msra.mxu0 0.0
  %2257 = vmatprep.subr.mxu0 0.0
  %2258 = vmatpush1.msra.mxu0 0.0
  %2259 = vmatprep.subr.mxu0 0.0
  %2260 = vmatpush1.msra.mxu0 0.0
  %2261 = vmatprep.subr.mxu0 0.0
  %2262 = vmatpush1.msra.mxu0 0.0
  %2263 = vmatprep.subr.mxu0 0.0
  %2264 = vmatpush1.msra.mxu0 0.0
  %2265 = vmatprep.subr.mxu0 0.0
  %2266 = vmatpush1.msra.mxu0 0.0
  %2267 = vmatprep.subr.mxu0 0.0
  %2268 = vmatpush1.msra.mxu0 0.0
  %2269 = vmatprep.subr.mxu0 0.0
  %2270 = vmatpush1.msra.mxu0 0.0
  %2271 = vmatprep.subr.mxu0 0.0
  %2272 = vmatpush1.msra.mxu0 0.0
  %2273 = vmatprep.subr.mxu0 0.0
  %2274 = vmatpush1.msra.mxu0 0.0
  %2275 = vmatprep.subr.mxu0 0.0
  %2276 = vmatpush1.msra.mxu0 0.0
  %2277 = vmatprep.subr.mxu0 0.0
  %2278 = vmatpush1.msra.mxu0 0.0
  %2279 = vmatprep.subr.mxu0 0.0
  %2280 = vmatpush1.msra.mxu0 0.0
  %2281 = vmatprep.subr.mxu0 0.0
  %2282 = vmatpush1.msra.mxu0 0.0
  %2283 = vmatprep.subr.mxu0 0.0
  %2284 = vmatpush1.msra.mxu0 0.0
  %2285 = vmatprep.subr.mxu0 0.0
  %2286 = vmatpush1.msra.mxu0 0.0
  %2287 = vmatprep.subr.mxu0 0.0
  %2288 = vmatpush1.msra.mxu0 0.0
  %2289 = vmatprep.subr.mxu0 0.0
  %2290 = vmatpush1.msra.mxu0 0.0
  %2291 = vmatprep.subr.mxu0 0.0
  %2292 = vmatpush1.msra.mxu0 0.0
  %2293 = vmatprep.subr.mxu0 0.0
  %2294 = vmatpush1.msra.mxu0 0.0
  %2295 = vmatprep.mubr.f32.mxu0 0.0
  %2296 = vmatmul.mubr.f32.gmra.mrb[0].mxu0 %v2205
  %v2297 = vpop.f32.mrb[0].mxu0
  %v2298 = vadd.f32 0.0, %v2297
  %v2299 = vpop.f32.mrb[0].mxu0
  %2300 = vmatprep.mubr.f32.mxu0 0.0
  %2301 = vmatmul.mubr.f32.gmra.mrb[0].mxu0 %v2208
  %v2302 = vpop.f32.mrb[0].mxu0
  %v2303 = vadd.f32 0.0, %v2302
  %v2304 = vpop.f32.mrb[0].mxu0
  %2305 = vmatprep.mubr.f32.mxu0 0.0
  %2306 = vmatmul.mubr.f32.gmra.mrb[0].mxu0 %v2211
  %v2307 = vpop.f32.mrb[0].mxu0
  %v2308 = vadd.f32 0.0, %v2307
  %v2309 = vpop.f32.mrb[0].mxu0
  %2310 = vmatprep.mubr.f32.mxu0 0.0
  %2311 = vmatmul.mubr.f32.gmra.mrb[0].mxu0 %v2214
  %v2312 = vpop.f32.mrb[0].mxu0
  %v2313 = vadd.f32 0.0, %v2312
  %v2314 = vpop.f32.mrb[0].mxu0
  %2315 = vmatprep.mubr.f32.mxu0 0.0
  %2316 = vmatmul.mubr.f32.gmra.mrb[0].mxu0 %v2217
  %v2317 = vpop.f32.mrb[0].mxu0
  %v2318 = vadd.f32 0.0, %v2317
  %v2319 = vpop.f32.mrb[0].mxu0
  %2320 = vmatprep.mubr.f32.mxu0 0.0
  %2321 = vmatmul.mubr.f32.gmra.mrb[0].mxu0 %v2220
  %v2322 = vpop.f32.mrb[0].mxu0
  %v2323 = vadd.f32 0.0, %v2322
  %v2324 = vpop.f32.mrb[0].mxu0
  %2325 = vmatprep.mubr.f32.mxu0 0.0
  %2326 = vmatmul.mubr.f32.gmra.mrb[0].mxu0 %v2223
  %v2327 = vpop.f32.mrb[0].mxu0
  %v2328 = vadd.f32 0.0, %v2327
  %v2329 = vpop.f32.mrb[0].mxu0
  %2330 = vmatprep.mubr.f32.mxu0 0.0
  %2331 = vmatmul.mubr.f32.gmra.mrb[0].mxu0 %v2226
  %v2332 = vpop.f32.mrb[0].mxu0
  %v2333 = vadd.f32 0.0, %v2332
  %v2334 = vpop.f32.mrb[0].mxu0
  %2335 = vdwg.mxu0
  %v2336 = vadd.f32 %v2184, %v2298
  %v2337 = vadd.f32 %v2185, %v2303
  %v2338 = vadd.f32 %v2186, %v2308
  %v2339 = vadd.f32 %v2187, %v2313
  %v2340 = vadd.f32 %v2188, %v2318
  %v2341 = vadd.f32 %v2189, %v2323
  %v2342 = vadd.f32 %v2190, %v2328
  %v2343 = vadd.f32 %v2191, %v2333
  %s2344 = scalar_lea.vmem %s11, 48
  %v2345 = vld [vmem:[%s2344] sm:$0x3f]
  %v2347 = vsel %vm224, %v2345, 0
  %2349 = vmatprep.subr.mxu0 0.0
  %2350 = vmatpush1.msra.mxu0 %v2347
  %2351 = vmatprep.subr.mxu0 0.0
  %2352 = vmatpush1.msra.mxu0 0.0
  %2353 = vmatprep.subr.mxu0 0.0
  %2354 = vmatpush1.msra.mxu0 0.0
  %2355 = vmatprep.subr.mxu0 0.0
  %2356 = vmatpush1.msra.mxu0 0.0
  %2357 = vmatprep.subr.mxu0 0.0
  %2358 = vmatpush1.msra.mxu0 0.0
  %2359 = vmatprep.subr.mxu0 0.0
  %2360 = vmatpush1.msra.mxu0 0.0
  %2361 = vmatprep.subr.mxu0 0.0
  %2362 = vmatpush1.msra.mxu0 0.0
  %2363 = vmatprep.subr.mxu0 0.0
  %2364 = vmatpush1.msra.mxu0 0.0
  %2365 = vmatprep.subr.mxu0 0.0
  %2366 = vmatpush1.msra.mxu0 0.0
  %2367 = vmatprep.subr.mxu0 0.0
  %2368 = vmatpush1.msra.mxu0 0.0
  %2369 = vmatprep.subr.mxu0 0.0
  %2370 = vmatpush1.msra.mxu0 0.0
  %2371 = vmatprep.subr.mxu0 0.0
  %2372 = vmatpush1.msra.mxu0 0.0
  %2373 = vmatprep.subr.mxu0 0.0
  %2374 = vmatpush1.msra.mxu0 0.0
  %2375 = vmatprep.subr.mxu0 0.0
  %2376 = vmatpush1.msra.mxu0 0.0
  %2377 = vmatprep.subr.mxu0 0.0
  %2378 = vmatpush1.msra.mxu0 0.0
  %2379 = vmatprep.subr.mxu0 0.0
  %2380 = vmatpush1.msra.mxu0 0.0
  %2381 = vmatprep.subr.mxu0 0.0
  %2382 = vmatpush1.msra.mxu0 0.0
  %2383 = vmatprep.subr.mxu0 0.0
  %2384 = vmatpush1.msra.mxu0 0.0
  %2385 = vmatprep.subr.mxu0 0.0
  %2386 = vmatpush1.msra.mxu0 0.0
  %2387 = vmatprep.subr.mxu0 0.0
  %2388 = vmatpush1.msra.mxu0 0.0
  %2389 = vmatprep.subr.mxu0 0.0
  %2390 = vmatpush1.msra.mxu0 0.0
  %2391 = vmatprep.subr.mxu0 0.0
  %2392 = vmatpush1.msra.mxu0 0.0
  %2393 = vmatprep.subr.mxu0 0.0
  %2394 = vmatpush1.msra.mxu0 0.0
  %2395 = vmatprep.subr.mxu0 0.0
  %2396 = vmatpush1.msra.mxu0 0.0
  %2397 = vmatprep.subr.mxu0 0.0
  %2398 = vmatpush1.msra.mxu0 0.0
  %2399 = vmatprep.subr.mxu0 0.0
  %2400 = vmatpush1.msra.mxu0 0.0
  %2401 = vmatprep.subr.mxu0 0.0
  %2402 = vmatpush1.msra.mxu0 0.0
  %2403 = vmatprep.subr.mxu0 0.0
  %2404 = vmatpush1.msra.mxu0 0.0
  %2405 = vmatprep.subr.mxu0 0.0
  %2406 = vmatpush1.msra.mxu0 0.0
  %2407 = vmatprep.subr.mxu0 0.0
  %2408 = vmatpush1.msra.mxu0 0.0
  %2409 = vmatprep.subr.mxu0 0.0
  %2410 = vmatpush1.msra.mxu0 0.0
  %2411 = vmatprep.subr.mxu0 0.0
  %2412 = vmatpush1.msra.mxu0 0.0
  %2413 = vmatprep.mubr.f32.mxu0 0.0
  %2414 = vmatmul.mubr.f32.gmra.mrb[0].mxu0 %v2205
  %v2415 = vpop.f32.mrb[0].mxu0
  %v2416 = vadd.f32 0.0, %v2415
  %v2417 = vpop.f32.mrb[0].mxu0
  %2418 = vmatprep.mubr.f32.mxu0 0.0
  %2419 = vmatmul.mubr.f32.gmra.mrb[0].mxu0 %v2208
  %v2420 = vpop.f32.mrb[0].mxu0
  %v2421 = vadd.f32 0.0, %v2420
  %v2422 = vpop.f32.mrb[0].mxu0
  %2423 = vmatprep.mubr.f32.mxu0 0.0
  %2424 = vmatmul.mubr.f32.gmra.mrb[0].mxu0 %v2211
  %v2425 = vpop.f32.mrb[0].mxu0
  %v2426 = vadd.f32 0.0, %v2425
  %v2427 = vpop.f32.mrb[0].mxu0
  %2428 = vmatprep.mubr.f32.mxu0 0.0
  %2429 = vmatmul.mubr.f32.gmra.mrb[0].mxu0 %v2214
  %v2430 = vpop.f32.mrb[0].mxu0
  %v2431 = vadd.f32 0.0, %v2430
  %v2432 = vpop.f32.mrb[0].mxu0
  %2433 = vmatprep.mubr.f32.mxu0 0.0
  %2434 = vmatmul.mubr.f32.gmra.mrb[0].mxu0 %v2217
  %v2435 = vpop.f32.mrb[0].mxu0
  %v2436 = vadd.f32 0.0, %v2435
  %v2437 = vpop.f32.mrb[0].mxu0
  %2438 = vmatprep.mubr.f32.mxu0 0.0
  %2439 = vmatmul.mubr.f32.gmra.mrb[0].mxu0 %v2220
  %v2440 = vpop.f32.mrb[0].mxu0
  %v2441 = vadd.f32 0.0, %v2440
  %v2442 = vpop.f32.mrb[0].mxu0
  %2443 = vmatprep.mubr.f32.mxu0 0.0
  %2444 = vmatmul.mubr.f32.gmra.mrb[0].mxu0 %v2223
  %v2445 = vpop.f32.mrb[0].mxu0
  %v2446 = vadd.f32 0.0, %v2445
  %v2447 = vpop.f32.mrb[0].mxu0
  %2448 = vmatprep.mubr.f32.mxu0 0.0
  %2449 = vmatmul.mubr.f32.gmra.mrb[0].mxu0 %v2226
  %v2450 = vpop.f32.mrb[0].mxu0
  %v2451 = vadd.f32 0.0, %v2450
  %v2452 = vpop.f32.mrb[0].mxu0
  %2453 = vdwg.mxu0
  %v2454 = vadd.f32 %v1996, %v2416
  %v2455 = vadd.f32 %v2001, %v2421
  %v2456 = vadd.f32 %v2006, %v2426
  %v2457 = vadd.f32 %v2011, %v2431
  %v2458 = vadd.f32 %v2016, %v2436
  %v2459 = vadd.f32 %v2021, %v2441
  %v2460 = vadd.f32 %v2026, %v2446
  %v2461 = vadd.f32 %v2031, %v2451
  %s2462 = scalar_lea.vmem %s11, 72
  %v2463 = vld [vmem:[%s2462] sm:$0x3f]
  %v2465 = vsel %vm224, %v2463, 0
  %2467 = vmatprep.subr.mxu0 0.0
  %2468 = vmatpush1.msra.mxu0 %v2465
  %2469 = vmatprep.subr.mxu0 0.0
  %2470 = vmatpush1.msra.mxu0 0.0
  %2471 = vmatprep.subr.mxu0 0.0
  %2472 = vmatpush1.msra.mxu0 0.0
  %2473 = vmatprep.subr.mxu0 0.0
  %2474 = vmatpush1.msra.mxu0 0.0
  %2475 = vmatprep.subr.mxu0 0.0
  %2476 = vmatpush1.msra.mxu0 0.0
  %2477 = vmatprep.subr.mxu0 0.0
  %2478 = vmatpush1.msra.mxu0 0.0
  %2479 = vmatprep.subr.mxu0 0.0
  %2480 = vmatpush1.msra.mxu0 0.0
  %2481 = vmatprep.subr.mxu0 0.0
  %2482 = vmatpush1.msra.mxu0 0.0
  %2483 = vmatprep.subr.mxu0 0.0
  %2484 = vmatpush1.msra.mxu0 0.0
  %2485 = vmatprep.subr.mxu0 0.0
  %2486 = vmatpush1.msra.mxu0 0.0
  %2487 = vmatprep.subr.mxu0 0.0
  %2488 = vmatpush1.msra.mxu0 0.0
  %2489 = vmatprep.subr.mxu0 0.0
  %2490 = vmatpush1.msra.mxu0 0.0
  %2491 = vmatprep.subr.mxu0 0.0
  %2492 = vmatpush1.msra.mxu0 0.0
  %2493 = vmatprep.subr.mxu0 0.0
  %2494 = vmatpush1.msra.mxu0 0.0
  %2495 = vmatprep.subr.mxu0 0.0
  %2496 = vmatpush1.msra.mxu0 0.0
  %2497 = vmatprep.subr.mxu0 0.0
  %2498 = vmatpush1.msra.mxu0 0.0
  %2499 = vmatprep.subr.mxu0 0.0
  %2500 = vmatpush1.msra.mxu0 0.0
  %2501 = vmatprep.subr.mxu0 0.0
  %2502 = vmatpush1.msra.mxu0 0.0
  %2503 = vmatprep.subr.mxu0 0.0
  %2504 = vmatpush1.msra.mxu0 0.0
  %2505 = vmatprep.subr.mxu0 0.0
  %2506 = vmatpush1.msra.mxu0 0.0
  %2507 = vmatprep.subr.mxu0 0.0
  %2508 = vmatpush1.msra.mxu0 0.0
  %2509 = vmatprep.subr.mxu0 0.0
  %2510 = vmatpush1.msra.mxu0 0.0
  %2511 = vmatprep.subr.mxu0 0.0
  %2512 = vmatpush1.msra.mxu0 0.0
  %2513 = vmatprep.subr.mxu0 0.0
  %2514 = vmatpush1.msra.mxu0 0.0
  %2515 = vmatprep.subr.mxu0 0.0
  %2516 = vmatpush1.msra.mxu0 0.0
  %2517 = vmatprep.subr.mxu0 0.0
  %2518 = vmatpush1.msra.mxu0 0.0
  %2519 = vmatprep.subr.mxu0 0.0
  %2520 = vmatpush1.msra.mxu0 0.0
  %2521 = vmatprep.subr.mxu0 0.0
  %2522 = vmatpush1.msra.mxu0 0.0
  %2523 = vmatprep.subr.mxu0 0.0
  %2524 = vmatpush1.msra.mxu0 0.0
  %2525 = vmatprep.subr.mxu0 0.0
  %2526 = vmatpush1.msra.mxu0 0.0
  %2527 = vmatprep.subr.mxu0 0.0
  %2528 = vmatpush1.msra.mxu0 0.0
  %2529 = vmatprep.subr.mxu0 0.0
  %2530 = vmatpush1.msra.mxu0 0.0
  %2531 = vmatprep.mubr.f32.mxu0 0.0
  %2532 = vmatmul.mubr.f32.gmra.mrb[0].mxu0 %v2205
  %v2533 = vpop.f32.mrb[0].mxu0
  %v2534 = vadd.f32 0.0, %v2533
  %v2535 = vpop.f32.mrb[0].mxu0
  %2536 = vmatprep.mubr.f32.mxu0 0.0
  %2537 = vmatmul.mubr.f32.gmra.mrb[0].mxu0 %v2208
  %v2538 = vpop.f32.mrb[0].mxu0
  %v2539 = vadd.f32 0.0, %v2538
  %v2540 = vpop.f32.mrb[0].mxu0
  %2541 = vmatprep.mubr.f32.mxu0 0.0
  %2542 = vmatmul.mubr.f32.gmra.mrb[0].mxu0 %v2211
  %v2543 = vpop.f32.mrb[0].mxu0
  %v2544 = vadd.f32 0.0, %v2543
  %v2545 = vpop.f32.mrb[0].mxu0
  %2546 = vmatprep.mubr.f32.mxu0 0.0
  %2547 = vmatmul.mubr.f32.gmra.mrb[0].mxu0 %v2214
  %v2548 = vpop.f32.mrb[0].mxu0
  %v2549 = vadd.f32 0.0, %v2548
  %v2550 = vpop.f32.mrb[0].mxu0
  %2551 = vmatprep.mubr.f32.mxu0 0.0
  %2552 = vmatmul.mubr.f32.gmra.mrb[0].mxu0 %v2217
  %v2553 = vpop.f32.mrb[0].mxu0
  %v2554 = vadd.f32 0.0, %v2553
  %v2555 = vpop.f32.mrb[0].mxu0
  %2556 = vmatprep.mubr.f32.mxu0 0.0
  %2557 = vmatmul.mubr.f32.gmra.mrb[0].mxu0 %v2220
  %v2558 = vpop.f32.mrb[0].mxu0
  %v2559 = vadd.f32 0.0, %v2558
  %v2560 = vpop.f32.mrb[0].mxu0
  %2561 = vmatprep.mubr.f32.mxu0 0.0
  %2562 = vmatmul.mubr.f32.gmra.mrb[0].mxu0 %v2223
  %v2563 = vpop.f32.mrb[0].mxu0
  %v2564 = vadd.f32 0.0, %v2563
  %v2565 = vpop.f32.mrb[0].mxu0
  %2566 = vmatprep.mubr.f32.mxu0 0.0
  %2567 = vmatmul.mubr.f32.gmra.mrb[0].mxu0 %v2226
  %v2568 = vpop.f32.mrb[0].mxu0
  %v2569 = vadd.f32 0.0, %v2568
  %v2570 = vpop.f32.mrb[0].mxu0
  %2571 = vdwg.mxu0
  %v2573 = vsel %vm224, %v2193, 0
  %2575 = vmatprep.subr.mxu0 0.0
  %2576 = vmatpush1.msra.mxu0 %v2573
  %2577 = vmatprep.subr.mxu0 0.0
  %2578 = vmatpush1.msra.mxu0 0.0
  %2579 = vmatprep.subr.mxu0 0.0
  %2580 = vmatpush1.msra.mxu0 0.0
  %2581 = vmatprep.subr.mxu0 0.0
  %2582 = vmatpush1.msra.mxu0 0.0
  %2583 = vmatprep.subr.mxu0 0.0
  %2584 = vmatpush1.msra.mxu0 0.0
  %2585 = vmatprep.subr.mxu0 0.0
  %2586 = vmatpush1.msra.mxu0 0.0
  %2587 = vmatprep.subr.mxu0 0.0
  %2588 = vmatpush1.msra.mxu0 0.0
  %2589 = vmatprep.subr.mxu0 0.0
  %2590 = vmatpush1.msra.mxu0 0.0
  %2591 = vmatprep.subr.mxu0 0.0
  %2592 = vmatpush1.msra.mxu0 0.0
  %2593 = vmatprep.subr.mxu0 0.0
  %2594 = vmatpush1.msra.mxu0 0.0
  %2595 = vmatprep.subr.mxu0 0.0
  %2596 = vmatpush1.msra.mxu0 0.0
  %2597 = vmatprep.subr.mxu0 0.0
  %2598 = vmatpush1.msra.mxu0 0.0
  %2599 = vmatprep.subr.mxu0 0.0
  %2600 = vmatpush1.msra.mxu0 0.0
  %2601 = vmatprep.subr.mxu0 0.0
  %2602 = vmatpush1.msra.mxu0 0.0
  %2603 = vmatprep.subr.mxu0 0.0
  %2604 = vmatpush1.msra.mxu0 0.0
  %2605 = vmatprep.subr.mxu0 0.0
  %2606 = vmatpush1.msra.mxu0 0.0
  %2607 = vmatprep.subr.mxu0 0.0
  %2608 = vmatpush1.msra.mxu0 0.0
  %2609 = vmatprep.subr.mxu0 0.0
  %2610 = vmatpush1.msra.mxu0 0.0
  %2611 = vmatprep.subr.mxu0 0.0
  %2612 = vmatpush1.msra.mxu0 0.0
  %2613 = vmatprep.subr.mxu0 0.0
  %2614 = vmatpush1.msra.mxu0 0.0
  %2615 = vmatprep.subr.mxu0 0.0
  %2616 = vmatpush1.msra.mxu0 0.0
  %2617 = vmatprep.subr.mxu0 0.0
  %2618 = vmatpush1.msra.mxu0 0.0
  %2619 = vmatprep.subr.mxu0 0.0
  %2620 = vmatpush1.msra.mxu0 0.0
  %2621 = vmatprep.subr.mxu0 0.0
  %2622 = vmatpush1.msra.mxu0 0.0
  %2623 = vmatprep.subr.mxu0 0.0
  %2624 = vmatpush1.msra.mxu0 0.0
  %2625 = vmatprep.subr.mxu0 0.0
  %2626 = vmatpush1.msra.mxu0 0.0
  %2627 = vmatprep.subr.mxu0 0.0
  %2628 = vmatpush1.msra.mxu0 0.0
  %2629 = vmatprep.subr.mxu0 0.0
  %2630 = vmatpush1.msra.mxu0 0.0
  %2631 = vmatprep.subr.mxu0 0.0
  %2632 = vmatpush1.msra.mxu0 0.0
  %2633 = vmatprep.subr.mxu0 0.0
  %2634 = vmatpush1.msra.mxu0 0.0
  %2635 = vmatprep.subr.mxu0 0.0
  %2636 = vmatpush1.msra.mxu0 0.0
  %2637 = vmatprep.subr.mxu0 0.0
  %2638 = vmatpush1.msra.mxu0 0.0
  %2639 = vmatprep.mubr.f32.mxu0 0.0
  %2640 = vmatmul.mubr.f32.gmra.mrb[0].mxu0 %v2053
  %v2641 = vpop.f32.mrb[0].mxu0
  %v2642 = vadd.f32 %v2534, %v2641
  %v2643 = vpop.f32.mrb[0].mxu0
  %2644 = vmatprep.mubr.f32.mxu0 0.0
  %2645 = vmatmul.mubr.f32.gmra.mrb[0].mxu0 %v2056
  %v2646 = vpop.f32.mrb[0].mxu0
  %v2647 = vadd.f32 %v2539, %v2646
  %v2648 = vpop.f32.mrb[0].mxu0
  %2649 = vmatprep.mubr.f32.mxu0 0.0
  %2650 = vmatmul.mubr.f32.gmra.mrb[0].mxu0 %v2059
  %v2651 = vpop.f32.mrb[0].mxu0
  %v2652 = vadd.f32 %v2544, %v2651
  %v2653 = vpop.f32.mrb[0].mxu0
  %2654 = vmatprep.mubr.f32.mxu0 0.0
  %2655 = vmatmul.mubr.f32.gmra.mrb[0].mxu0 %v2062
  %v2656 = vpop.f32.mrb[0].mxu0
  %v2657 = vadd.f32 %v2549, %v2656
  %v2658 = vpop.f32.mrb[0].mxu0
  %2659 = vmatprep.mubr.f32.mxu0 0.0
  %2660 = vmatmul.mubr.f32.gmra.mrb[0].mxu0 %v2065
  %v2661 = vpop.f32.mrb[0].mxu0
  %v2662 = vadd.f32 %v2554, %v2661
  %v2663 = vpop.f32.mrb[0].mxu0
  %2664 = vmatprep.mubr.f32.mxu0 0.0
  %2665 = vmatmul.mubr.f32.gmra.mrb[0].mxu0 %v2068
  %v2666 = vpop.f32.mrb[0].mxu0
  %v2667 = vadd.f32 %v2559, %v2666
  %v2668 = vpop.f32.mrb[0].mxu0
  %2669 = vmatprep.mubr.f32.mxu0 0.0
  %2670 = vmatmul.mubr.f32.gmra.mrb[0].mxu0 %v2071
  %v2671 = vpop.f32.mrb[0].mxu0
  %v2672 = vadd.f32 %v2564, %v2671
  %v2673 = vpop.f32.mrb[0].mxu0
  %2674 = vmatprep.mubr.f32.mxu0 0.0
  %2675 = vmatmul.mubr.f32.gmra.mrb[0].mxu0 %v2074
  %v2676 = vpop.f32.mrb[0].mxu0
  %v2677 = vadd.f32 %v2569, %v2676
  %v2678 = vpop.f32.mrb[0].mxu0
  %2679 = vdwg.mxu0
  %s2680 = scalar_lea.vmem %s11, 96
  %v2681 = vld [vmem:[%s2680] sm:$0x3f]
  %v2682 = vld [vmem:[#allocation2 + $0x11] sm:$0xff]
  %v2683 = vld [vmem:[#allocation2 + $0x19] sm:$0xff]
  %v2684 = vld [vmem:[#allocation2 + $0x21] sm:$0xff]
  %v2685 = vld [vmem:[#allocation2 + $0x29] sm:$0xff]
  %v2686 = vld [vmem:[#allocation2 + $0x31] sm:$0xff]
  %v2687 = vld [vmem:[#allocation2 + $0x39] sm:$0xff]
  %v2688 = vld [vmem:[#allocation2 + $0x41] sm:$0xff]
  %v2689 = vld [vmem:[#allocation2 + $0x49] sm:$0xff]
  %v2690 = vsel %vm1776, %v2682, 0.0
  %v2691 = vsel %vm1777, %v2683, 0.0
  %v2692 = vsel %vm1778, %v2684, 0.0
  %v2693 = vsel %vm1779, %v2685, 0.0
  %v2694 = vsel %vm1780, %v2686, 0.0
  %v2695 = vsel %vm1781, %v2687, 0.0
  %v2696 = vsel %vm1782, %v2688, 0.0
  %v2697 = vsel %vm1783, %v2689, 0.0
  %s2698 = scalar_lea.vmem %s11, 56
  %v2699 = vld [vmem:[%s2698] sm:$0x3f]
  %v2701 = vsel %vm80, %v2690, 0
  %v2704 = vsel %vm80, %v2691, 0
  %v2707 = vsel %vm80, %v2692, 0
  %v2710 = vsel %vm80, %v2693, 0
  %v2713 = vsel %vm80, %v2694, 0
  %v2716 = vsel %vm80, %v2695, 0
  %v2719 = vsel %vm80, %v2696, 0
  %v2722 = vsel %vm80, %v2697, 0
  %v2725 = vsel %vm224, %v2699, 0
  %2727 = vmatprep.subr.mxu0 0.0
  %2728 = vmatpush1.msra.mxu0 %v2725
  %2729 = vmatprep.subr.mxu0 0.0
  %2730 = vmatpush1.msra.mxu0 0.0
  %2731 = vmatprep.subr.mxu0 0.0
  %2732 = vmatpush1.msra.mxu0 0.0
  %2733 = vmatprep.subr.mxu0 0.0
  %2734 = vmatpush1.msra.mxu0 0.0
  %2735 = vmatprep.subr.mxu0 0.0
  %2736 = vmatpush1.msra.mxu0 0.0
  %2737 = vmatprep.subr.mxu0 0.0
  %2738 = vmatpush1.msra.mxu0 0.0
  %2739 = vmatprep.subr.mxu0 0.0
  %2740 = vmatpush1.msra.mxu0 0.0
  %2741 = vmatprep.subr.mxu0 0.0
  %2742 = vmatpush1.msra.mxu0 0.0
  %2743 = vmatprep.subr.mxu0 0.0
  %2744 = vmatpush1.msra.mxu0 0.0
  %2745 = vmatprep.subr.mxu0 0.0
  %2746 = vmatpush1.msra.mxu0 0.0
  %2747 = vmatprep.subr.mxu0 0.0
  %2748 = vmatpush1.msra.mxu0 0.0
  %2749 = vmatprep.subr.mxu0 0.0
  %2750 = vmatpush1.msra.mxu0 0.0
  %2751 = vmatprep.subr.mxu0 0.0
  %2752 = vmatpush1.msra.mxu0 0.0
  %2753 = vmatprep.subr.mxu0 0.0
  %2754 = vmatpush1.msra.mxu0 0.0
  %2755 = vmatprep.subr.mxu0 0.0
  %2756 = vmatpush1.msra.mxu0 0.0
  %2757 = vmatprep.subr.mxu0 0.0
  %2758 = vmatpush1.msra.mxu0 0.0
  %2759 = vmatprep.subr.mxu0 0.0
  %2760 = vmatpush1.msra.mxu0 0.0
  %2761 = vmatprep.subr.mxu0 0.0
  %2762 = vmatpush1.msra.mxu0 0.0
  %2763 = vmatprep.subr.mxu0 0.0
  %2764 = vmatpush1.msra.mxu0 0.0
  %2765 = vmatprep.subr.mxu0 0.0
  %2766 = vmatpush1.msra.mxu0 0.0
  %2767 = vmatprep.subr.mxu0 0.0
  %2768 = vmatpush1.msra.mxu0 0.0
  %2769 = vmatprep.subr.mxu0 0.0
  %2770 = vmatpush1.msra.mxu0 0.0
  %2771 = vmatprep.subr.mxu0 0.0
  %2772 = vmatpush1.msra.mxu0 0.0
  %2773 = vmatprep.subr.mxu0 0.0
  %2774 = vmatpush1.msra.mxu0 0.0
  %2775 = vmatprep.subr.mxu0 0.0
  %2776 = vmatpush1.msra.mxu0 0.0
  %2777 = vmatprep.subr.mxu0 0.0
  %2778 = vmatpush1.msra.mxu0 0.0
  %2779 = vmatprep.subr.mxu0 0.0
  %2780 = vmatpush1.msra.mxu0 0.0
  %2781 = vmatprep.subr.mxu0 0.0
  %2782 = vmatpush1.msra.mxu0 0.0
  %2783 = vmatprep.subr.mxu0 0.0
  %2784 = vmatpush1.msra.mxu0 0.0
  %2785 = vmatprep.subr.mxu0 0.0
  %2786 = vmatpush1.msra.mxu0 0.0
  %2787 = vmatprep.subr.mxu0 0.0
  %2788 = vmatpush1.msra.mxu0 0.0
  %2789 = vmatprep.subr.mxu0 0.0
  %2790 = vmatpush1.msra.mxu0 0.0
  %2791 = vmatprep.mubr.f32.mxu0 0.0
  %2792 = vmatmul.mubr.f32.gmra.mrb[0].mxu0 %v2701
  %v2793 = vpop.f32.mrb[0].mxu0
  %v2794 = vadd.f32 0.0, %v2793
  %v2795 = vpop.f32.mrb[0].mxu0
  %2796 = vmatprep.mubr.f32.mxu0 0.0
  %2797 = vmatmul.mubr.f32.gmra.mrb[0].mxu0 %v2704
  %v2798 = vpop.f32.mrb[0].mxu0
  %v2799 = vadd.f32 0.0, %v2798
  %v2800 = vpop.f32.mrb[0].mxu0
  %2801 = vmatprep.mubr.f32.mxu0 0.0
  %2802 = vmatmul.mubr.f32.gmra.mrb[0].mxu0 %v2707
  %v2803 = vpop.f32.mrb[0].mxu0
  %v2804 = vadd.f32 0.0, %v2803
  %v2805 = vpop.f32.mrb[0].mxu0
  %2806 = vmatprep.mubr.f32.mxu0 0.0
  %2807 = vmatmul.mubr.f32.gmra.mrb[0].mxu0 %v2710
  %v2808 = vpop.f32.mrb[0].mxu0
  %v2809 = vadd.f32 0.0, %v2808
  %v2810 = vpop.f32.mrb[0].mxu0
  %2811 = vmatprep.mubr.f32.mxu0 0.0
  %2812 = vmatmul.mubr.f32.gmra.mrb[0].mxu0 %v2713
  %v2813 = vpop.f32.mrb[0].mxu0
  %v2814 = vadd.f32 0.0, %v2813
  %v2815 = vpop.f32.mrb[0].mxu0
  %2816 = vmatprep.mubr.f32.mxu0 0.0
  %2817 = vmatmul.mubr.f32.gmra.mrb[0].mxu0 %v2716
  %v2818 = vpop.f32.mrb[0].mxu0
  %v2819 = vadd.f32 0.0, %v2818
  %v2820 = vpop.f32.mrb[0].mxu0
  %2821 = vmatprep.mubr.f32.mxu0 0.0
  %2822 = vmatmul.mubr.f32.gmra.mrb[0].mxu0 %v2719
  %v2823 = vpop.f32.mrb[0].mxu0
  %v2824 = vadd.f32 0.0, %v2823
  %v2825 = vpop.f32.mrb[0].mxu0
  %2826 = vmatprep.mubr.f32.mxu0 0.0
  %2827 = vmatmul.mubr.f32.gmra.mrb[0].mxu0 %v2722
  %v2828 = vpop.f32.mrb[0].mxu0
  %v2829 = vadd.f32 0.0, %v2828
  %v2830 = vpop.f32.mrb[0].mxu0
  %2831 = vdwg.mxu0
  %v2832 = vadd.f32 %v2454, %v2794
  %v2833 = vadd.f32 %v2455, %v2799
  %v2834 = vadd.f32 %v2456, %v2804
  %v2835 = vadd.f32 %v2457, %v2809
  %v2836 = vadd.f32 %v2458, %v2814
  %v2837 = vadd.f32 %v2459, %v2819
  %v2838 = vadd.f32 %v2460, %v2824
  %v2839 = vadd.f32 %v2461, %v2829
  %s2840 = scalar_lea.vmem %s11, 104
  %v2841 = vld [vmem:[%s2840] sm:$0x3f]
  %v2843 = vsel %vm224, %v2841, 0
  %2845 = vmatprep.subr.mxu0 0.0
  %2846 = vmatpush1.msra.mxu0 %v2843
  %2847 = vmatprep.subr.mxu0 0.0
  %2848 = vmatpush1.msra.mxu0 0.0
  %2849 = vmatprep.subr.mxu0 0.0
  %2850 = vmatpush1.msra.mxu0 0.0
  %2851 = vmatprep.subr.mxu0 0.0
  %2852 = vmatpush1.msra.mxu0 0.0
  %2853 = vmatprep.subr.mxu0 0.0
  %2854 = vmatpush1.msra.mxu0 0.0
  %2855 = vmatprep.subr.mxu0 0.0
  %2856 = vmatpush1.msra.mxu0 0.0
  %2857 = vmatprep.subr.mxu0 0.0
  %2858 = vmatpush1.msra.mxu0 0.0
  %2859 = vmatprep.subr.mxu0 0.0
  %2860 = vmatpush1.msra.mxu0 0.0
  %2861 = vmatprep.subr.mxu0 0.0
  %2862 = vmatpush1.msra.mxu0 0.0
  %2863 = vmatprep.subr.mxu0 0.0
  %2864 = vmatpush1.msra.mxu0 0.0
  %2865 = vmatprep.subr.mxu0 0.0
  %2866 = vmatpush1.msra.mxu0 0.0
  %2867 = vmatprep.subr.mxu0 0.0
  %2868 = vmatpush1.msra.mxu0 0.0
  %2869 = vmatprep.subr.mxu0 0.0
  %2870 = vmatpush1.msra.mxu0 0.0
  %2871 = vmatprep.subr.mxu0 0.0
  %2872 = vmatpush1.msra.mxu0 0.0
  %2873 = vmatprep.subr.mxu0 0.0
  %2874 = vmatpush1.msra.mxu0 0.0
  %2875 = vmatprep.subr.mxu0 0.0
  %2876 = vmatpush1.msra.mxu0 0.0
  %2877 = vmatprep.subr.mxu0 0.0
  %2878 = vmatpush1.msra.mxu0 0.0
  %2879 = vmatprep.subr.mxu0 0.0
  %2880 = vmatpush1.msra.mxu0 0.0
  %2881 = vmatprep.subr.mxu0 0.0
  %2882 = vmatpush1.msra.mxu0 0.0
  %2883 = vmatprep.subr.mxu0 0.0
  %2884 = vmatpush1.msra.mxu0 0.0
  %2885 = vmatprep.subr.mxu0 0.0
  %2886 = vmatpush1.msra.mxu0 0.0
  %2887 = vmatprep.subr.mxu0 0.0
  %2888 = vmatpush1.msra.mxu0 0.0
  %2889 = vmatprep.subr.mxu0 0.0
  %2890 = vmatpush1.msra.mxu0 0.0
  %2891 = vmatprep.subr.mxu0 0.0
  %2892 = vmatpush1.msra.mxu0 0.0
  %2893 = vmatprep.subr.mxu0 0.0
  %2894 = vmatpush1.msra.mxu0 0.0
  %2895 = vmatprep.subr.mxu0 0.0
  %2896 = vmatpush1.msra.mxu0 0.0
  %2897 = vmatprep.subr.mxu0 0.0
  %2898 = vmatpush1.msra.mxu0 0.0
  %2899 = vmatprep.subr.mxu0 0.0
  %2900 = vmatpush1.msra.mxu0 0.0
  %2901 = vmatprep.subr.mxu0 0.0
  %2902 = vmatpush1.msra.mxu0 0.0
  %2903 = vmatprep.subr.mxu0 0.0
  %2904 = vmatpush1.msra.mxu0 0.0
  %2905 = vmatprep.subr.mxu0 0.0
  %2906 = vmatpush1.msra.mxu0 0.0
  %2907 = vmatprep.subr.mxu0 0.0
  %2908 = vmatpush1.msra.mxu0 0.0
  %2909 = vmatprep.mubr.f32.mxu0 0.0
  %2910 = vmatmul.mubr.f32.gmra.mrb[0].mxu0 %v2701
  %v2911 = vpop.f32.mrb[0].mxu0
  %v2912 = vadd.f32 0.0, %v2911
  %v2913 = vpop.f32.mrb[0].mxu0
  %2914 = vmatprep.mubr.f32.mxu0 0.0
  %2915 = vmatmul.mubr.f32.gmra.mrb[0].mxu0 %v2704
  %v2916 = vpop.f32.mrb[0].mxu0
  %v2917 = vadd.f32 0.0, %v2916
  %v2918 = vpop.f32.mrb[0].mxu0
  %2919 = vmatprep.mubr.f32.mxu0 0.0
  %2920 = vmatmul.mubr.f32.gmra.mrb[0].mxu0 %v2707
  %v2921 = vpop.f32.mrb[0].mxu0
  %v2922 = vadd.f32 0.0, %v2921
  %v2923 = vpop.f32.mrb[0].mxu0
  %2924 = vmatprep.mubr.f32.mxu0 0.0
  %2925 = vmatmul.mubr.f32.gmra.mrb[0].mxu0 %v2710
  %v2926 = vpop.f32.mrb[0].mxu0
  %v2927 = vadd.f32 0.0, %v2926
  %v2928 = vpop.f32.mrb[0].mxu0
  %2929 = vmatprep.mubr.f32.mxu0 0.0
  %2930 = vmatmul.mubr.f32.gmra.mrb[0].mxu0 %v2713
  %v2931 = vpop.f32.mrb[0].mxu0
  %v2932 = vadd.f32 0.0, %v2931
  %v2933 = vpop.f32.mrb[0].mxu0
  %2934 = vmatprep.mubr.f32.mxu0 0.0
  %2935 = vmatmul.mubr.f32.gmra.mrb[0].mxu0 %v2716
  %v2936 = vpop.f32.mrb[0].mxu0
  %v2937 = vadd.f32 0.0, %v2936
  %v2938 = vpop.f32.mrb[0].mxu0
  %2939 = vmatprep.mubr.f32.mxu0 0.0
  %2940 = vmatmul.mubr.f32.gmra.mrb[0].mxu0 %v2719
  %v2941 = vpop.f32.mrb[0].mxu0
  %v2942 = vadd.f32 0.0, %v2941
  %v2943 = vpop.f32.mrb[0].mxu0
  %2944 = vmatprep.mubr.f32.mxu0 0.0
  %2945 = vmatmul.mubr.f32.gmra.mrb[0].mxu0 %v2722
  %v2946 = vpop.f32.mrb[0].mxu0
  %v2947 = vadd.f32 0.0, %v2946
  %v2948 = vpop.f32.mrb[0].mxu0
  %2949 = vdwg.mxu0
  %v2951 = vsel %vm224, %v2681, 0
  %2953 = vmatprep.subr.mxu0 0.0
  %2954 = vmatpush1.msra.mxu0 %v2951
  %2955 = vmatprep.subr.mxu0 0.0
  %2956 = vmatpush1.msra.mxu0 0.0
  %2957 = vmatprep.subr.mxu0 0.0
  %2958 = vmatpush1.msra.mxu0 0.0
  %2959 = vmatprep.subr.mxu0 0.0
  %2960 = vmatpush1.msra.mxu0 0.0
  %2961 = vmatprep.subr.mxu0 0.0
  %2962 = vmatpush1.msra.mxu0 0.0
  %2963 = vmatprep.subr.mxu0 0.0
  %2964 = vmatpush1.msra.mxu0 0.0
  %2965 = vmatprep.subr.mxu0 0.0
  %2966 = vmatpush1.msra.mxu0 0.0
  %2967 = vmatprep.subr.mxu0 0.0
  %2968 = vmatpush1.msra.mxu0 0.0
  %2969 = vmatprep.subr.mxu0 0.0
  %2970 = vmatpush1.msra.mxu0 0.0
  %2971 = vmatprep.subr.mxu0 0.0
  %2972 = vmatpush1.msra.mxu0 0.0
  %2973 = vmatprep.subr.mxu0 0.0
  %2974 = vmatpush1.msra.mxu0 0.0
  %2975 = vmatprep.subr.mxu0 0.0
  %2976 = vmatpush1.msra.mxu0 0.0
  %2977 = vmatprep.subr.mxu0 0.0
  %2978 = vmatpush1.msra.mxu0 0.0
  %2979 = vmatprep.subr.mxu0 0.0
  %2980 = vmatpush1.msra.mxu0 0.0
  %2981 = vmatprep.subr.mxu0 0.0
  %2982 = vmatpush1.msra.mxu0 0.0
  %2983 = vmatprep.subr.mxu0 0.0
  %2984 = vmatpush1.msra.mxu0 0.0
  %2985 = vmatprep.subr.mxu0 0.0
  %2986 = vmatpush1.msra.mxu0 0.0
  %2987 = vmatprep.subr.mxu0 0.0
  %2988 = vmatpush1.msra.mxu0 0.0
  %2989 = vmatprep.subr.mxu0 0.0
  %2990 = vmatpush1.msra.mxu0 0.0
  %2991 = vmatprep.subr.mxu0 0.0
  %2992 = vmatpush1.msra.mxu0 0.0
  %2993 = vmatprep.subr.mxu0 0.0
  %2994 = vmatpush1.msra.mxu0 0.0
  %2995 = vmatprep.subr.mxu0 0.0
  %2996 = vmatpush1.msra.mxu0 0.0
  %2997 = vmatprep.subr.mxu0 0.0
  %2998 = vmatpush1.msra.mxu0 0.0
  %2999 = vmatprep.subr.mxu0 0.0
  %3000 = vmatpush1.msra.mxu0 0.0
  %3001 = vmatprep.subr.mxu0 0.0
  %3002 = vmatpush1.msra.mxu0 0.0
  %3003 = vmatprep.subr.mxu0 0.0
  %3004 = vmatpush1.msra.mxu0 0.0
  %3005 = vmatprep.subr.mxu0 0.0
  %3006 = vmatpush1.msra.mxu0 0.0
  %3007 = vmatprep.subr.mxu0 0.0
  %3008 = vmatpush1.msra.mxu0 0.0
  %3009 = vmatprep.subr.mxu0 0.0
  %3010 = vmatpush1.msra.mxu0 0.0
  %3011 = vmatprep.subr.mxu0 0.0
  %3012 = vmatpush1.msra.mxu0 0.0
  %3013 = vmatprep.subr.mxu0 0.0
  %3014 = vmatpush1.msra.mxu0 0.0
  %3015 = vmatprep.subr.mxu0 0.0
  %3016 = vmatpush1.msra.mxu0 0.0
  %3017 = vmatprep.mubr.f32.mxu0 0.0
  %3018 = vmatmul.mubr.f32.gmra.mrb[0].mxu0 %v2205
  %v3019 = vpop.f32.mrb[0].mxu0
  %v3020 = vadd.f32 %v2912, %v3019
  %v3021 = vpop.f32.mrb[0].mxu0
  %3022 = vmatprep.mubr.f32.mxu0 0.0
  %3023 = vmatmul.mubr.f32.gmra.mrb[0].mxu0 %v2208
  %v3024 = vpop.f32.mrb[0].mxu0
  %v3025 = vadd.f32 %v2917, %v3024
  %v3026 = vpop.f32.mrb[0].mxu0
  %3027 = vmatprep.mubr.f32.mxu0 0.0
  %3028 = vmatmul.mubr.f32.gmra.mrb[0].mxu0 %v2211
  %v3029 = vpop.f32.mrb[0].mxu0
  %v3030 = vadd.f32 %v2922, %v3029
  %v3031 = vpop.f32.mrb[0].mxu0
  %3032 = vmatprep.mubr.f32.mxu0 0.0
  %3033 = vmatmul.mubr.f32.gmra.mrb[0].mxu0 %v2214
  %v3034 = vpop.f32.mrb[0].mxu0
  %v3035 = vadd.f32 %v2927, %v3034
  %v3036 = vpop.f32.mrb[0].mxu0
  %3037 = vmatprep.mubr.f32.mxu0 0.0
  %3038 = vmatmul.mubr.f32.gmra.mrb[0].mxu0 %v2217
  %v3039 = vpop.f32.mrb[0].mxu0
  %v3040 = vadd.f32 %v2932, %v3039
  %v3041 = vpop.f32.mrb[0].mxu0
  %3042 = vmatprep.mubr.f32.mxu0 0.0
  %3043 = vmatmul.mubr.f32.gmra.mrb[0].mxu0 %v2220
  %v3044 = vpop.f32.mrb[0].mxu0
  %v3045 = vadd.f32 %v2937, %v3044
  %v3046 = vpop.f32.mrb[0].mxu0
  %3047 = vmatprep.mubr.f32.mxu0 0.0
  %3048 = vmatmul.mubr.f32.gmra.mrb[0].mxu0 %v2223
  %v3049 = vpop.f32.mrb[0].mxu0
  %v3050 = vadd.f32 %v2942, %v3049
  %v3051 = vpop.f32.mrb[0].mxu0
  %3052 = vmatprep.mubr.f32.mxu0 0.0
  %3053 = vmatmul.mubr.f32.gmra.mrb[0].mxu0 %v2226
  %v3054 = vpop.f32.mrb[0].mxu0
  %v3055 = vadd.f32 %v2947, %v3054
  %v3056 = vpop.f32.mrb[0].mxu0
  %3057 = vdwg.mxu0
  %v3058 = vld [vmem:[#allocation2 + $0x17] sm:$0xff]
  %v3059 = vld [vmem:[#allocation2 + $0x1f] sm:$0xff]
  %v3060 = vld [vmem:[#allocation2 + $0x27] sm:$0xff]
  %v3061 = vld [vmem:[#allocation2 + $0x2f] sm:$0xff]
  %v3062 = vld [vmem:[#allocation2 + $0x37] sm:$0xff]
  %v3063 = vld [vmem:[#allocation2 + $0x3f] sm:$0xff]
  %v3064 = vld [vmem:[#allocation2 + $0x47] sm:$0xff]
  %v3065 = vld [vmem:[#allocation2 + $0x4f] sm:$0xff]
  %v3066 = vsel %vm1475, %v3058, 0.0
  %v3067 = vsel %vm1476, %v3059, 0.0
  %v3068 = vsel %vm1477, %v3060, 0.0
  %v3069 = vsel %vm1478, %v3061, 0.0
  %v3070 = vsel %vm1479, %v3062, 0.0
  %v3071 = vsel %vm1480, %v3063, 0.0
  %v3072 = vsel %vm1481, %v3064, 0.0
  %v3073 = vsel %vm1482, %v3065, 0.0
  %s3074 = scalar_lea.vmem %s11, 80
  %v3075 = vld [vmem:[%s3074] sm:$0x3f]
  %v3077 = vsel %vm80, %v3066, 0
  %v3080 = vsel %vm80, %v3067, 0
  %v3083 = vsel %vm80, %v3068, 0
  %v3086 = vsel %vm80, %v3069, 0
  %v3089 = vsel %vm80, %v3070, 0
  %v3092 = vsel %vm80, %v3071, 0
  %v3095 = vsel %vm80, %v3072, 0
  %v3098 = vsel %vm80, %v3073, 0
  %v3101 = vsel %vm224, %v3075, 0
  %3103 = vmatprep.subr.mxu0 0.0
  %3104 = vmatpush1.msra.mxu0 %v3101
  %3105 = vmatprep.subr.mxu0 0.0
  %3106 = vmatpush1.msra.mxu0 0.0
  %3107 = vmatprep.subr.mxu0 0.0
  %3108 = vmatpush1.msra.mxu0 0.0
  %3109 = vmatprep.subr.mxu0 0.0
  %3110 = vmatpush1.msra.mxu0 0.0
  %3111 = vmatprep.subr.mxu0 0.0
  %3112 = vmatpush1.msra.mxu0 0.0
  %3113 = vmatprep.subr.mxu0 0.0
  %3114 = vmatpush1.msra.mxu0 0.0
  %3115 = vmatprep.subr.mxu0 0.0
  %3116 = vmatpush1.msra.mxu0 0.0
  %3117 = vmatprep.subr.mxu0 0.0
  %3118 = vmatpush1.msra.mxu0 0.0
  %3119 = vmatprep.subr.mxu0 0.0
  %3120 = vmatpush1.msra.mxu0 0.0
  %3121 = vmatprep.subr.mxu0 0.0
  %3122 = vmatpush1.msra.mxu0 0.0
  %3123 = vmatprep.subr.mxu0 0.0
  %3124 = vmatpush1.msra.mxu0 0.0
  %3125 = vmatprep.subr.mxu0 0.0
  %3126 = vmatpush1.msra.mxu0 0.0
  %3127 = vmatprep.subr.mxu0 0.0
  %3128 = vmatpush1.msra.mxu0 0.0
  %3129 = vmatprep.subr.mxu0 0.0
  %3130 = vmatpush1.msra.mxu0 0.0
  %3131 = vmatprep.subr.mxu0 0.0
  %3132 = vmatpush1.msra.mxu0 0.0
  %3133 = vmatprep.subr.mxu0 0.0
  %3134 = vmatpush1.msra.mxu0 0.0
  %3135 = vmatprep.subr.mxu0 0.0
  %3136 = vmatpush1.msra.mxu0 0.0
  %3137 = vmatprep.subr.mxu0 0.0
  %3138 = vmatpush1.msra.mxu0 0.0
  %3139 = vmatprep.subr.mxu0 0.0
  %3140 = vmatpush1.msra.mxu0 0.0
  %3141 = vmatprep.subr.mxu0 0.0
  %3142 = vmatpush1.msra.mxu0 0.0
  %3143 = vmatprep.subr.mxu0 0.0
  %3144 = vmatpush1.msra.mxu0 0.0
  %3145 = vmatprep.subr.mxu0 0.0
  %3146 = vmatpush1.msra.mxu0 0.0
  %3147 = vmatprep.subr.mxu0 0.0
  %3148 = vmatpush1.msra.mxu0 0.0
  %3149 = vmatprep.subr.mxu0 0.0
  %3150 = vmatpush1.msra.mxu0 0.0
  %3151 = vmatprep.subr.mxu0 0.0
  %3152 = vmatpush1.msra.mxu0 0.0
  %3153 = vmatprep.subr.mxu0 0.0
  %3154 = vmatpush1.msra.mxu0 0.0
  %3155 = vmatprep.subr.mxu0 0.0
  %3156 = vmatpush1.msra.mxu0 0.0
  %3157 = vmatprep.subr.mxu0 0.0
  %3158 = vmatpush1.msra.mxu0 0.0
  %3159 = vmatprep.subr.mxu0 0.0
  %3160 = vmatpush1.msra.mxu0 0.0
  %3161 = vmatprep.subr.mxu0 0.0
  %3162 = vmatpush1.msra.mxu0 0.0
  %3163 = vmatprep.subr.mxu0 0.0
  %3164 = vmatpush1.msra.mxu0 0.0
  %3165 = vmatprep.subr.mxu0 0.0
  %3166 = vmatpush1.msra.mxu0 0.0
  %3167 = vmatprep.mubr.f32.mxu0 0.0
  %3168 = vmatmul.mubr.f32.gmra.mrb[0].mxu0 %v3077
  %v3169 = vpop.f32.mrb[0].mxu0
  %v3170 = vadd.f32 0.0, %v3169
  %v3171 = vpop.f32.mrb[0].mxu0
  %3172 = vmatprep.mubr.f32.mxu0 0.0
  %3173 = vmatmul.mubr.f32.gmra.mrb[0].mxu0 %v3080
  %v3174 = vpop.f32.mrb[0].mxu0
  %v3175 = vadd.f32 0.0, %v3174
  %v3176 = vpop.f32.mrb[0].mxu0
  %3177 = vmatprep.mubr.f32.mxu0 0.0
  %3178 = vmatmul.mubr.f32.gmra.mrb[0].mxu0 %v3083
  %v3179 = vpop.f32.mrb[0].mxu0
  %v3180 = vadd.f32 0.0, %v3179
  %v3181 = vpop.f32.mrb[0].mxu0
  %3182 = vmatprep.mubr.f32.mxu0 0.0
  %3183 = vmatmul.mubr.f32.gmra.mrb[0].mxu0 %v3086
  %v3184 = vpop.f32.mrb[0].mxu0
  %v3185 = vadd.f32 0.0, %v3184
  %v3186 = vpop.f32.mrb[0].mxu0
  %3187 = vmatprep.mubr.f32.mxu0 0.0
  %3188 = vmatmul.mubr.f32.gmra.mrb[0].mxu0 %v3089
  %v3189 = vpop.f32.mrb[0].mxu0
  %v3190 = vadd.f32 0.0, %v3189
  %v3191 = vpop.f32.mrb[0].mxu0
  %3192 = vmatprep.mubr.f32.mxu0 0.0
  %3193 = vmatmul.mubr.f32.gmra.mrb[0].mxu0 %v3092
  %v3194 = vpop.f32.mrb[0].mxu0
  %v3195 = vadd.f32 0.0, %v3194
  %v3196 = vpop.f32.mrb[0].mxu0
  %3197 = vmatprep.mubr.f32.mxu0 0.0
  %3198 = vmatmul.mubr.f32.gmra.mrb[0].mxu0 %v3095
  %v3199 = vpop.f32.mrb[0].mxu0
  %v3200 = vadd.f32 0.0, %v3199
  %v3201 = vpop.f32.mrb[0].mxu0
  %3202 = vmatprep.mubr.f32.mxu0 0.0
  %3203 = vmatmul.mubr.f32.gmra.mrb[0].mxu0 %v3098
  %v3204 = vpop.f32.mrb[0].mxu0
  %v3205 = vadd.f32 0.0, %v3204
  %v3206 = vpop.f32.mrb[0].mxu0
  %3207 = vdwg.mxu0
  %v3208 = vadd.f32 %v2642, %v3170
  %v3209 = vadd.f32 %v2647, %v3175
  %v3210 = vadd.f32 %v2652, %v3180
  %v3211 = vadd.f32 %v2657, %v3185
  %v3212 = vadd.f32 %v2662, %v3190
  %v3213 = vadd.f32 %v2667, %v3195
  %v3214 = vadd.f32 %v2672, %v3200
  %v3215 = vadd.f32 %v2677, %v3205
  %v3216 = vld [vmem:[#allocation2 + $0x18] sm:$0xff]
  %v3217 = vld [vmem:[#allocation2 + $0x20] sm:$0xff]
  %v3218 = vld [vmem:[#allocation2 + $0x28] sm:$0xff]
  %v3219 = vld [vmem:[#allocation2 + $0x30] sm:$0xff]
  %v3220 = vld [vmem:[#allocation2 + $0x38] sm:$0xff]
  %v3221 = vld [vmem:[#allocation2 + $0x40] sm:$0xff]
  %v3222 = vld [vmem:[#allocation2 + $0x48] sm:$0xff]
  %v3223 = vld [vmem:[#allocation2 + $0x50] sm:$0xff]
  %s3224 = scalar_lea.vmem %s11, 88
  %v3225 = vld [vmem:[%s3224] sm:$0x3f]
  %v3227 = vsel %vm80, %v3216, 0
  %v3230 = vsel %vm80, %v3217, 0
  %v3233 = vsel %vm80, %v3218, 0
  %v3236 = vsel %vm80, %v3219, 0
  %v3239 = vsel %vm80, %v3220, 0
  %v3242 = vsel %vm80, %v3221, 0
  %v3245 = vsel %vm80, %v3222, 0
  %v3248 = vsel %vm80, %v3223, 0
  %v3251 = vsel %vm224, %v3225, 0
  %3253 = vmatprep.subr.mxu0 0.0
  %3254 = vmatpush1.msra.mxu0 %v3251
  %3255 = vmatprep.subr.mxu0 0.0
  %3256 = vmatpush1.msra.mxu0 0.0
  %3257 = vmatprep.subr.mxu0 0.0
  %3258 = vmatpush1.msra.mxu0 0.0
  %3259 = vmatprep.subr.mxu0 0.0
  %3260 = vmatpush1.msra.mxu0 0.0
  %3261 = vmatprep.subr.mxu0 0.0
  %3262 = vmatpush1.msra.mxu0 0.0
  %3263 = vmatprep.subr.mxu0 0.0
  %3264 = vmatpush1.msra.mxu0 0.0
  %3265 = vmatprep.subr.mxu0 0.0
  %3266 = vmatpush1.msra.mxu0 0.0
  %3267 = vmatprep.subr.mxu0 0.0
  %3268 = vmatpush1.msra.mxu0 0.0
  %3269 = vmatprep.subr.mxu0 0.0
  %3270 = vmatpush1.msra.mxu0 0.0
  %3271 = vmatprep.subr.mxu0 0.0
  %3272 = vmatpush1.msra.mxu0 0.0
  %3273 = vmatprep.subr.mxu0 0.0
  %3274 = vmatpush1.msra.mxu0 0.0
  %3275 = vmatprep.subr.mxu0 0.0
  %3276 = vmatpush1.msra.mxu0 0.0
  %3277 = vmatprep.subr.mxu0 0.0
  %3278 = vmatpush1.msra.mxu0 0.0
  %3279 = vmatprep.subr.mxu0 0.0
  %3280 = vmatpush1.msra.mxu0 0.0
  %3281 = vmatprep.subr.mxu0 0.0
  %3282 = vmatpush1.msra.mxu0 0.0
  %3283 = vmatprep.subr.mxu0 0.0
  %3284 = vmatpush1.msra.mxu0 0.0
  %3285 = vmatprep.subr.mxu0 0.0
  %3286 = vmatpush1.msra.mxu0 0.0
  %3287 = vmatprep.subr.mxu0 0.0
  %3288 = vmatpush1.msra.mxu0 0.0
  %3289 = vmatprep.subr.mxu0 0.0
  %3290 = vmatpush1.msra.mxu0 0.0
  %3291 = vmatprep.subr.mxu0 0.0
  %3292 = vmatpush1.msra.mxu0 0.0
  %3293 = vmatprep.subr.mxu0 0.0
  %3294 = vmatpush1.msra.mxu0 0.0
  %3295 = vmatprep.subr.mxu0 0.0
  %3296 = vmatpush1.msra.mxu0 0.0
  %3297 = vmatprep.subr.mxu0 0.0
  %3298 = vmatpush1.msra.mxu0 0.0
  %3299 = vmatprep.subr.mxu0 0.0
  %3300 = vmatpush1.msra.mxu0 0.0
  %3301 = vmatprep.subr.mxu0 0.0
  %3302 = vmatpush1.msra.mxu0 0.0
  %3303 = vmatprep.subr.mxu0 0.0
  %3304 = vmatpush1.msra.mxu0 0.0
  %3305 = vmatprep.subr.mxu0 0.0
  %3306 = vmatpush1.msra.mxu0 0.0
  %3307 = vmatprep.subr.mxu0 0.0
  %3308 = vmatpush1.msra.mxu0 0.0
  %3309 = vmatprep.subr.mxu0 0.0
  %3310 = vmatpush1.msra.mxu0 0.0
  %3311 = vmatprep.subr.mxu0 0.0
  %3312 = vmatpush1.msra.mxu0 0.0
  %3313 = vmatprep.subr.mxu0 0.0
  %3314 = vmatpush1.msra.mxu0 0.0
  %3315 = vmatprep.subr.mxu0 0.0
  %3316 = vmatpush1.msra.mxu0 0.0
  %3317 = vmatprep.mubr.f32.mxu0 0.0
  %3318 = vmatmul.mubr.f32.gmra.mrb[0].mxu0 %v3227
  %v3319 = vpop.f32.mrb[0].mxu0
  %v3320 = vadd.f32 0.0, %v3319
  %v3321 = vpop.f32.mrb[0].mxu0
  %3322 = vmatprep.mubr.f32.mxu0 0.0
  %3323 = vmatmul.mubr.f32.gmra.mrb[0].mxu0 %v3230
  %v3324 = vpop.f32.mrb[0].mxu0
  %v3325 = vadd.f32 0.0, %v3324
  %v3326 = vpop.f32.mrb[0].mxu0
  %3327 = vmatprep.mubr.f32.mxu0 0.0
  %3328 = vmatmul.mubr.f32.gmra.mrb[0].mxu0 %v3233
  %v3329 = vpop.f32.mrb[0].mxu0
  %v3330 = vadd.f32 0.0, %v3329
  %v3331 = vpop.f32.mrb[0].mxu0
  %3332 = vmatprep.mubr.f32.mxu0 0.0
  %3333 = vmatmul.mubr.f32.gmra.mrb[0].mxu0 %v3236
  %v3334 = vpop.f32.mrb[0].mxu0
  %v3335 = vadd.f32 0.0, %v3334
  %v3336 = vpop.f32.mrb[0].mxu0
  %3337 = vmatprep.mubr.f32.mxu0 0.0
  %3338 = vmatmul.mubr.f32.gmra.mrb[0].mxu0 %v3239
  %v3339 = vpop.f32.mrb[0].mxu0
  %v3340 = vadd.f32 0.0, %v3339
  %v3341 = vpop.f32.mrb[0].mxu0
  %3342 = vmatprep.mubr.f32.mxu0 0.0
  %3343 = vmatmul.mubr.f32.gmra.mrb[0].mxu0 %v3242
  %v3344 = vpop.f32.mrb[0].mxu0
  %v3345 = vadd.f32 0.0, %v3344
  %v3346 = vpop.f32.mrb[0].mxu0
  %3347 = vmatprep.mubr.f32.mxu0 0.0
  %3348 = vmatmul.mubr.f32.gmra.mrb[0].mxu0 %v3245
  %v3349 = vpop.f32.mrb[0].mxu0
  %v3350 = vadd.f32 0.0, %v3349
  %v3351 = vpop.f32.mrb[0].mxu0
  %3352 = vmatprep.mubr.f32.mxu0 0.0
  %3353 = vmatmul.mubr.f32.gmra.mrb[0].mxu0 %v3248
  %v3354 = vpop.f32.mrb[0].mxu0
  %v3355 = vadd.f32 0.0, %v3354
  %v3356 = vpop.f32.mrb[0].mxu0
  %3357 = vdwg.mxu0
  %v3358 = vadd.f32 %v3208, %v3320
  %v3359 = vadd.f32 %v3209, %v3325
  %v3360 = vadd.f32 %v3210, %v3330
  %v3361 = vadd.f32 %v3211, %v3335
  %v3362 = vadd.f32 %v3212, %v3340
  %v3363 = vadd.f32 %v3213, %v3345
  %v3364 = vadd.f32 %v3214, %v3350
  %v3365 = vadd.f32 %v3215, %v3355
  %s3366 = scalar_lea.vmem %s11, 112
  %v3367 = vld [vmem:[%s3366] sm:$0x3f]
  %v3369 = vsel %vm224, %v3367, 0
  %3371 = vmatprep.subr.mxu0 0.0
  %3372 = vmatpush1.msra.mxu0 %v3369
  %3373 = vmatprep.subr.mxu0 0.0
  %3374 = vmatpush1.msra.mxu0 0.0
  %3375 = vmatprep.subr.mxu0 0.0
  %3376 = vmatpush1.msra.mxu0 0.0
  %3377 = vmatprep.subr.mxu0 0.0
  %3378 = vmatpush1.msra.mxu0 0.0
  %3379 = vmatprep.subr.mxu0 0.0
  %3380 = vmatpush1.msra.mxu0 0.0
  %3381 = vmatprep.subr.mxu0 0.0
  %3382 = vmatpush1.msra.mxu0 0.0
  %3383 = vmatprep.subr.mxu0 0.0
  %3384 = vmatpush1.msra.mxu0 0.0
  %3385 = vmatprep.subr.mxu0 0.0
  %3386 = vmatpush1.msra.mxu0 0.0
  %3387 = vmatprep.subr.mxu0 0.0
  %3388 = vmatpush1.msra.mxu0 0.0
  %3389 = vmatprep.subr.mxu0 0.0
  %3390 = vmatpush1.msra.mxu0 0.0
  %3391 = vmatprep.subr.mxu0 0.0
  %3392 = vmatpush1.msra.mxu0 0.0
  %3393 = vmatprep.subr.mxu0 0.0
  %3394 = vmatpush1.msra.mxu0 0.0
  %3395 = vmatprep.subr.mxu0 0.0
  %3396 = vmatpush1.msra.mxu0 0.0
  %3397 = vmatprep.subr.mxu0 0.0
  %3398 = vmatpush1.msra.mxu0 0.0
  %3399 = vmatprep.subr.mxu0 0.0
  %3400 = vmatpush1.msra.mxu0 0.0
  %3401 = vmatprep.subr.mxu0 0.0
  %3402 = vmatpush1.msra.mxu0 0.0
  %3403 = vmatprep.subr.mxu0 0.0
  %3404 = vmatpush1.msra.mxu0 0.0
  %3405 = vmatprep.subr.mxu0 0.0
  %3406 = vmatpush1.msra.mxu0 0.0
  %3407 = vmatprep.subr.mxu0 0.0
  %3408 = vmatpush1.msra.mxu0 0.0
  %3409 = vmatprep.subr.mxu0 0.0
  %3410 = vmatpush1.msra.mxu0 0.0
  %3411 = vmatprep.subr.mxu0 0.0
  %3412 = vmatpush1.msra.mxu0 0.0
  %3413 = vmatprep.subr.mxu0 0.0
  %3414 = vmatpush1.msra.mxu0 0.0
  %3415 = vmatprep.subr.mxu0 0.0
  %3416 = vmatpush1.msra.mxu0 0.0
  %3417 = vmatprep.subr.mxu0 0.0
  %3418 = vmatpush1.msra.mxu0 0.0
  %3419 = vmatprep.subr.mxu0 0.0
  %3420 = vmatpush1.msra.mxu0 0.0
  %3421 = vmatprep.subr.mxu0 0.0
  %3422 = vmatpush1.msra.mxu0 0.0
  %3423 = vmatprep.subr.mxu0 0.0
  %3424 = vmatpush1.msra.mxu0 0.0
  %3425 = vmatprep.subr.mxu0 0.0
  %3426 = vmatpush1.msra.mxu0 0.0
  %3427 = vmatprep.subr.mxu0 0.0
  %3428 = vmatpush1.msra.mxu0 0.0
  %3429 = vmatprep.subr.mxu0 0.0
  %3430 = vmatpush1.msra.mxu0 0.0
  %3431 = vmatprep.subr.mxu0 0.0
  %3432 = vmatpush1.msra.mxu0 0.0
  %3433 = vmatprep.subr.mxu0 0.0
  %3434 = vmatpush1.msra.mxu0 0.0
  %3435 = vmatprep.mubr.f32.mxu0 0.0
  %3436 = vmatmul.mubr.f32.gmra.mrb[0].mxu0 %v3227
  %v3437 = vpop.f32.mrb[0].mxu0
  %v3438 = vadd.f32 0.0, %v3437
  %v3439 = vpop.f32.mrb[0].mxu0
  %3440 = vmatprep.mubr.f32.mxu0 0.0
  %3441 = vmatmul.mubr.f32.gmra.mrb[0].mxu0 %v3230
  %v3442 = vpop.f32.mrb[0].mxu0
  %v3443 = vadd.f32 0.0, %v3442
  %v3444 = vpop.f32.mrb[0].mxu0
  %3445 = vmatprep.mubr.f32.mxu0 0.0
  %3446 = vmatmul.mubr.f32.gmra.mrb[0].mxu0 %v3233
  %v3447 = vpop.f32.mrb[0].mxu0
  %v3448 = vadd.f32 0.0, %v3447
  %v3449 = vpop.f32.mrb[0].mxu0
  %3450 = vmatprep.mubr.f32.mxu0 0.0
  %3451 = vmatmul.mubr.f32.gmra.mrb[0].mxu0 %v3236
  %v3452 = vpop.f32.mrb[0].mxu0
  %v3453 = vadd.f32 0.0, %v3452
  %v3454 = vpop.f32.mrb[0].mxu0
  %3455 = vmatprep.mubr.f32.mxu0 0.0
  %3456 = vmatmul.mubr.f32.gmra.mrb[0].mxu0 %v3239
  %v3457 = vpop.f32.mrb[0].mxu0
  %v3458 = vadd.f32 0.0, %v3457
  %v3459 = vpop.f32.mrb[0].mxu0
  %3460 = vmatprep.mubr.f32.mxu0 0.0
  %3461 = vmatmul.mubr.f32.gmra.mrb[0].mxu0 %v3242
  %v3462 = vpop.f32.mrb[0].mxu0
  %v3463 = vadd.f32 0.0, %v3462
  %v3464 = vpop.f32.mrb[0].mxu0
  %3465 = vmatprep.mubr.f32.mxu0 0.0
  %3466 = vmatmul.mubr.f32.gmra.mrb[0].mxu0 %v3245
  %v3467 = vpop.f32.mrb[0].mxu0
  %v3468 = vadd.f32 0.0, %v3467
  %v3469 = vpop.f32.mrb[0].mxu0
  %3470 = vmatprep.mubr.f32.mxu0 0.0
  %3471 = vmatmul.mubr.f32.gmra.mrb[0].mxu0 %v3248
  %v3472 = vpop.f32.mrb[0].mxu0
  %v3473 = vadd.f32 0.0, %v3472
  %v3474 = vpop.f32.mrb[0].mxu0
  %3475 = vdwg.mxu0
  %v3476 = vadd.f32 %v3020, %v3438
  %v3477 = vadd.f32 %v3025, %v3443
  %v3478 = vadd.f32 %v3030, %v3448
  %v3479 = vadd.f32 %v3035, %v3453
  %v3480 = vadd.f32 %v3040, %v3458
  %v3481 = vadd.f32 %v3045, %v3463
  %v3482 = vadd.f32 %v3050, %v3468
  %v3483 = vadd.f32 %v3055, %v3473
  %v3484 = vld [vmem:[#allocation2 + $0x19] sm:$0xff]
  %v3485 = vld [vmem:[#allocation2 + $0x21] sm:$0xff]
  %v3486 = vld [vmem:[#allocation2 + $0x29] sm:$0xff]
  %v3487 = vld [vmem:[#allocation2 + $0x31] sm:$0xff]
  %v3488 = vld [vmem:[#allocation2 + $0x39] sm:$0xff]
  %v3489 = vld [vmem:[#allocation2 + $0x41] sm:$0xff]
  %v3490 = vld [vmem:[#allocation2 + $0x49] sm:$0xff]
  %v3491 = vld [vmem:[#allocation2 + $0x51] sm:$0xff]
  %v3492 = vsel %vm1776, %v3484, 0.0
  %v3493 = vsel %vm1777, %v3485, 0.0
  %v3494 = vsel %vm1778, %v3486, 0.0
  %v3495 = vsel %vm1779, %v3487, 0.0
  %v3496 = vsel %vm1780, %v3488, 0.0
  %v3497 = vsel %vm1781, %v3489, 0.0
  %v3498 = vsel %vm1782, %v3490, 0.0
  %v3499 = vsel %vm1783, %v3491, 0.0
  %s3500 = scalar_lea.vmem %s11, 120
  %v3501 = vld [vmem:[%s3500] sm:$0x3f]
  %v3503 = vsel %vm80, %v3492, 0
  %v3506 = vsel %vm80, %v3493, 0
  %v3509 = vsel %vm80, %v3494, 0
  %v3512 = vsel %vm80, %v3495, 0
  %v3515 = vsel %vm80, %v3496, 0
  %v3518 = vsel %vm80, %v3497, 0
  %v3521 = vsel %vm80, %v3498, 0
  %v3524 = vsel %vm80, %v3499, 0
  %v3527 = vsel %vm224, %v3501, 0
  %3529 = vmatprep.subr.mxu0 0.0
  %3530 = vmatpush1.msra.mxu0 %v3527
  %3531 = vmatprep.subr.mxu0 0.0
  %3532 = vmatpush1.msra.mxu0 0.0
  %3533 = vmatprep.subr.mxu0 0.0
  %3534 = vmatpush1.msra.mxu0 0.0
  %3535 = vmatprep.subr.mxu0 0.0
  %3536 = vmatpush1.msra.mxu0 0.0
  %3537 = vmatprep.subr.mxu0 0.0
  %3538 = vmatpush1.msra.mxu0 0.0
  %3539 = vmatprep.subr.mxu0 0.0
  %3540 = vmatpush1.msra.mxu0 0.0
  %3541 = vmatprep.subr.mxu0 0.0
  %3542 = vmatpush1.msra.mxu0 0.0
  %3543 = vmatprep.subr.mxu0 0.0
  %3544 = vmatpush1.msra.mxu0 0.0
  %3545 = vmatprep.subr.mxu0 0.0
  %3546 = vmatpush1.msra.mxu0 0.0
  %3547 = vmatprep.subr.mxu0 0.0
  %3548 = vmatpush1.msra.mxu0 0.0
  %3549 = vmatprep.subr.mxu0 0.0
  %3550 = vmatpush1.msra.mxu0 0.0
  %3551 = vmatprep.subr.mxu0 0.0
  %3552 = vmatpush1.msra.mxu0 0.0
  %3553 = vmatprep.subr.mxu0 0.0
  %3554 = vmatpush1.msra.mxu0 0.0
  %3555 = vmatprep.subr.mxu0 0.0
  %3556 = vmatpush1.msra.mxu0 0.0
  %3557 = vmatprep.subr.mxu0 0.0
  %3558 = vmatpush1.msra.mxu0 0.0
  %3559 = vmatprep.subr.mxu0 0.0
  %3560 = vmatpush1.msra.mxu0 0.0
  %3561 = vmatprep.subr.mxu0 0.0
  %3562 = vmatpush1.msra.mxu0 0.0
  %3563 = vmatprep.subr.mxu0 0.0
  %3564 = vmatpush1.msra.mxu0 0.0
  %3565 = vmatprep.subr.mxu0 0.0
  %3566 = vmatpush1.msra.mxu0 0.0
  %3567 = vmatprep.subr.mxu0 0.0
  %3568 = vmatpush1.msra.mxu0 0.0
  %3569 = vmatprep.subr.mxu0 0.0
  %3570 = vmatpush1.msra.mxu0 0.0
  %3571 = vmatprep.subr.mxu0 0.0
  %3572 = vmatpush1.msra.mxu0 0.0
  %3573 = vmatprep.subr.mxu0 0.0
  %3574 = vmatpush1.msra.mxu0 0.0
  %3575 = vmatprep.subr.mxu0 0.0
  %3576 = vmatpush1.msra.mxu0 0.0
  %3577 = vmatprep.subr.mxu0 0.0
  %3578 = vmatpush1.msra.mxu0 0.0
  %3579 = vmatprep.subr.mxu0 0.0
  %3580 = vmatpush1.msra.mxu0 0.0
  %3581 = vmatprep.subr.mxu0 0.0
  %3582 = vmatpush1.msra.mxu0 0.0
  %3583 = vmatprep.subr.mxu0 0.0
  %3584 = vmatpush1.msra.mxu0 0.0
  %3585 = vmatprep.subr.mxu0 0.0
  %3586 = vmatpush1.msra.mxu0 0.0
  %3587 = vmatprep.subr.mxu0 0.0
  %3588 = vmatpush1.msra.mxu0 0.0
  %3589 = vmatprep.subr.mxu0 0.0
  %3590 = vmatpush1.msra.mxu0 0.0
  %3591 = vmatprep.subr.mxu0 0.0
  %3592 = vmatpush1.msra.mxu0 0.0
  %3593 = vmatprep.mubr.f32.mxu0 0.0
  %3594 = vmatmul.mubr.f32.gmra.mrb[0].mxu0 %v3503
  %v3595 = vpop.f32.mrb[0].mxu0
  %v3596 = vadd.f32 0.0, %v3595
  %v3597 = vpop.f32.mrb[0].mxu0
  %3598 = vmatprep.mubr.f32.mxu0 0.0
  %3599 = vmatmul.mubr.f32.gmra.mrb[0].mxu0 %v3506
  %v3600 = vpop.f32.mrb[0].mxu0
  %v3601 = vadd.f32 0.0, %v3600
  %v3602 = vpop.f32.mrb[0].mxu0
  %3603 = vmatprep.mubr.f32.mxu0 0.0
  %3604 = vmatmul.mubr.f32.gmra.mrb[0].mxu0 %v3509
  %v3605 = vpop.f32.mrb[0].mxu0
  %v3606 = vadd.f32 0.0, %v3605
  %v3607 = vpop.f32.mrb[0].mxu0
  %3608 = vmatprep.mubr.f32.mxu0 0.0
  %3609 = vmatmul.mubr.f32.gmra.mrb[0].mxu0 %v3512
  %v3610 = vpop.f32.mrb[0].mxu0
  %v3611 = vadd.f32 0.0, %v3610
  %v3612 = vpop.f32.mrb[0].mxu0
  %3613 = vmatprep.mubr.f32.mxu0 0.0
  %3614 = vmatmul.mubr.f32.gmra.mrb[0].mxu0 %v3515
  %v3615 = vpop.f32.mrb[0].mxu0
  %v3616 = vadd.f32 0.0, %v3615
  %v3617 = vpop.f32.mrb[0].mxu0
  %3618 = vmatprep.mubr.f32.mxu0 0.0
  %3619 = vmatmul.mubr.f32.gmra.mrb[0].mxu0 %v3518
  %v3620 = vpop.f32.mrb[0].mxu0
  %v3621 = vadd.f32 0.0, %v3620
  %v3622 = vpop.f32.mrb[0].mxu0
  %3623 = vmatprep.mubr.f32.mxu0 0.0
  %3624 = vmatmul.mubr.f32.gmra.mrb[0].mxu0 %v3521
  %v3625 = vpop.f32.mrb[0].mxu0
  %v3626 = vadd.f32 0.0, %v3625
  %v3627 = vpop.f32.mrb[0].mxu0
  %3628 = vmatprep.mubr.f32.mxu0 0.0
  %3629 = vmatmul.mubr.f32.gmra.mrb[0].mxu0 %v3524
  %v3630 = vpop.f32.mrb[0].mxu0
  %v3631 = vadd.f32 0.0, %v3630
  %v3632 = vpop.f32.mrb[0].mxu0
  %3633 = vdwg.mxu0
  %v3634 = vadd.f32 %v3476, %v3596
  %v3635 = vadd.f32 %v3477, %v3601
  %v3636 = vadd.f32 %v3478, %v3606
  %v3637 = vadd.f32 %v3479, %v3611
  %v3638 = vadd.f32 %v3480, %v3616
  %v3639 = vadd.f32 %v3481, %v3621
  %v3640 = vadd.f32 %v3482, %v3626
  %v3641 = vadd.f32 %v3483, %v3631
  %v3642 = vld [vmem:[%s12] sm:$0x1]
  %v3643 = vld [vmem:[%s0] sm:$0xff]
  %v3644 = vld [vmem:[%s0 + $0x8] sm:$0xff]
  %v3645 = vld [vmem:[%s0 + $0x10] sm:$0xff]
  %v3646 = vld [vmem:[%s0 + $0x18] sm:$0xff]
  %v3647 = vld [vmem:[%s0 + $0x20] sm:$0xff]
  %v3648 = vld [vmem:[%s0 + $0x28] sm:$0xff]
  %v3649 = vld [vmem:[%s0 + $0x30] sm:$0xff]
  %v3650 = vld [vmem:[%s0 + $0x38] sm:$0xff]
  %v3652 = vlaneseq
  %v3653 = vshrl.u32 %v3652, 7
  %v3654 = vsub.s32 0, %v3653
  %v3655 = vrot.slane %v3642, %v3654
  %v3657 = vadd.f32 %v2336, %v3655
  %v3658 = vadd.f32 %v2337, %v3655
  %v3659 = vadd.f32 %v2338, %v3655
  %v3660 = vadd.f32 %v2339, %v3655
  %v3661 = vadd.f32 %v2340, %v3655
  %v3662 = vadd.f32 %v2341, %v3655
  %v3663 = vadd.f32 %v2342, %v3655
  %v3664 = vadd.f32 %v2343, %v3655
  %v3665 = vlaneseq
  %v3666 = vshrl.u32 %v3665, 7
  %v3667 = vsub.s32 0, %v3666
  %v3668 = vrot.slane %v542, %v3667
  %v3669 = vmul.f32 %v3668, %v3657
  %v3670 = vmul.f32 %v3668, %v3658
  %v3671 = vmul.f32 %v3668, %v3659
  %v3672 = vmul.f32 %v3668, %v3660
  %v3673 = vmul.f32 %v3668, %v3661
  %v3674 = vmul.f32 %v3668, %v3662
  %v3675 = vmul.f32 %v3668, %v3663
  %v3676 = vmul.f32 %v3668, %v3664
  %v3677 = vmul.f32 %v3643, %v3669
  %v3678 = vmul.f32 %v3644, %v3670
  %v3679 = vmul.f32 %v3645, %v3671
  %v3680 = vmul.f32 %v3646, %v3672
  %v3681 = vmul.f32 %v3647, %v3673
  %v3682 = vmul.f32 %v3648, %v3674
  %v3683 = vmul.f32 %v3649, %v3675
  %v3684 = vmul.f32 %v3650, %v3676
  %v3685 = vadd.f32 %v3643, %v3677
  %v3686 = vadd.f32 %v3644, %v3678
  %v3687 = vadd.f32 %v3645, %v3679
  %v3688 = vadd.f32 %v3646, %v3680
  %v3689 = vadd.f32 %v3647, %v3681
  %v3690 = vadd.f32 %v3648, %v3682
  %v3691 = vadd.f32 %v3649, %v3683
  %v3692 = vadd.f32 %v3650, %v3684
  %3693 = vst.msk [vmem:[%s14] sm:$0xff] %vm80, %v3685
  %3694 = vst.msk [vmem:[%s14 + $0x8] sm:$0xff] %vm80, %v3686
  %3695 = vst.msk [vmem:[%s14 + $0x10] sm:$0xff] %vm80, %v3687
  %3696 = vst.msk [vmem:[%s14 + $0x18] sm:$0xff] %vm80, %v3688
  %3697 = vst.msk [vmem:[%s14 + $0x20] sm:$0xff] %vm80, %v3689
  %3698 = vst.msk [vmem:[%s14 + $0x28] sm:$0xff] %vm80, %v3690
  %3699 = vst.msk [vmem:[%s14 + $0x30] sm:$0xff] %vm80, %v3691
  %3700 = vst.msk [vmem:[%s14 + $0x38] sm:$0xff] %vm80, %v3692
  %v3701 = vld [vmem:[%s0 + $0x40] sm:$0xff]
  %v3702 = vld [vmem:[%s0 + $0x48] sm:$0xff]
  %v3703 = vld [vmem:[%s0 + $0x50] sm:$0xff]
  %v3704 = vld [vmem:[%s0 + $0x58] sm:$0xff]
  %v3705 = vld [vmem:[%s0 + $0x60] sm:$0xff]
  %v3706 = vld [vmem:[%s0 + $0x68] sm:$0xff]
  %v3707 = vld [vmem:[%s0 + $0x70] sm:$0xff]
  %v3708 = vld [vmem:[%s0 + $0x78] sm:$0xff]
  %v3709 = vadd.f32 %v2832, %v3655
  %v3710 = vadd.f32 %v2833, %v3655
  %v3711 = vadd.f32 %v2834, %v3655
  %v3712 = vadd.f32 %v2835, %v3655
  %v3713 = vadd.f32 %v2836, %v3655
  %v3714 = vadd.f32 %v2837, %v3655
  %v3715 = vadd.f32 %v2838, %v3655
  %v3716 = vadd.f32 %v2839, %v3655
  %v3717 = vmul.f32 %v3668, %v3709
  %v3718 = vmul.f32 %v3668, %v3710
  %v3719 = vmul.f32 %v3668, %v3711
  %v3720 = vmul.f32 %v3668, %v3712
  %v3721 = vmul.f32 %v3668, %v3713
  %v3722 = vmul.f32 %v3668, %v3714
  %v3723 = vmul.f32 %v3668, %v3715
  %v3724 = vmul.f32 %v3668, %v3716
  %v3725 = vmul.f32 %v3701, %v3717
  %v3726 = vmul.f32 %v3702, %v3718
  %v3727 = vmul.f32 %v3703, %v3719
  %v3728 = vmul.f32 %v3704, %v3720
  %v3729 = vmul.f32 %v3705, %v3721
  %v3730 = vmul.f32 %v3706, %v3722
  %v3731 = vmul.f32 %v3707, %v3723
  %v3732 = vmul.f32 %v3708, %v3724
  %v3733 = vadd.f32 %v3701, %v3725
  %v3734 = vadd.f32 %v3702, %v3726
  %v3735 = vadd.f32 %v3703, %v3727
  %v3736 = vadd.f32 %v3704, %v3728
  %v3737 = vadd.f32 %v3705, %v3729
  %v3738 = vadd.f32 %v3706, %v3730
  %v3739 = vadd.f32 %v3707, %v3731
  %v3740 = vadd.f32 %v3708, %v3732
  %3741 = vst.msk [vmem:[%s14 + $0x40] sm:$0xff] %vm80, %v3733
  %3742 = vst.msk [vmem:[%s14 + $0x48] sm:$0xff] %vm80, %v3734
  %3743 = vst.msk [vmem:[%s14 + $0x50] sm:$0xff] %vm80, %v3735
  %3744 = vst.msk [vmem:[%s14 + $0x58] sm:$0xff] %vm80, %v3736
  %3745 = vst.msk [vmem:[%s14 + $0x60] sm:$0xff] %vm80, %v3737
  %3746 = vst.msk [vmem:[%s14 + $0x68] sm:$0xff] %vm80, %v3738
  %3747 = vst.msk [vmem:[%s14 + $0x70] sm:$0xff] %vm80, %v3739
  %3748 = vst.msk [vmem:[%s14 + $0x78] sm:$0xff] %vm80, %v3740
  %v3749 = vld [vmem:[%s0 + $0x80] sm:$0xff]
  %v3750 = vld [vmem:[%s0 + $0x88] sm:$0xff]
  %v3751 = vld [vmem:[%s0 + $0x90] sm:$0xff]
  %v3752 = vld [vmem:[%s0 + $0x98] sm:$0xff]
  %v3753 = vld [vmem:[%s0 + $0xa0] sm:$0xff]
  %v3754 = vld [vmem:[%s0 + $0xa8] sm:$0xff]
  %v3755 = vld [vmem:[%s0 + $0xb0] sm:$0xff]
  %v3756 = vld [vmem:[%s0 + $0xb8] sm:$0xff]
  %v3757 = vadd.f32 %v3358, %v3655
  %v3758 = vadd.f32 %v3359, %v3655
  %v3759 = vadd.f32 %v3360, %v3655
  %v3760 = vadd.f32 %v3361, %v3655
  %v3761 = vadd.f32 %v3362, %v3655
  %v3762 = vadd.f32 %v3363, %v3655
  %v3763 = vadd.f32 %v3364, %v3655
  %v3764 = vadd.f32 %v3365, %v3655
  %v3765 = vmul.f32 %v3668, %v3757
  %v3766 = vmul.f32 %v3668, %v3758
  %v3767 = vmul.f32 %v3668, %v3759
  %v3768 = vmul.f32 %v3668, %v3760
  %v3769 = vmul.f32 %v3668, %v3761
  %v3770 = vmul.f32 %v3668, %v3762
  %v3771 = vmul.f32 %v3668, %v3763
  %v3772 = vmul.f32 %v3668, %v3764
  %v3773 = vmul.f32 %v3749, %v3765
  %v3774 = vmul.f32 %v3750, %v3766
  %v3775 = vmul.f32 %v3751, %v3767
  %v3776 = vmul.f32 %v3752, %v3768
  %v3777 = vmul.f32 %v3753, %v3769
  %v3778 = vmul.f32 %v3754, %v3770
  %v3779 = vmul.f32 %v3755, %v3771
  %v3780 = vmul.f32 %v3756, %v3772
  %v3781 = vadd.f32 %v3749, %v3773
  %v3782 = vadd.f32 %v3750, %v3774
  %v3783 = vadd.f32 %v3751, %v3775
  %v3784 = vadd.f32 %v3752, %v3776
  %v3785 = vadd.f32 %v3753, %v3777
  %v3786 = vadd.f32 %v3754, %v3778
  %v3787 = vadd.f32 %v3755, %v3779
  %v3788 = vadd.f32 %v3756, %v3780
  %3789 = vst.msk [vmem:[%s14 + $0x80] sm:$0xff] %vm80, %v3781
  %3790 = vst.msk [vmem:[%s14 + $0x88] sm:$0xff] %vm80, %v3782
  %3791 = vst.msk [vmem:[%s14 + $0x90] sm:$0xff] %vm80, %v3783
  %3792 = vst.msk [vmem:[%s14 + $0x98] sm:$0xff] %vm80, %v3784
  %3793 = vst.msk [vmem:[%s14 + $0xa0] sm:$0xff] %vm80, %v3785
  %3794 = vst.msk [vmem:[%s14 + $0xa8] sm:$0xff] %vm80, %v3786
  %3795 = vst.msk [vmem:[%s14 + $0xb0] sm:$0xff] %vm80, %v3787
  %3796 = vst.msk [vmem:[%s14 + $0xb8] sm:$0xff] %vm80, %v3788
  %v3797 = vld [vmem:[%s0 + $0xc0] sm:$0xff]
  %v3798 = vld [vmem:[%s0 + $0xc8] sm:$0xff]
  %v3799 = vld [vmem:[%s0 + $0xd0] sm:$0xff]
  %v3800 = vld [vmem:[%s0 + $0xd8] sm:$0xff]
  %v3801 = vld [vmem:[%s0 + $0xe0] sm:$0xff]
  %v3802 = vld [vmem:[%s0 + $0xe8] sm:$0xff]
  %v3803 = vld [vmem:[%s0 + $0xf0] sm:$0xff]
  %v3804 = vld [vmem:[%s0 + $0xf8] sm:$0xff]
  %v3805 = vadd.f32 %v3634, %v3655
  %v3806 = vadd.f32 %v3635, %v3655
  %v3807 = vadd.f32 %v3636, %v3655
  %v3808 = vadd.f32 %v3637, %v3655
  %v3809 = vadd.f32 %v3638, %v3655
  %v3810 = vadd.f32 %v3639, %v3655
  %v3811 = vadd.f32 %v3640, %v3655
  %v3812 = vadd.f32 %v3641, %v3655
  %v3813 = vmul.f32 %v3668, %v3805
  %v3814 = vmul.f32 %v3668, %v3806
  %v3815 = vmul.f32 %v3668, %v3807
  %v3816 = vmul.f32 %v3668, %v3808
  %v3817 = vmul.f32 %v3668, %v3809
  %v3818 = vmul.f32 %v3668, %v3810
  %v3819 = vmul.f32 %v3668, %v3811
  %v3820 = vmul.f32 %v3668, %v3812
  %v3821 = vmul.f32 %v3797, %v3813
  %v3822 = vmul.f32 %v3798, %v3814
  %v3823 = vmul.f32 %v3799, %v3815
  %v3824 = vmul.f32 %v3800, %v3816
  %v3825 = vmul.f32 %v3801, %v3817
  %v3826 = vmul.f32 %v3802, %v3818
  %v3827 = vmul.f32 %v3803, %v3819
  %v3828 = vmul.f32 %v3804, %v3820
  %v3829 = vadd.f32 %v3797, %v3821
  %v3830 = vadd.f32 %v3798, %v3822
  %v3831 = vadd.f32 %v3799, %v3823
  %v3832 = vadd.f32 %v3800, %v3824
  %v3833 = vadd.f32 %v3801, %v3825
  %v3834 = vadd.f32 %v3802, %v3826
  %v3835 = vadd.f32 %v3803, %v3827
  %v3836 = vadd.f32 %v3804, %v3828
  %3837 = vst.msk [vmem:[%s14 + $0xc0] sm:$0xff] %vm80, %v3829
  %3838 = vst.msk [vmem:[%s14 + $0xc8] sm:$0xff] %vm80, %v3830
  %3839 = vst.msk [vmem:[%s14 + $0xd0] sm:$0xff] %vm80, %v3831
  %3840 = vst.msk [vmem:[%s14 + $0xd8] sm:$0xff] %vm80, %v3832
  %3841 = vst.msk [vmem:[%s14 + $0xe0] sm:$0xff] %vm80, %v3833
  %3842 = vst.msk [vmem:[%s14 + $0xe8] sm:$0xff] %vm80, %v3834
  %3843 = vst.msk [vmem:[%s14 + $0xf0] sm:$0xff] %vm80, %v3835
  %3844 = vst.msk [vmem:[%s14 + $0xf8] sm:$0xff] %vm80, %v3836
  // Predicated region
  $region58: #{dam_forward.1} parent=0 // pred_check
    _
  $region59: #{dam_forward.1} parent=0 // pred_check_branch
    %3846 = sbr.rel (0) target = $region61
  $region60: #{dam_forward.1} parent=0 // pred_region
    _
  $region61: #{dam_forward.1} parent=0 // pred_fallthru
    _
  // Predicated region
  $region62: #{dam_forward.1} parent=0 // pred_check
    _
  $region63: #{dam_forward.1} parent=0 // pred_check_branch
    %3848 = sbr.rel (0) target = $region65
  $region64: #{dam_forward.1} parent=0 // pred_region
    _
  $region65: #{dam_forward.1} parent=0 // pred_fallthru
    _

</llo_original>
